<compile_context>
chip_gen: v7x
topology: tpu7x:2x2x1
jax: 0.10.0
libtpu: 0.0.40
codegen_flags: <defaults>
</compile_context>

<pallas_src>
import functools

import jax
import jax.numpy as jnp
from jax import lax
from jax.experimental import pallas as pl
from jax.experimental.pallas import tpu as pltpu


_EPS = 1e-5
# PyTorch Conv2d dilation convention is (dilation_H, dilation_W):
#   matrix11_*: (1,1)   matrix12_*: (2,1)   matrix21_*: (1,2)
_DILS = ((1, 1), (2, 1), (1, 2))
_BRANCHES = ("11k", "12k", "21k", "11s", "12s", "21s")
_LANE = 128


# ----------------------------------------------------------------------------
# Fused kernel: all 6 conv+BN+ReLU branches for one batch image per grid step.
# ----------------------------------------------------------------------------
def _matrix_kernel(z_ref, x_ref, *refs, hos, dils):
    # refs = (w0..w5, b0..b5, o0..o5); branches 0-2 read z_ref, 3-5 read x_ref.
    # z_ref / x_ref blocks: (1, H, W*Cin) -- whole flattened NHWC image in VMEM.
    # w refs: (3, W*Cin, NB) banded per-ky weights (BN scale folded, NB 128-padded).
    # b refs: (1, NB) bias (128-padded).    o refs: (1, Ho, NB) lane-dense slabs.
    w_refs, b_refs, o_refs = refs[0:6], refs[6:12], refs[12:18]
    in_refs = (z_ref, z_ref, z_ref, x_ref, x_ref, x_ref)
    for br in range(6):
        dh, _ = dils[br]
        ho = hos[br]
        src, w_r, b_r, o_r = in_refs[br], w_refs[br], b_refs[br], o_refs[br]
        nb = o_r.shape[-1]
        acc = jnp.zeros((ho, nb), jnp.float32)
        for ky in range(3):
            # Full-width row slab (Ho, W*Cin): the banded weight matrix handles
            # all three kx taps of this kernel row in a single matmul.
            slab = src[0, pl.ds(ky * dh, ho), :]
            acc = acc + jnp.dot(slab, w_r[ky],
                                preferred_element_type=jnp.float32)
        # BN scale already folded into the weights; bias add + ReLU epilogue.
        # Padded lanes stay exactly zero (zero weights + zero bias -> ReLU(0)).
        o_r[0] = jnp.maximum(acc + b_r[...], 0.0)


# ----------------------------------------------------------------------------
# Host-side (one-time) parameter preparation.
# ----------------------------------------------------------------------------
def _prep_branch(p, w_in, dil):
    """Fold BN scale into the conv weights and build, for each ky, a banded
    (W_in*Cin, NB) matrix summing the three column-shifted block-diagonal
    expansions of the kx taps.  NB = Wo*Cout rounded up to a multiple of 128
    (zero-padded) so kernel stores are lane-dense."""
    dh, dw = dil
    w, scale, bias = p["w"], p["scale"], p["bias"]
    cout, cin = w.shape[0], w.shape[1]
    wo = w_in - 2 * dw
    nb = ((wo * cout + _LANE - 1) // _LANE) * _LANE
    # (ky, kx, Cin, Cout) taps with the BN scale folded in.
    taps = jnp.transpose(w, (2, 3, 1, 0)).astype(jnp.float32) * scale.reshape(1, 1, 1, cout)
    wband = jnp.zeros((3, w_in * cin, wo * cout), jnp.float32)
    out_cols = jnp.arange(wo)
    for kx in range(3):
        # shift[w_in, wo]: shift[xo + kx*dw, xo] = 1  (column-shifted identity)
        shift = jnp.zeros((w_in, wo), jnp.float32).at[out_cols + kx * dw, out_cols].set(1.0)
        wband = wband + jnp.einsum("xy,kio->kxiyo", shift, taps[:, kx]
                                   ).reshape(3, w_in * cin, wo * cout)
    wband = jnp.pad(wband, ((0, 0), (0, 0), (0, nb - wo * cout)))
    bflat = jnp.pad(jnp.tile(bias.astype(jnp.float32), wo),
                    (0, nb - wo * cout)).reshape(1, nb)
    return wband, bflat, nb


def prepare_matrix(params, z_hw, x_hw):
    """One-time prep (BN folding + banded tap expansion + lane padding) for the
    given template/search spatial sizes."""
    cin = params["11k"]["w"].shape[1]
    cout = params["11k"]["w"].shape[0]
    dils = _DILS + _DILS
    hws = [z_hw] * 3 + [x_hw] * 3
    hos, wos, nbs, ws, bs = [], [], [], [], []
    for name, dil, (h, w) in zip(_BRANCHES, dils, hws):
        dh, dw = dil
        wband, bflat, nb = _prep_branch(params[name], w, dil)
        ws.append(wband)
        bs.append(bflat)
        hos.append(h - 2 * dh)
        wos.append(w - 2 * dw)
        nbs.append(nb)
    return dict(z_hw=tuple(z_hw), x_hw=tuple(x_hw), cin=cin, cout=cout,
                dils=dils, hos=tuple(hos), wos=tuple(wos), nbs=tuple(nbs),
                ws=ws, bs=bs)


# ----------------------------------------------------------------------------
# Forward: single fused pallas_call for both towers.
# ----------------------------------------------------------------------------
def matrix_forward_nhwc(prep, z_nhwc, x_nhwc):
    """NHWC-native forward (one pallas_call).  Returns ([z11,z12,z21],
    [x11,x12,x21]) in NHWC."""
    n, hz, wz, cin = z_nhwc.shape
    nx, hx, wx, cinx = x_nhwc.shape
    assert n == nx and cin == cinx == prep["cin"], "prep/input mismatch"
    assert (hz, wz) == prep["z_hw"] and (hx, wx) == prep["x_hw"], "prep/input mismatch"
    cout = prep["cout"]
    hos, wos, nbs = prep["hos"], prep["wos"], prep["nbs"]

    # trailing-dim merges: layout no-ops, lane axis becomes W*Cin (96 / 128).
    z_flat = z_nhwc.reshape(n, hz, wz * cin)
    x_flat = x_nhwc.reshape(n, hx, wx * cin)

    kernel = functools.partial(_matrix_kernel, hos=hos, dils=prep["dils"])
    outs = pl.pallas_call(
        kernel,
        out_shape=tuple(jax.ShapeDtypeStruct((n, ho, nb), jnp.float32)
                        for ho, nb in zip(hos, nbs)),
        grid=(n,),
        in_specs=[pl.BlockSpec((1, hz, wz * cin), lambda b: (b, 0, 0)),
                  pl.BlockSpec((1, hx, wx * cin), lambda b: (b, 0, 0))]
                + [pl.BlockSpec(wb.shape, lambda b: (0, 0, 0)) for wb in prep["ws"]]
                + [pl.BlockSpec(bb.shape, lambda b: (0, 0)) for bb in prep["bs"]],
        out_specs=tuple(pl.BlockSpec((1, ho, nb), lambda b: (b, 0, 0))
                        for ho, nb in zip(hos, nbs)),
        compiler_params=pltpu.CompilerParams(
            dimension_semantics=("parallel",)),   # v7x: one image per TensorCore
    )(z_flat, x_flat, *prep["ws"], *prep["bs"])

    # slice off the 128-lane padding, split trailing dim back to NHWC.
    res = [o[:, :, :wo * cout].reshape(n, ho, wo, cout)
           for o, ho, wo in zip(outs, hos, wos)]
    return res[:3], res[3:]


def matrix_forward_nchw(prep, z_nchw, x_nchw):
    """Drop-in PyTorch-convention (NCHW) adapter around the NHWC-native path."""
    z_nhwc = jnp.transpose(z_nchw, (0, 2, 3, 1))
    x_nhwc = jnp.transpose(x_nchw, (0, 2, 3, 1))
    zs, xs = matrix_forward_nhwc(prep, z_nhwc, x_nhwc)
    to_nchw = lambda t: jnp.transpose(t, (0, 3, 1, 2))
    return [to_nchw(t) for t in zs], [to_nchw(t) for t in xs]


# TODO(synk): `param_groups` (optimizer LR grouping) is host-side bookkeeping
# with no kernel equivalent; omitted.


# ----------------------------------------------------------------------------
# Module parameters (deterministic synthetic init).
# ----------------------------------------------------------------------------
def init_branch(key, cin, cout):
    kw, kg, kb, km, kv = jax.random.split(key, 5)
    w = jax.random.normal(kw, (cout, cin, 3, 3), jnp.float32) * 0.1
    gamma = 1.0 + 0.1 * jax.random.normal(kg, (cout,), jnp.float32)
    beta = 0.1 * jax.random.normal(kb, (cout,), jnp.float32)
    mean = 0.1 * jax.random.normal(km, (cout,), jnp.float32)
    var = jnp.abs(jax.random.normal(kv, (cout,), jnp.float32)) + 0.5
    scale = gamma / jnp.sqrt(var + _EPS)          # folded BN (inference form)
    bias = beta - mean * scale
    return {"w": w, "scale": scale, "bias": bias}


def init_matrix_params(key, in_channels, out_channels):
    assert in_channels == out_channels, (
        "original forward requires in_channels == out_channels")
    keys = jax.random.split(key, 6)
    return {n: init_branch(k, in_channels, out_channels)
            for n, k in zip(_BRANCHES, keys)}


# ----------------------------------------------------------------------------
# Pure-JAX NCHW reference (PyTorch semantics) for correctness checking.
# ----------------------------------------------------------------------------
def _ref_branch(x_nchw, p, dilation):
    y = lax.conv_general_dilated(
        x_nchw, p["w"], window_strides=(1, 1), padding="VALID",
        rhs_dilation=dilation, dimension_numbers=("NCHW", "OIHW", "NCHW"))
    y = y * p["scale"][None, :, None, None] + p["bias"][None, :, None, None]
    return jnp.maximum(y, 0.0)


def matrix_forward_ref(params, z, x):
    zs = [_ref_branch(z, params[t + "k"], d) for t, d in zip(("11", "12", "21"), _DILS)]
    xs = [_ref_branch(x, params[t + "s"], d) for t, d in zip(("11", "12", "21"), _DILS)]
    return zs, xs


if __name__ == "__main__":
    key = jax.random.PRNGKey(0)
    kp, kz, kx = jax.random.split(key, 3)

    in_channels = out_channels = 8
    params = init_matrix_params(kp, in_channels, out_channels)

    # PyTorch-convention NCHW inputs (template z, search x).
    z_nchw = jax.random.normal(kz, (2, in_channels, 12, 12), jnp.float32)
    x_nchw = jax.random.normal(kx, (2, in_channels, 16, 16), jnp.float32)

    # One-time prep: BN folding + banded tap expansion + 128-lane padding.
    prep = prepare_matrix(params, (12, 12), (16, 16))

    # Performance path: NHWC end-to-end, single fused pallas_call.
    z_nhwc = jnp.transpose(z_nchw, (0, 2, 3, 1))
    x_nhwc = jnp.transpose(x_nchw, (0, 2, 3, 1))
    zs_nhwc, xs_nhwc = matrix_forward_nhwc(prep, z_nhwc, x_nhwc)
    jax.block_until_ready(zs_nhwc + xs_nhwc)

    # Verify against the NCHW (PyTorch-semantics) reference.
    z_ref, x_ref = matrix_forward_ref(params, z_nchw, x_nchw)
    for got, ref in zip(zs_nhwc + xs_nhwc, z_ref + x_ref):
        ref_nhwc = jnp.transpose(ref, (0, 2, 3, 1))
        assert got.shape == ref_nhwc.shape, (got.shape, ref_nhwc.shape)
        assert jnp.allclose(got, ref_nhwc, rtol=2e-4, atol=2e-4), float(
            jnp.max(jnp.abs(got - ref_nhwc)))

    # Also verify the NCHW drop-in adapter.
    zs_nchw, xs_nchw = matrix_forward_nchw(prep, z_nchw, x_nchw)
    for got, ref in zip(zs_nchw + xs_nchw, z_ref + x_ref):
        assert got.shape == ref.shape, (got.shape, ref.shape)
        assert jnp.allclose(got, ref, rtol=2e-4, atol=2e-4), float(
            jnp.max(jnp.abs(got - ref)))

    print("KERNEL_OK")
</pallas_src>

<mosaic_0001>
module attributes {stable_mosaic.version = 11 : i64} {
  func.func @_matrix_kernel(%arg0: i32, %arg1: memref<1x12x96xf32, #tpu.memory_space<vmem>>, %arg2: memref<1x16x128xf32, #tpu.memory_space<vmem>>, %arg3: memref<3x96x128xf32, #tpu.memory_space<vmem>>, %arg4: memref<3x96x128xf32, #tpu.memory_space<vmem>>, %arg5: memref<3x96x128xf32, #tpu.memory_space<vmem>>, %arg6: memref<3x128x128xf32, #tpu.memory_space<vmem>>, %arg7: memref<3x128x128xf32, #tpu.memory_space<vmem>>, %arg8: memref<3x128x128xf32, #tpu.memory_space<vmem>>, %arg9: memref<1x128xf32, #tpu.memory_space<vmem>>, %arg10: memref<1x128xf32, #tpu.memory_space<vmem>>, %arg11: memref<1x128xf32, #tpu.memory_space<vmem>>, %arg12: memref<1x128xf32, #tpu.memory_space<vmem>>, %arg13: memref<1x128xf32, #tpu.memory_space<vmem>>, %arg14: memref<1x128xf32, #tpu.memory_space<vmem>>, %arg15: memref<1x10x128xf32, #tpu.memory_space<vmem>>, %arg16: memref<1x8x128xf32, #tpu.memory_space<vmem>>, %arg17: memref<1x10x128xf32, #tpu.memory_space<vmem>>, %arg18: memref<1x14x128xf32, #tpu.memory_space<vmem>>, %arg19: memref<1x12x128xf32, #tpu.memory_space<vmem>>, %arg20: memref<1x14x128xf32, #tpu.memory_space<vmem>>) attributes {dimension_semantics = [#tpu.dimension_semantics<parallel>], iteration_bounds = array<i64: 2>, scalar_prefetch = 0 : i64, scratch_operands = 0 : i64, tpu.core_type = #tpu.core_type<tc>, window_params = [{transform_indices = @transform_0, window_bounds = array<i64: 1, 12, 96>}, {transform_indices = @transform_1, window_bounds = array<i64: 1, 16, 128>}, {pipeline_mode = #tpu.pipeline_mode<synchronous>, transform_indices = @transform_2, window_bounds = array<i64: 3, 96, 128>}, {pipeline_mode = #tpu.pipeline_mode<synchronous>, transform_indices = @transform_3, window_bounds = array<i64: 3, 96, 128>}, {pipeline_mode = #tpu.pipeline_mode<synchronous>, transform_indices = @transform_4, window_bounds = array<i64: 3, 96, 128>}, {pipeline_mode = #tpu.pipeline_mode<synchronous>, transform_indices = @transform_5, window_bounds = array<i64: 3, 128, 128>}, {pipeline_mode = #tpu.pipeline_mode<synchronous>, transform_indices = @transform_6, window_bounds = array<i64: 3, 128, 128>}, {pipeline_mode = #tpu.pipeline_mode<synchronous>, transform_indices = @transform_7, window_bounds = array<i64: 3, 128, 128>}, {pipeline_mode = #tpu.pipeline_mode<synchronous>, transform_indices = @transform_8, window_bounds = array<i64: 1, 128>}, {pipeline_mode = #tpu.pipeline_mode<synchronous>, transform_indices = @transform_9, window_bounds = array<i64: 1, 128>}, {pipeline_mode = #tpu.pipeline_mode<synchronous>, transform_indices = @transform_10, window_bounds = array<i64: 1, 128>}, {pipeline_mode = #tpu.pipeline_mode<synchronous>, transform_indices = @transform_11, window_bounds = array<i64: 1, 128>}, {pipeline_mode = #tpu.pipeline_mode<synchronous>, transform_indices = @transform_12, window_bounds = array<i64: 1, 128>}, {pipeline_mode = #tpu.pipeline_mode<synchronous>, transform_indices = @transform_13, window_bounds = array<i64: 1, 128>}, {transform_indices = @transform_14, window_bounds = array<i64: 1, 10, 128>}, {transform_indices = @transform_15, window_bounds = array<i64: 1, 8, 128>}, {transform_indices = @transform_16, window_bounds = array<i64: 1, 10, 128>}, {transform_indices = @transform_17, window_bounds = array<i64: 1, 14, 128>}, {transform_indices = @transform_18, window_bounds = array<i64: 1, 12, 128>}, {transform_indices = @transform_19, window_bounds = array<i64: 1, 14, 128>}]} {
    %cst = arith.constant 0.000000e+00 : f32
    %0 = vector.broadcast %cst : f32 to vector<10x128xf32>
    %c0 = arith.constant 0 : index
    %c0_0 = arith.constant 0 : index
    %c0_1 = arith.constant 0 : index
    %1 = vector.load %arg1[%c0, %c0_0, %c0_1] : memref<1x12x96xf32, #tpu.memory_space<vmem>>, vector<1x10x96xf32>
    %2 = vector.shape_cast %1 : vector<1x10x96xf32> to vector<10x96xf32>
    %c0_2 = arith.constant 0 : index
    %c0_3 = arith.constant 0 : index
    %c0_4 = arith.constant 0 : index
    %3 = vector.load %arg3[%c0_2, %c0_3, %c0_4] : memref<3x96x128xf32, #tpu.memory_space<vmem>>, vector<1x96x128xf32>
    %4 = vector.shape_cast %3 : vector<1x96x128xf32> to vector<96x128xf32>
    %cst_5 = arith.constant dense<0.000000e+00> : vector<10x128xf32>
    %5 = tpu.matmul %2, %4, %cst_5 {dimension_numbers = #tpu.dot_dimension_numbers<[1], [0], [0], [1], [0, 0, 1, 1], [], []>} : vector<10x96xf32>, vector<96x128xf32>, vector<10x128xf32> -> vector<10x128xf32>
    %6 = arith.addf %0, %5 : vector<10x128xf32>
    %c0_6 = arith.constant 0 : index
    %c1 = arith.constant 1 : index
    %c0_7 = arith.constant 0 : index
    %7 = vector.load %arg1[%c0_6, %c1, %c0_7] : memref<1x12x96xf32, #tpu.memory_space<vmem>>, vector<1x10x96xf32>
    %8 = vector.shape_cast %7 : vector<1x10x96xf32> to vector<10x96xf32>
    %c1_8 = arith.constant 1 : index
    %c0_9 = arith.constant 0 : index
    %c0_10 = arith.constant 0 : index
    %9 = vector.load %arg3[%c1_8, %c0_9, %c0_10] : memref<3x96x128xf32, #tpu.memory_space<vmem>>, vector<1x96x128xf32>
    %10 = vector.shape_cast %9 : vector<1x96x128xf32> to vector<96x128xf32>
    %cst_11 = arith.constant dense<0.000000e+00> : vector<10x128xf32>
    %11 = tpu.matmul %8, %10, %cst_11 {dimension_numbers = #tpu.dot_dimension_numbers<[1], [0], [0], [1], [0, 0, 1, 1], [], []>} : vector<10x96xf32>, vector<96x128xf32>, vector<10x128xf32> -> vector<10x128xf32>
    %12 = arith.addf %6, %11 : vector<10x128xf32>
    %c0_12 = arith.constant 0 : index
    %c2 = arith.constant 2 : index
    %c0_13 = arith.constant 0 : index
    %13 = vector.load %arg1[%c0_12, %c2, %c0_13] : memref<1x12x96xf32, #tpu.memory_space<vmem>>, vector<1x10x96xf32>
    %14 = vector.shape_cast %13 : vector<1x10x96xf32> to vector<10x96xf32>
    %c2_14 = arith.constant 2 : index
    %c0_15 = arith.constant 0 : index
    %c0_16 = arith.constant 0 : index
    %15 = vector.load %arg3[%c2_14, %c0_15, %c0_16] : memref<3x96x128xf32, #tpu.memory_space<vmem>>, vector<1x96x128xf32>
    %16 = vector.shape_cast %15 : vector<1x96x128xf32> to vector<96x128xf32>
    %cst_17 = arith.constant dense<0.000000e+00> : vector<10x128xf32>
    %17 = tpu.matmul %14, %16, %cst_17 {dimension_numbers = #tpu.dot_dimension_numbers<[1], [0], [0], [1], [0, 0, 1, 1], [], []>} : vector<10x96xf32>, vector<96x128xf32>, vector<10x128xf32> -> vector<10x128xf32>
    %18 = arith.addf %12, %17 : vector<10x128xf32>
    %c0_18 = arith.constant 0 : index
    %c0_19 = arith.constant 0 : index
    %19 = vector.load %arg9[%c0_18, %c0_19] : memref<1x128xf32, #tpu.memory_space<vmem>>, vector<1x128xf32>
    %20 = vector.broadcast %19 : vector<1x128xf32> to vector<10x128xf32>
    %21 = arith.addf %18, %20 : vector<10x128xf32>
    %cst_20 = arith.constant 0.000000e+00 : f32
    %22 = vector.broadcast %cst_20 : f32 to vector<10x128xf32>
    %23 = arith.maximumf %21, %22 : vector<10x128xf32>
    %c0_21 = arith.constant 0 : index
    %c0_22 = arith.constant 0 : index
    %c0_23 = arith.constant 0 : index
    %24 = vector.load %arg15[%c0_21, %c0_22, %c0_23] : memref<1x10x128xf32, #tpu.memory_space<vmem>>, vector<1x10x128xf32>
    %25 = vector.shape_cast %24 : vector<1x10x128xf32> to vector<10x128xf32>
    %26 = vector.shape_cast %23 : vector<10x128xf32> to vector<1x10x128xf32>
    tpu.vector_store %arg15[%c0_21, %c0_22, %c0_23], %26 {strides = array<i32>} : memref<1x10x128xf32, #tpu.memory_space<vmem>>, vector<1x10x128xf32>,
    %cst_24 = arith.constant 0.000000e+00 : f32
    %27 = vector.broadcast %cst_24 : f32 to vector<8x128xf32>
    %c0_25 = arith.constant 0 : index
    %c0_26 = arith.constant 0 : index
    %c0_27 = arith.constant 0 : index
    %28 = vector.load %arg1[%c0_25, %c0_26, %c0_27] : memref<1x12x96xf32, #tpu.memory_space<vmem>>, vector<1x8x96xf32>
    %29 = vector.shape_cast %28 : vector<1x8x96xf32> to vector<8x96xf32>
    %c0_28 = arith.constant 0 : index
    %c0_29 = arith.constant 0 : index
    %c0_30 = arith.constant 0 : index
    %30 = vector.load %arg4[%c0_28, %c0_29, %c0_30] : memref<3x96x128xf32, #tpu.memory_space<vmem>>, vector<1x96x128xf32>
    %31 = vector.shape_cast %30 : vector<1x96x128xf32> to vector<96x128xf32>
    %cst_31 = arith.constant dense<0.000000e+00> : vector<8x128xf32>
    %32 = tpu.matmul %29, %31, %cst_31 {dimension_numbers = #tpu.dot_dimension_numbers<[1], [0], [0], [1], [0, 0, 1, 1], [], []>} : vector<8x96xf32>, vector<96x128xf32>, vector<8x128xf32> -> vector<8x128xf32>
    %33 = arith.addf %27, %32 : vector<8x128xf32>
    %c0_32 = arith.constant 0 : index
    %c2_33 = arith.constant 2 : index
    %c0_34 = arith.constant 0 : index
    %34 = vector.load %arg1[%c0_32, %c2_33, %c0_34] : memref<1x12x96xf32, #tpu.memory_space<vmem>>, vector<1x8x96xf32>
    %35 = vector.shape_cast %34 : vector<1x8x96xf32> to vector<8x96xf32>
    %c1_35 = arith.constant 1 : index
    %c0_36 = arith.constant 0 : index
    %c0_37 = arith.constant 0 : index
    %36 = vector.load %arg4[%c1_35, %c0_36, %c0_37] : memref<3x96x128xf32, #tpu.memory_space<vmem>>, vector<1x96x128xf32>
    %37 = vector.shape_cast %36 : vector<1x96x128xf32> to vector<96x128xf32>
    %cst_38 = arith.constant dense<0.000000e+00> : vector<8x128xf32>
    %38 = tpu.matmul %35, %37, %cst_38 {dimension_numbers = #tpu.dot_dimension_numbers<[1], [0], [0], [1], [0, 0, 1, 1], [], []>} : vector<8x96xf32>, vector<96x128xf32>, vector<8x128xf32> -> vector<8x128xf32>
    %39 = arith.addf %33, %38 : vector<8x128xf32>
    %c0_39 = arith.constant 0 : index
    %c4 = arith.constant 4 : index
    %c0_40 = arith.constant 0 : index
    %40 = vector.load %arg1[%c0_39, %c4, %c0_40] : memref<1x12x96xf32, #tpu.memory_space<vmem>>, vector<1x8x96xf32>
    %41 = vector.shape_cast %40 : vector<1x8x96xf32> to vector<8x96xf32>
    %c2_41 = arith.constant 2 : index
    %c0_42 = arith.constant 0 : index
    %c0_43 = arith.constant 0 : index
    %42 = vector.load %arg4[%c2_41, %c0_42, %c0_43] : memref<3x96x128xf32, #tpu.memory_space<vmem>>, vector<1x96x128xf32>
    %43 = vector.shape_cast %42 : vector<1x96x128xf32> to vector<96x128xf32>
    %cst_44 = arith.constant dense<0.000000e+00> : vector<8x128xf32>
    %44 = tpu.matmul %41, %43, %cst_44 {dimension_numbers = #tpu.dot_dimension_numbers<[1], [0], [0], [1], [0, 0, 1, 1], [], []>} : vector<8x96xf32>, vector<96x128xf32>, vector<8x128xf32> -> vector<8x128xf32>
    %45 = arith.addf %39, %44 : vector<8x128xf32>
    %c0_45 = arith.constant 0 : index
    %c0_46 = arith.constant 0 : index
    %46 = vector.load %arg10[%c0_45, %c0_46] : memref<1x128xf32, #tpu.memory_space<vmem>>, vector<1x128xf32>
    %47 = vector.broadcast %46 : vector<1x128xf32> to vector<8x128xf32>
    %48 = arith.addf %45, %47 : vector<8x128xf32>
    %cst_47 = arith.constant 0.000000e+00 : f32
    %49 = vector.broadcast %cst_47 : f32 to vector<8x128xf32>
    %50 = arith.maximumf %48, %49 : vector<8x128xf32>
    %c0_48 = arith.constant 0 : index
    %c0_49 = arith.constant 0 : index
    %c0_50 = arith.constant 0 : index
    %51 = vector.load %arg16[%c0_48, %c0_49, %c0_50] : memref<1x8x128xf32, #tpu.memory_space<vmem>>, vector<1x8x128xf32>
    %52 = vector.shape_cast %51 : vector<1x8x128xf32> to vector<8x128xf32>
    %53 = vector.shape_cast %50 : vector<8x128xf32> to vector<1x8x128xf32>
    tpu.vector_store %arg16[%c0_48, %c0_49, %c0_50], %53 {strides = array<i32>} : memref<1x8x128xf32, #tpu.memory_space<vmem>>, vector<1x8x128xf32>,
    %cst_51 = arith.constant 0.000000e+00 : f32
    %54 = vector.broadcast %cst_51 : f32 to vector<10x128xf32>
    %c0_52 = arith.constant 0 : index
    %c0_53 = arith.constant 0 : index
    %c0_54 = arith.constant 0 : index
    %55 = vector.load %arg1[%c0_52, %c0_53, %c0_54] : memref<1x12x96xf32, #tpu.memory_space<vmem>>, vector<1x10x96xf32>
    %56 = vector.shape_cast %55 : vector<1x10x96xf32> to vector<10x96xf32>
    %c0_55 = arith.constant 0 : index
    %c0_56 = arith.constant 0 : index
    %c0_57 = arith.constant 0 : index
    %57 = vector.load %arg5[%c0_55, %c0_56, %c0_57] : memref<3x96x128xf32, #tpu.memory_space<vmem>>, vector<1x96x128xf32>
    %58 = vector.shape_cast %57 : vector<1x96x128xf32> to vector<96x128xf32>
    %cst_58 = arith.constant dense<0.000000e+00> : vector<10x128xf32>
    %59 = tpu.matmul %56, %58, %cst_58 {dimension_numbers = #tpu.dot_dimension_numbers<[1], [0], [0], [1], [0, 0, 1, 1], [], []>} : vector<10x96xf32>, vector<96x128xf32>, vector<10x128xf32> -> vector<10x128xf32>
    %60 = arith.addf %54, %59 : vector<10x128xf32>
    %c0_59 = arith.constant 0 : index
    %c1_60 = arith.constant 1 : index
    %c0_61 = arith.constant 0 : index
    %61 = vector.load %arg1[%c0_59, %c1_60, %c0_61] : memref<1x12x96xf32, #tpu.memory_space<vmem>>, vector<1x10x96xf32>
    %62 = vector.shape_cast %61 : vector<1x10x96xf32> to vector<10x96xf32>
    %c1_62 = arith.constant 1 : index
    %c0_63 = arith.constant 0 : index
    %c0_64 = arith.constant 0 : index
    %63 = vector.load %arg5[%c1_62, %c0_63, %c0_64] : memref<3x96x128xf32, #tpu.memory_space<vmem>>, vector<1x96x128xf32>
    %64 = vector.shape_cast %63 : vector<1x96x128xf32> to vector<96x128xf32>
    %cst_65 = arith.constant dense<0.000000e+00> : vector<10x128xf32>
    %65 = tpu.matmul %62, %64, %cst_65 {dimension_numbers = #tpu.dot_dimension_numbers<[1], [0], [0], [1], [0, 0, 1, 1], [], []>} : vector<10x96xf32>, vector<96x128xf32>, vector<10x128xf32> -> vector<10x128xf32>
    %66 = arith.addf %60, %65 : vector<10x128xf32>
    %c0_66 = arith.constant 0 : index
    %c2_67 = arith.constant 2 : index
    %c0_68 = arith.constant 0 : index
    %67 = vector.load %arg1[%c0_66, %c2_67, %c0_68] : memref<1x12x96xf32, #tpu.memory_space<vmem>>, vector<1x10x96xf32>
    %68 = vector.shape_cast %67 : vector<1x10x96xf32> to vector<10x96xf32>
    %c2_69 = arith.constant 2 : index
    %c0_70 = arith.constant 0 : index
    %c0_71 = arith.constant 0 : index
    %69 = vector.load %arg5[%c2_69, %c0_70, %c0_71] : memref<3x96x128xf32, #tpu.memory_space<vmem>>, vector<1x96x128xf32>
    %70 = vector.shape_cast %69 : vector<1x96x128xf32> to vector<96x128xf32>
    %cst_72 = arith.constant dense<0.000000e+00> : vector<10x128xf32>
    %71 = tpu.matmul %68, %70, %cst_72 {dimension_numbers = #tpu.dot_dimension_numbers<[1], [0], [0], [1], [0, 0, 1, 1], [], []>} : vector<10x96xf32>, vector<96x128xf32>, vector<10x128xf32> -> vector<10x128xf32>
    %72 = arith.addf %66, %71 : vector<10x128xf32>
    %c0_73 = arith.constant 0 : index
    %c0_74 = arith.constant 0 : index
    %73 = vector.load %arg11[%c0_73, %c0_74] : memref<1x128xf32, #tpu.memory_space<vmem>>, vector<1x128xf32>
    %74 = vector.broadcast %73 : vector<1x128xf32> to vector<10x128xf32>
    %75 = arith.addf %72, %74 : vector<10x128xf32>
    %cst_75 = arith.constant 0.000000e+00 : f32
    %76 = vector.broadcast %cst_75 : f32 to vector<10x128xf32>
    %77 = arith.maximumf %75, %76 : vector<10x128xf32>
    %c0_76 = arith.constant 0 : index
    %c0_77 = arith.constant 0 : index
    %c0_78 = arith.constant 0 : index
    %78 = vector.load %arg17[%c0_76, %c0_77, %c0_78] : memref<1x10x128xf32, #tpu.memory_space<vmem>>, vector<1x10x128xf32>
    %79 = vector.shape_cast %78 : vector<1x10x128xf32> to vector<10x128xf32>
    %80 = vector.shape_cast %77 : vector<10x128xf32> to vector<1x10x128xf32>
    tpu.vector_store %arg17[%c0_76, %c0_77, %c0_78], %80 {strides = array<i32>} : memref<1x10x128xf32, #tpu.memory_space<vmem>>, vector<1x10x128xf32>,
    %cst_79 = arith.constant 0.000000e+00 : f32
    %81 = vector.broadcast %cst_79 : f32 to vector<14x128xf32>
    %c0_80 = arith.constant 0 : index
    %c0_81 = arith.constant 0 : index
    %c0_82 = arith.constant 0 : index
    %82 = vector.load %arg2[%c0_80, %c0_81, %c0_82] : memref<1x16x128xf32, #tpu.memory_space<vmem>>, vector<1x14x128xf32>
    %83 = vector.shape_cast %82 : vector<1x14x128xf32> to vector<14x128xf32>
    %c0_83 = arith.constant 0 : index
    %c0_84 = arith.constant 0 : index
    %c0_85 = arith.constant 0 : index
    %84 = vector.load %arg6[%c0_83, %c0_84, %c0_85] : memref<3x128x128xf32, #tpu.memory_space<vmem>>, vector<1x128x128xf32>
    %85 = vector.shape_cast %84 : vector<1x128x128xf32> to vector<128x128xf32>
    %cst_86 = arith.constant dense<0.000000e+00> : vector<14x128xf32>
    %86 = tpu.matmul %83, %85, %cst_86 {dimension_numbers = #tpu.dot_dimension_numbers<[1], [0], [0], [1], [0, 0, 1, 1], [], []>} : vector<14x128xf32>, vector<128x128xf32>, vector<14x128xf32> -> vector<14x128xf32>
    %87 = arith.addf %81, %86 : vector<14x128xf32>
    %c0_87 = arith.constant 0 : index
    %c1_88 = arith.constant 1 : index
    %c0_89 = arith.constant 0 : index
    %88 = vector.load %arg2[%c0_87, %c1_88, %c0_89] : memref<1x16x128xf32, #tpu.memory_space<vmem>>, vector<1x14x128xf32>
    %89 = vector.shape_cast %88 : vector<1x14x128xf32> to vector<14x128xf32>
    %c1_90 = arith.constant 1 : index
    %c0_91 = arith.constant 0 : index
    %c0_92 = arith.constant 0 : index
    %90 = vector.load %arg6[%c1_90, %c0_91, %c0_92] : memref<3x128x128xf32, #tpu.memory_space<vmem>>, vector<1x128x128xf32>
    %91 = vector.shape_cast %90 : vector<1x128x128xf32> to vector<128x128xf32>
    %cst_93 = arith.constant dense<0.000000e+00> : vector<14x128xf32>
    %92 = tpu.matmul %89, %91, %cst_93 {dimension_numbers = #tpu.dot_dimension_numbers<[1], [0], [0], [1], [0, 0, 1, 1], [], []>} : vector<14x128xf32>, vector<128x128xf32>, vector<14x128xf32> -> vector<14x128xf32>
    %93 = arith.addf %87, %92 : vector<14x128xf32>
    %c0_94 = arith.constant 0 : index
    %c2_95 = arith.constant 2 : index
    %c0_96 = arith.constant 0 : index
    %94 = vector.load %arg2[%c0_94, %c2_95, %c0_96] : memref<1x16x128xf32, #tpu.memory_space<vmem>>, vector<1x14x128xf32>
    %95 = vector.shape_cast %94 : vector<1x14x128xf32> to vector<14x128xf32>
    %c2_97 = arith.constant 2 : index
    %c0_98 = arith.constant 0 : index
    %c0_99 = arith.constant 0 : index
    %96 = vector.load %arg6[%c2_97, %c0_98, %c0_99] : memref<3x128x128xf32, #tpu.memory_space<vmem>>, vector<1x128x128xf32>
    %97 = vector.shape_cast %96 : vector<1x128x128xf32> to vector<128x128xf32>
    %cst_100 = arith.constant dense<0.000000e+00> : vector<14x128xf32>
    %98 = tpu.matmul %95, %97, %cst_100 {dimension_numbers = #tpu.dot_dimension_numbers<[1], [0], [0], [1], [0, 0, 1, 1], [], []>} : vector<14x128xf32>, vector<128x128xf32>, vector<14x128xf32> -> vector<14x128xf32>
    %99 = arith.addf %93, %98 : vector<14x128xf32>
    %c0_101 = arith.constant 0 : index
    %c0_102 = arith.constant 0 : index
    %100 = vector.load %arg12[%c0_101, %c0_102] : memref<1x128xf32, #tpu.memory_space<vmem>>, vector<1x128xf32>
    %101 = vector.broadcast %100 : vector<1x128xf32> to vector<14x128xf32>
    %102 = arith.addf %99, %101 : vector<14x128xf32>
    %cst_103 = arith.constant 0.000000e+00 : f32
    %103 = vector.broadcast %cst_103 : f32 to vector<14x128xf32>
    %104 = arith.maximumf %102, %103 : vector<14x128xf32>
    %c0_104 = arith.constant 0 : index
    %c0_105 = arith.constant 0 : index
    %c0_106 = arith.constant 0 : index
    %105 = vector.load %arg18[%c0_104, %c0_105, %c0_106] : memref<1x14x128xf32, #tpu.memory_space<vmem>>, vector<1x14x128xf32>
    %106 = vector.shape_cast %105 : vector<1x14x128xf32> to vector<14x128xf32>
    %107 = vector.shape_cast %104 : vector<14x128xf32> to vector<1x14x128xf32>
    tpu.vector_store %arg18[%c0_104, %c0_105, %c0_106], %107 {strides = array<i32>} : memref<1x14x128xf32, #tpu.memory_space<vmem>>, vector<1x14x128xf32>,
    %cst_107 = arith.constant 0.000000e+00 : f32
    %108 = vector.broadcast %cst_107 : f32 to vector<12x128xf32>
    %c0_108 = arith.constant 0 : index
    %c0_109 = arith.constant 0 : index
    %c0_110 = arith.constant 0 : index
    %109 = vector.load %arg2[%c0_108, %c0_109, %c0_110] : memref<1x16x128xf32, #tpu.memory_space<vmem>>, vector<1x12x128xf32>
    %110 = vector.shape_cast %109 : vector<1x12x128xf32> to vector<12x128xf32>
    %c0_111 = arith.constant 0 : index
    %c0_112 = arith.constant 0 : index
    %c0_113 = arith.constant 0 : index
    %111 = vector.load %arg7[%c0_111, %c0_112, %c0_113] : memref<3x128x128xf32, #tpu.memory_space<vmem>>, vector<1x128x128xf32>
    %112 = vector.shape_cast %111 : vector<1x128x128xf32> to vector<128x128xf32>
    %cst_114 = arith.constant dense<0.000000e+00> : vector<12x128xf32>
    %113 = tpu.matmul %110, %112, %cst_114 {dimension_numbers = #tpu.dot_dimension_numbers<[1], [0], [0], [1], [0, 0, 1, 1], [], []>} : vector<12x128xf32>, vector<128x128xf32>, vector<12x128xf32> -> vector<12x128xf32>
    %114 = arith.addf %108, %113 : vector<12x128xf32>
    %c0_115 = arith.constant 0 : index
    %c2_116 = arith.constant 2 : index
    %c0_117 = arith.constant 0 : index
    %115 = vector.load %arg2[%c0_115, %c2_116, %c0_117] : memref<1x16x128xf32, #tpu.memory_space<vmem>>, vector<1x12x128xf32>
    %116 = vector.shape_cast %115 : vector<1x12x128xf32> to vector<12x128xf32>
    %c1_118 = arith.constant 1 : index
    %c0_119 = arith.constant 0 : index
    %c0_120 = arith.constant 0 : index
    %117 = vector.load %arg7[%c1_118, %c0_119, %c0_120] : memref<3x128x128xf32, #tpu.memory_space<vmem>>, vector<1x128x128xf32>
    %118 = vector.shape_cast %117 : vector<1x128x128xf32> to vector<128x128xf32>
    %cst_121 = arith.constant dense<0.000000e+00> : vector<12x128xf32>
    %119 = tpu.matmul %116, %118, %cst_121 {dimension_numbers = #tpu.dot_dimension_numbers<[1], [0], [0], [1], [0, 0, 1, 1], [], []>} : vector<12x128xf32>, vector<128x128xf32>, vector<12x128xf32> -> vector<12x128xf32>
    %120 = arith.addf %114, %119 : vector<12x128xf32>
    %c0_122 = arith.constant 0 : index
    %c4_123 = arith.constant 4 : index
    %c0_124 = arith.constant 0 : index
    %121 = vector.load %arg2[%c0_122, %c4_123, %c0_124] : memref<1x16x128xf32, #tpu.memory_space<vmem>>, vector<1x12x128xf32>
    %122 = vector.shape_cast %121 : vector<1x12x128xf32> to vector<12x128xf32>
    %c2_125 = arith.constant 2 : index
    %c0_126 = arith.constant 0 : index
    %c0_127 = arith.constant 0 : index
    %123 = vector.load %arg7[%c2_125, %c0_126, %c0_127] : memref<3x128x128xf32, #tpu.memory_space<vmem>>, vector<1x128x128xf32>
    %124 = vector.shape_cast %123 : vector<1x128x128xf32> to vector<128x128xf32>
    %cst_128 = arith.constant dense<0.000000e+00> : vector<12x128xf32>
    %125 = tpu.matmul %122, %124, %cst_128 {dimension_numbers = #tpu.dot_dimension_numbers<[1], [0], [0], [1], [0, 0, 1, 1], [], []>} : vector<12x128xf32>, vector<128x128xf32>, vector<12x128xf32> -> vector<12x128xf32>
    %126 = arith.addf %120, %125 : vector<12x128xf32>
    %c0_129 = arith.constant 0 : index
    %c0_130 = arith.constant 0 : index
    %127 = vector.load %arg13[%c0_129, %c0_130] : memref<1x128xf32, #tpu.memory_space<vmem>>, vector<1x128xf32>
    %128 = vector.broadcast %127 : vector<1x128xf32> to vector<12x128xf32>
    %129 = arith.addf %126, %128 : vector<12x128xf32>
    %cst_131 = arith.constant 0.000000e+00 : f32
    %130 = vector.broadcast %cst_131 : f32 to vector<12x128xf32>
    %131 = arith.maximumf %129, %130 : vector<12x128xf32>
    %c0_132 = arith.constant 0 : index
    %c0_133 = arith.constant 0 : index
    %c0_134 = arith.constant 0 : index
    %132 = vector.load %arg19[%c0_132, %c0_133, %c0_134] : memref<1x12x128xf32, #tpu.memory_space<vmem>>, vector<1x12x128xf32>
    %133 = vector.shape_cast %132 : vector<1x12x128xf32> to vector<12x128xf32>
    %134 = vector.shape_cast %131 : vector<12x128xf32> to vector<1x12x128xf32>
    tpu.vector_store %arg19[%c0_132, %c0_133, %c0_134], %134 {strides = array<i32>} : memref<1x12x128xf32, #tpu.memory_space<vmem>>, vector<1x12x128xf32>,
    %cst_135 = arith.constant 0.000000e+00 : f32
    %135 = vector.broadcast %cst_135 : f32 to vector<14x128xf32>
    %c0_136 = arith.constant 0 : index
    %c0_137 = arith.constant 0 : index
    %c0_138 = arith.constant 0 : index
    %136 = vector.load %arg2[%c0_136, %c0_137, %c0_138] : memref<1x16x128xf32, #tpu.memory_space<vmem>>, vector<1x14x128xf32>
    %137 = vector.shape_cast %136 : vector<1x14x128xf32> to vector<14x128xf32>
    %c0_139 = arith.constant 0 : index
    %c0_140 = arith.constant 0 : index
    %c0_141 = arith.constant 0 : index
    %138 = vector.load %arg8[%c0_139, %c0_140, %c0_141] : memref<3x128x128xf32, #tpu.memory_space<vmem>>, vector<1x128x128xf32>
    %139 = vector.shape_cast %138 : vector<1x128x128xf32> to vector<128x128xf32>
    %cst_142 = arith.constant dense<0.000000e+00> : vector<14x128xf32>
    %140 = tpu.matmul %137, %139, %cst_142 {dimension_numbers = #tpu.dot_dimension_numbers<[1], [0], [0], [1], [0, 0, 1, 1], [], []>} : vector<14x128xf32>, vector<128x128xf32>, vector<14x128xf32> -> vector<14x128xf32>
    %141 = arith.addf %135, %140 : vector<14x128xf32>
    %c0_143 = arith.constant 0 : index
    %c1_144 = arith.constant 1 : index
    %c0_145 = arith.constant 0 : index
    %142 = vector.load %arg2[%c0_143, %c1_144, %c0_145] : memref<1x16x128xf32, #tpu.memory_space<vmem>>, vector<1x14x128xf32>
    %143 = vector.shape_cast %142 : vector<1x14x128xf32> to vector<14x128xf32>
    %c1_146 = arith.constant 1 : index
    %c0_147 = arith.constant 0 : index
    %c0_148 = arith.constant 0 : index
    %144 = vector.load %arg8[%c1_146, %c0_147, %c0_148] : memref<3x128x128xf32, #tpu.memory_space<vmem>>, vector<1x128x128xf32>
    %145 = vector.shape_cast %144 : vector<1x128x128xf32> to vector<128x128xf32>
    %cst_149 = arith.constant dense<0.000000e+00> : vector<14x128xf32>
    %146 = tpu.matmul %143, %145, %cst_149 {dimension_numbers = #tpu.dot_dimension_numbers<[1], [0], [0], [1], [0, 0, 1, 1], [], []>} : vector<14x128xf32>, vector<128x128xf32>, vector<14x128xf32> -> vector<14x128xf32>
    %147 = arith.addf %141, %146 : vector<14x128xf32>
    %c0_150 = arith.constant 0 : index
    %c2_151 = arith.constant 2 : index
    %c0_152 = arith.constant 0 : index
    %148 = vector.load %arg2[%c0_150, %c2_151, %c0_152] : memref<1x16x128xf32, #tpu.memory_space<vmem>>, vector<1x14x128xf32>
    %149 = vector.shape_cast %148 : vector<1x14x128xf32> to vector<14x128xf32>
    %c2_153 = arith.constant 2 : index
    %c0_154 = arith.constant 0 : index
    %c0_155 = arith.constant 0 : index
    %150 = vector.load %arg8[%c2_153, %c0_154, %c0_155] : memref<3x128x128xf32, #tpu.memory_space<vmem>>, vector<1x128x128xf32>
    %151 = vector.shape_cast %150 : vector<1x128x128xf32> to vector<128x128xf32>
    %cst_156 = arith.constant dense<0.000000e+00> : vector<14x128xf32>
    %152 = tpu.matmul %149, %151, %cst_156 {dimension_numbers = #tpu.dot_dimension_numbers<[1], [0], [0], [1], [0, 0, 1, 1], [], []>} : vector<14x128xf32>, vector<128x128xf32>, vector<14x128xf32> -> vector<14x128xf32>
    %153 = arith.addf %147, %152 : vector<14x128xf32>
    %c0_157 = arith.constant 0 : index
    %c0_158 = arith.constant 0 : index
    %154 = vector.load %arg14[%c0_157, %c0_158] : memref<1x128xf32, #tpu.memory_space<vmem>>, vector<1x128xf32>
    %155 = vector.broadcast %154 : vector<1x128xf32> to vector<14x128xf32>
    %156 = arith.addf %153, %155 : vector<14x128xf32>
    %cst_159 = arith.constant 0.000000e+00 : f32
    %157 = vector.broadcast %cst_159 : f32 to vector<14x128xf32>
    %158 = arith.maximumf %156, %157 : vector<14x128xf32>
    %c0_160 = arith.constant 0 : index
    %c0_161 = arith.constant 0 : index
    %c0_162 = arith.constant 0 : index
    %159 = vector.load %arg20[%c0_160, %c0_161, %c0_162] : memref<1x14x128xf32, #tpu.memory_space<vmem>>, vector<1x14x128xf32>
    %160 = vector.shape_cast %159 : vector<1x14x128xf32> to vector<14x128xf32>
    %161 = vector.shape_cast %158 : vector<14x128xf32> to vector<1x14x128xf32>
    tpu.vector_store %arg20[%c0_160, %c0_161, %c0_162], %161 {strides = array<i32>} : memref<1x14x128xf32, #tpu.memory_space<vmem>>, vector<1x14x128xf32>,
    return
  }
  func.func @transform_0(%arg0: i32) -> (i32, i32, i32) {
    %c0_i32 = arith.constant 0 : i32
    %c0_i32_0 = arith.constant 0 : i32
    %c0_i32_1 = arith.constant 0 : i32
    return %arg0, %c0_i32, %c0_i32_0 : i32, i32, i32
  }
  func.func @transform_1(%arg0: i32) -> (i32, i32, i32) {
    %c0_i32 = arith.constant 0 : i32
    %c0_i32_0 = arith.constant 0 : i32
    %c0_i32_1 = arith.constant 0 : i32
    return %arg0, %c0_i32, %c0_i32_0 : i32, i32, i32
  }
  func.func @transform_2(%arg0: i32) -> (i32, i32, i32) {
    %c0_i32 = arith.constant 0 : i32
    %c0_i32_0 = arith.constant 0 : i32
    %c0_i32_1 = arith.constant 0 : i32
    %c0_i32_2 = arith.constant 0 : i32
    return %c0_i32, %c0_i32_0, %c0_i32_1 : i32, i32, i32
  }
  func.func @transform_3(%arg0: i32) -> (i32, i32, i32) {
    %c0_i32 = arith.constant 0 : i32
    %c0_i32_0 = arith.constant 0 : i32
    %c0_i32_1 = arith.constant 0 : i32
    %c0_i32_2 = arith.constant 0 : i32
    return %c0_i32, %c0_i32_0, %c0_i32_1 : i32, i32, i32
  }
  func.func @transform_4(%arg0: i32) -> (i32, i32, i32) {
    %c0_i32 = arith.constant 0 : i32
    %c0_i32_0 = arith.constant 0 : i32
    %c0_i32_1 = arith.constant 0 : i32
    %c0_i32_2 = arith.constant 0 : i32
    return %c0_i32, %c0_i32_0, %c0_i32_1 : i32, i32, i32
  }
  func.func @transform_5(%arg0: i32) -> (i32, i32, i32) {
    %c0_i32 = arith.constant 0 : i32
    %c0_i32_0 = arith.constant 0 : i32
    %c0_i32_1 = arith.constant 0 : i32
    %c0_i32_2 = arith.constant 0 : i32
    return %c0_i32, %c0_i32_0, %c0_i32_1 : i32, i32, i32
  }
  func.func @transform_6(%arg0: i32) -> (i32, i32, i32) {
    %c0_i32 = arith.constant 0 : i32
    %c0_i32_0 = arith.constant 0 : i32
    %c0_i32_1 = arith.constant 0 : i32
    %c0_i32_2 = arith.constant 0 : i32
    return %c0_i32, %c0_i32_0, %c0_i32_1 : i32, i32, i32
  }
  func.func @transform_7(%arg0: i32) -> (i32, i32, i32) {
    %c0_i32 = arith.constant 0 : i32
    %c0_i32_0 = arith.constant 0 : i32
    %c0_i32_1 = arith.constant 0 : i32
    %c0_i32_2 = arith.constant 0 : i32
    return %c0_i32, %c0_i32_0, %c0_i32_1 : i32, i32, i32
  }
  func.func @transform_8(%arg0: i32) -> (i32, i32) {
    %c0_i32 = arith.constant 0 : i32
    %c0_i32_0 = arith.constant 0 : i32
    %c0_i32_1 = arith.constant 0 : i32
    return %c0_i32, %c0_i32_0 : i32, i32
  }
  func.func @transform_9(%arg0: i32) -> (i32, i32) {
    %c0_i32 = arith.constant 0 : i32
    %c0_i32_0 = arith.constant 0 : i32
    %c0_i32_1 = arith.constant 0 : i32
    return %c0_i32, %c0_i32_0 : i32, i32
  }
  func.func @transform_10(%arg0: i32) -> (i32, i32) {
    %c0_i32 = arith.constant 0 : i32
    %c0_i32_0 = arith.constant 0 : i32
    %c0_i32_1 = arith.constant 0 : i32
    return %c0_i32, %c0_i32_0 : i32, i32
  }
  func.func @transform_11(%arg0: i32) -> (i32, i32) {
    %c0_i32 = arith.constant 0 : i32
    %c0_i32_0 = arith.constant 0 : i32
    %c0_i32_1 = arith.constant 0 : i32
    return %c0_i32, %c0_i32_0 : i32, i32
  }
  func.func @transform_12(%arg0: i32) -> (i32, i32) {
    %c0_i32 = arith.constant 0 : i32
    %c0_i32_0 = arith.constant 0 : i32
    %c0_i32_1 = arith.constant 0 : i32
    return %c0_i32, %c0_i32_0 : i32, i32
  }
  func.func @transform_13(%arg0: i32) -> (i32, i32) {
    %c0_i32 = arith.constant 0 : i32
    %c0_i32_0 = arith.constant 0 : i32
    %c0_i32_1 = arith.constant 0 : i32
    return %c0_i32, %c0_i32_0 : i32, i32
  }
  func.func @transform_14(%arg0: i32) -> (i32, i32, i32) {
    %c0_i32 = arith.constant 0 : i32
    %c0_i32_0 = arith.constant 0 : i32
    %c0_i32_1 = arith.constant 0 : i32
    return %arg0, %c0_i32, %c0_i32_0 : i32, i32, i32
  }
  func.func @transform_15(%arg0: i32) -> (i32, i32, i32) {
    %c0_i32 = arith.constant 0 : i32
    %c0_i32_0 = arith.constant 0 : i32
    %c0_i32_1 = arith.constant 0 : i32
    return %arg0, %c0_i32, %c0_i32_0 : i32, i32, i32
  }
  func.func @transform_16(%arg0: i32) -> (i32, i32, i32) {
    %c0_i32 = arith.constant 0 : i32
    %c0_i32_0 = arith.constant 0 : i32
    %c0_i32_1 = arith.constant 0 : i32
    return %arg0, %c0_i32, %c0_i32_0 : i32, i32, i32
  }
  func.func @transform_17(%arg0: i32) -> (i32, i32, i32) {
    %c0_i32 = arith.constant 0 : i32
    %c0_i32_0 = arith.constant 0 : i32
    %c0_i32_1 = arith.constant 0 : i32
    return %arg0, %c0_i32, %c0_i32_0 : i32, i32, i32
  }
  func.func @transform_18(%arg0: i32) -> (i32, i32, i32) {
    %c0_i32 = arith.constant 0 : i32
    %c0_i32_0 = arith.constant 0 : i32
    %c0_i32_1 = arith.constant 0 : i32
    return %arg0, %c0_i32, %c0_i32_0 : i32, i32, i32
  }
  func.func @transform_19(%arg0: i32) -> (i32, i32, i32) {
    %c0_i32 = arith.constant 0 : i32
    %c0_i32_0 = arith.constant 0 : i32
    %c0_i32_1 = arith.constant 0 : i32
    return %arg0, %c0_i32, %c0_i32_0 : i32, i32, i32
  }
}

</mosaic_0001>

<llo_original>
// kernel: tpu_custom_call.1
$region0: #{tpu_custom_call.1}
  #allocation0 [shape = 'u32[]', space=smem, size = 0x4, offset = 0x4, fixed_abs, tag = 'smem constant byte address 0x4 - core index']
  #allocation1 [shape = 'u32[144,128]{1,0:T(1,128)}', space=vmem, size = 0x12000, scoped, tag = 'internal scratch']
  %s0 = inlined_call_operand.vmem [shape: f32[2,12,96], index: 0, kind: input, shape index: {}]
  %s1 = inlined_call_operand.vmem [shape: f32[2,16,128], index: 1, kind: input, shape index: {}]
  %s2 = inlined_call_operand.hbm [shape: f32[3,96,128], index: 2, kind: input, shape index: {}]
  %s3 = inlined_call_operand.hbm [shape: f32[3,96,128], index: 3, kind: input, shape index: {}]
  %s4 = inlined_call_operand.hbm [shape: f32[3,96,128], index: 4, kind: input, shape index: {}]
  %s5 = inlined_call_operand.hbm [shape: f32[3,128,128], index: 5, kind: input, shape index: {}]
  %s6 = inlined_call_operand.hbm [shape: f32[3,128,128], index: 6, kind: input, shape index: {}]
  %s7 = inlined_call_operand.hbm [shape: f32[3,128,128], index: 7, kind: input, shape index: {}]
  %s8 = inlined_call_operand.vmem [shape: f32[1,128], index: 8, kind: input, shape index: {}]
  %s9 = inlined_call_operand.vmem [shape: f32[1,128], index: 9, kind: input, shape index: {}]
  %s10 = inlined_call_operand.vmem [shape: f32[1,128], index: 10, kind: input, shape index: {}]
  %s11 = inlined_call_operand.vmem [shape: f32[1,128], index: 11, kind: input, shape index: {}]
  %s12 = inlined_call_operand.vmem [shape: f32[1,128], index: 12, kind: input, shape index: {}]
  %s13 = inlined_call_operand.vmem [shape: f32[1,128], index: 13, kind: input, shape index: {}]
  %s14 = inlined_call_operand.vmem [shape: f32[2,10,128], index: 14, kind: output, shape index: {0}]
  %s15 = inlined_call_operand.hbm [shape: f32[2,8,128], index: 15, kind: output, shape index: {1}]
  %s16 = inlined_call_operand.vmem [shape: f32[2,10,128], index: 16, kind: output, shape index: {2}]
  %s17 = inlined_call_operand.vmem [shape: f32[2,14,128], index: 17, kind: output, shape index: {3}]
  %s18 = inlined_call_operand.vmem [shape: f32[2,12,128], index: 18, kind: output, shape index: {4}]
  %s19 = inlined_call_operand.vmem [shape: f32[2,14,128], index: 19, kind: output, shape index: {5}]
  %20 = xla_tuple %s14, %s15, %s16, %s17, %s18, %s19
  %s21 = sld [smem:[#allocation0]]
  $region153: #{tpu_custom_call.1} parent=0
    _
  %s23 = ssub.s32 1, %s21
  %s24 = scalar_select 0, %s23, %s21
  $region1: #{tpu_custom_call.1} parent=0
    #allocation2 [shape = 'u8[147456]{0}', space=vmem, size = 0x24000, scoped, tag = 'input window, operand 2, single buffered']
    #allocation3 [shape = 's32[2]{0}', space=sflag, size = 0x8, scoped, tag = 'scoped memory for tpu_custom_call.1']
    #allocation4 [shape = 's32[2]{0}', space=sflag, size = 0x8, scoped, tag = 'scoped memory for tpu_custom_call.1']
    #allocation5 [shape = 'u8[147456]{0}', space=vmem, size = 0x24000, scoped, tag = 'input window, operand 3, single buffered']
    #allocation6 [shape = 's32[1]{0}', space=sflag, size = 0x4, scoped, tag = 'scoped memory for tpu_custom_call.1']
    #allocation7 [shape = 'u8[147456]{0}', space=vmem, size = 0x24000, scoped, tag = 'input window, operand 4, single buffered']
    #allocation8 [shape = 'u8[196608]{0}', space=vmem, size = 0x30000, scoped, tag = 'input window, operand 5, single buffered']
    #allocation9 [shape = 's32[1]{0}', space=sflag, size = 0x4, scoped, tag = 'scoped memory for tpu_custom_call.1']
    #allocation10 [shape = 'u8[196608]{0}', space=vmem, size = 0x30000, scoped, tag = 'input window, operand 6, single buffered']
    #allocation11 [shape = 'u8[196608]{0}', space=vmem, size = 0x30000, scoped, tag = 'input window, operand 7, single buffered']
    #allocation12 [shape = 's32[1]{0}', space=sflag, size = 0x4, scoped, tag = 'scoped memory for tpu_custom_call.1']
    #allocation13 [shape = 'u8[8192]{0}', space=vmem, size = 0x2000, scoped, tag = 'output window, operand 1']
    %25 = vsyncpa [#allocation3], 0
    %26 = vsyncpa [#allocation6], 0
    %27 = vsyncpa [#allocation9], 0
    %28 = vsyncpa [#allocation12], 0
    %29 = vsyncpa [#allocation4], 0
    %s30 = scalar_lea.sflag [#allocation4], 1
    %31 = vsyncpa %s30, 0
    loop: start=0, step=1, limit=4
    $region2: #{tpu_custom_call.1} parent=1 // loop_pre_header
      _
    $region3: #{tpu_custom_call.1} parent=1 // loop_header
      %s33 = sphi 0, %s37
      %p34 = scmp.ge.s32.totalorder %s33, 4
      %s43 = sphi 0, %s45
      %s46 = sphi 0, %s43
      %s47 = sphi 0, %s46
      %s63 = sphi 0, %s47
      %s69 = sphi 0, %s71
      %s72 = sphi 0, %s69
      %s73 = sphi 0, %s72
      %s89 = sphi 0, %s73
      %s93 = sphi 0, %s93
      %s95 = sphi 0, %s93
      %s96 = sphi 0, %s95
      %s110 = sphi 0, %s96
      %s114 = sphi 0, %s114
      %s116 = sphi 0, %s114
      %s117 = sphi 0, %s116
      %s131 = sphi 0, %s117
      %s135 = sphi 0, %s135
      %s137 = sphi 0, %s135
      %s138 = sphi 0, %s137
      %s152 = sphi 0, %s138
      %s156 = sphi 0, %s156
      %s158 = sphi 0, %s156
      %s159 = sphi 0, %s158
      %s173 = sphi 0, %s159
      %s177 = sphi 0, %s177
      %s179 = sphi 0, %s177
      %s180 = sphi 0, %s179
      %s194 = sphi 0, %s180
      %s198 = sphi 0, %s198
      %s200 = sphi 0, %s198
      %s201 = sphi 0, %s200
      %s215 = sphi 0, %s201
      %s219 = sphi 0, %s219
      %s221 = sphi 0, %s219
      %s222 = sphi 0, %s221
      %s236 = sphi 0, %s222
      %s240 = sphi 0, %s240
      %s242 = sphi 0, %s240
      %s243 = sphi 0, %s242
      %s257 = sphi 0, %s243
      %s261 = sphi 0, %s261
      %s263 = sphi 0, %s261
      %s264 = sphi 0, %s263
      %s278 = sphi 0, %s264
      %s282 = sphi 0, %s282
      %s284 = sphi 0, %s282
      %s285 = sphi 0, %s284
      %s299 = sphi 0, %s285
      %s303 = sphi 0, %s303
      %s305 = sphi 0, %s303
      %s306 = sphi 0, %s305
      %s320 = sphi 0, %s306
      %s324 = sphi 0, %s324
      %s326 = sphi 0, %s324
      %s327 = sphi 0, %s326
      %s341 = sphi 0, %s327
      %s347 = sphi 0, %s349
      %s350 = sphi 0, %s347
      %s351 = sphi 0, %s350
      %s367 = sphi 0, %s351
      %s373 = sphi 0, %s375
      %s376 = sphi 0, %s373
      %s377 = sphi 0, %s376
      %s393 = sphi 0, %s377
      %s399 = sphi 0, %s401
      %s402 = sphi 0, %s399
      %s403 = sphi 0, %s402
      %s419 = sphi 0, %s403
      %s425 = sphi 0, %s427
      %s428 = sphi 0, %s425
      %s429 = sphi 0, %s428
      %s445 = sphi 0, %s429
      %s451 = sphi 0, %s453
      %s454 = sphi 0, %s451
      %s455 = sphi 0, %s454
      %s471 = sphi 0, %s455
      %s477 = sphi 0, %s479
      %s480 = sphi 0, %s477
      %s481 = sphi 0, %s480
      %s497 = sphi 0, %s481
    $region4: #{tpu_custom_call.1} parent=1 // loop_header_branch
      %36 = sbr.rel (%p34) target = $region8
    $region5: #{tpu_custom_call.1} parent=1 // loop_body
      %s38 = ssub.s32 %s33, 1
      %s39 = ssub.s32 %s33, 2
      %s40 = sadd.s32 %s33, 1
      %s41 = ssub.s32 %s33, %s40
      %p42 = scmp.eq.s32.totalorder %s41, 0
      %s44 = sadd.s32 %s43, 1
      %s45 = scalar_select %p42, %s43, %s44
      %p48 = pneg %p42
      %p49 = scmp.eq.s32.totalorder %s33, 1
      %p50 = por %p48, %p49
      %p51 = scmp.ne.s32.totalorder %s43, %s46
      %p52 = scmp.eq.s32.totalorder %s33, 0
      %p53 = por %p51, %p52
      %p54 = scmp.ne.s32.totalorder %s43, %s46
      %p55 = scmp.eq.s32.totalorder %s38, 1
      %p56 = por %p54, %p55
      %p57 = scmp.ne.s32.totalorder %s46, %s47
      %p58 = scmp.eq.s32.totalorder %s38, 0
      %p59 = por %p57, %p58
      %p60 = scmp.ne.s32.totalorder %s46, %s47
      %p61 = scmp.eq.s32.totalorder %s39, 1
      %p62 = por %p60, %p61
      %p64 = scmp.ne.s32.totalorder %s47, %s63
      %p65 = scmp.eq.s32.totalorder %s39, 0
      %p66 = por %p64, %p65
      %s67 = ssub.s32 %s33, %s40
      %p68 = scmp.eq.s32.totalorder %s67, 0
      %s70 = sadd.s32 %s69, 1
      %s71 = scalar_select %p68, %s69, %s70
      %p74 = pneg %p68
      %p75 = scmp.eq.s32.totalorder %s33, 1
      %p76 = por %p74, %p75
      %p77 = scmp.ne.s32.totalorder %s69, %s72
      %p78 = scmp.eq.s32.totalorder %s33, 0
      %p79 = por %p77, %p78
      %p80 = scmp.ne.s32.totalorder %s69, %s72
      %p81 = scmp.eq.s32.totalorder %s38, 1
      %p82 = por %p80, %p81
      %p83 = scmp.ne.s32.totalorder %s72, %s73
      %p84 = scmp.eq.s32.totalorder %s38, 0
      %p85 = por %p83, %p84
      %p86 = scmp.ne.s32.totalorder %s72, %s73
      %p87 = scmp.eq.s32.totalorder %s39, 1
      %p88 = por %p86, %p87
      %p90 = scmp.ne.s32.totalorder %s73, %s89
      %p91 = scmp.eq.s32.totalorder %s39, 0
      %p92 = por %p90, %p91
      %s94 = sadd.s32 %s93, 1
      %p97 = scmp.eq.s32.totalorder %s33, 1
      %p98 = scmp.ne.s32.totalorder %s93, %s95
      %p99 = scmp.eq.s32.totalorder %s33, 0
      %p100 = por %p98, %p99
      %p101 = scmp.ne.s32.totalorder %s93, %s95
      %p102 = scmp.eq.s32.totalorder %s38, 1
      %p103 = por %p101, %p102
      %p104 = scmp.ne.s32.totalorder %s95, %s96
      %p105 = scmp.eq.s32.totalorder %s38, 0
      %p106 = por %p104, %p105
      %p107 = scmp.ne.s32.totalorder %s95, %s96
      %p108 = scmp.eq.s32.totalorder %s39, 1
      %p109 = por %p107, %p108
      %p111 = scmp.ne.s32.totalorder %s96, %s110
      %p112 = scmp.eq.s32.totalorder %s39, 0
      %p113 = por %p111, %p112
      %s115 = sadd.s32 %s114, 1
      %p118 = scmp.eq.s32.totalorder %s33, 1
      %p119 = scmp.ne.s32.totalorder %s114, %s116
      %p120 = scmp.eq.s32.totalorder %s33, 0
      %p121 = por %p119, %p120
      %p122 = scmp.ne.s32.totalorder %s114, %s116
      %p123 = scmp.eq.s32.totalorder %s38, 1
      %p124 = por %p122, %p123
      %p125 = scmp.ne.s32.totalorder %s116, %s117
      %p126 = scmp.eq.s32.totalorder %s38, 0
      %p127 = por %p125, %p126
      %p128 = scmp.ne.s32.totalorder %s116, %s117
      %p129 = scmp.eq.s32.totalorder %s39, 1
      %p130 = por %p128, %p129
      %p132 = scmp.ne.s32.totalorder %s117, %s131
      %p133 = scmp.eq.s32.totalorder %s39, 0
      %p134 = por %p132, %p133
      %s136 = sadd.s32 %s135, 1
      %p139 = scmp.eq.s32.totalorder %s33, 1
      %p140 = scmp.ne.s32.totalorder %s135, %s137
      %p141 = scmp.eq.s32.totalorder %s33, 0
      %p142 = por %p140, %p141
      %p143 = scmp.ne.s32.totalorder %s135, %s137
      %p144 = scmp.eq.s32.totalorder %s38, 1
      %p145 = por %p143, %p144
      %p146 = scmp.ne.s32.totalorder %s137, %s138
      %p147 = scmp.eq.s32.totalorder %s38, 0
      %p148 = por %p146, %p147
      %p149 = scmp.ne.s32.totalorder %s137, %s138
      %p150 = scmp.eq.s32.totalorder %s39, 1
      %p151 = por %p149, %p150
      %p153 = scmp.ne.s32.totalorder %s138, %s152
      %p154 = scmp.eq.s32.totalorder %s39, 0
      %p155 = por %p153, %p154
      %s157 = sadd.s32 %s156, 1
      %p160 = scmp.eq.s32.totalorder %s33, 1
      %p161 = scmp.ne.s32.totalorder %s156, %s158
      %p162 = scmp.eq.s32.totalorder %s33, 0
      %p163 = por %p161, %p162
      %p164 = scmp.ne.s32.totalorder %s156, %s158
      %p165 = scmp.eq.s32.totalorder %s38, 1
      %p166 = por %p164, %p165
      %p167 = scmp.ne.s32.totalorder %s158, %s159
      %p168 = scmp.eq.s32.totalorder %s38, 0
      %p169 = por %p167, %p168
      %p170 = scmp.ne.s32.totalorder %s158, %s159
      %p171 = scmp.eq.s32.totalorder %s39, 1
      %p172 = por %p170, %p171
      %p174 = scmp.ne.s32.totalorder %s159, %s173
      %p175 = scmp.eq.s32.totalorder %s39, 0
      %p176 = por %p174, %p175
      %s178 = sadd.s32 %s177, 1
      %p181 = scmp.eq.s32.totalorder %s33, 1
      %p182 = scmp.ne.s32.totalorder %s177, %s179
      %p183 = scmp.eq.s32.totalorder %s33, 0
      %p184 = por %p182, %p183
      %p185 = scmp.ne.s32.totalorder %s177, %s179
      %p186 = scmp.eq.s32.totalorder %s38, 1
      %p187 = por %p185, %p186
      %p188 = scmp.ne.s32.totalorder %s179, %s180
      %p189 = scmp.eq.s32.totalorder %s38, 0
      %p190 = por %p188, %p189
      %p191 = scmp.ne.s32.totalorder %s179, %s180
      %p192 = scmp.eq.s32.totalorder %s39, 1
      %p193 = por %p191, %p192
      %p195 = scmp.ne.s32.totalorder %s180, %s194
      %p196 = scmp.eq.s32.totalorder %s39, 0
      %p197 = por %p195, %p196
      %s199 = sadd.s32 %s198, 1
      %p202 = scmp.eq.s32.totalorder %s33, 1
      %p203 = scmp.ne.s32.totalorder %s198, %s200
      %p204 = scmp.eq.s32.totalorder %s33, 0
      %p205 = por %p203, %p204
      %p206 = scmp.ne.s32.totalorder %s198, %s200
      %p207 = scmp.eq.s32.totalorder %s38, 1
      %p208 = por %p206, %p207
      %p209 = scmp.ne.s32.totalorder %s200, %s201
      %p210 = scmp.eq.s32.totalorder %s38, 0
      %p211 = por %p209, %p210
      %p212 = scmp.ne.s32.totalorder %s200, %s201
      %p213 = scmp.eq.s32.totalorder %s39, 1
      %p214 = por %p212, %p213
      %p216 = scmp.ne.s32.totalorder %s201, %s215
      %p217 = scmp.eq.s32.totalorder %s39, 0
      %p218 = por %p216, %p217
      %s220 = sadd.s32 %s219, 1
      %p223 = scmp.eq.s32.totalorder %s33, 1
      %p224 = scmp.ne.s32.totalorder %s219, %s221
      %p225 = scmp.eq.s32.totalorder %s33, 0
      %p226 = por %p224, %p225
      %p227 = scmp.ne.s32.totalorder %s219, %s221
      %p228 = scmp.eq.s32.totalorder %s38, 1
      %p229 = por %p227, %p228
      %p230 = scmp.ne.s32.totalorder %s221, %s222
      %p231 = scmp.eq.s32.totalorder %s38, 0
      %p232 = por %p230, %p231
      %p233 = scmp.ne.s32.totalorder %s221, %s222
      %p234 = scmp.eq.s32.totalorder %s39, 1
      %p235 = por %p233, %p234
      %p237 = scmp.ne.s32.totalorder %s222, %s236
      %p238 = scmp.eq.s32.totalorder %s39, 0
      %p239 = por %p237, %p238
      %s241 = sadd.s32 %s240, 1
      %p244 = scmp.eq.s32.totalorder %s33, 1
      %p245 = scmp.ne.s32.totalorder %s240, %s242
      %p246 = scmp.eq.s32.totalorder %s33, 0
      %p247 = por %p245, %p246
      %p248 = scmp.ne.s32.totalorder %s240, %s242
      %p249 = scmp.eq.s32.totalorder %s38, 1
      %p250 = por %p248, %p249
      %p251 = scmp.ne.s32.totalorder %s242, %s243
      %p252 = scmp.eq.s32.totalorder %s38, 0
      %p253 = por %p251, %p252
      %p254 = scmp.ne.s32.totalorder %s242, %s243
      %p255 = scmp.eq.s32.totalorder %s39, 1
      %p256 = por %p254, %p255
      %p258 = scmp.ne.s32.totalorder %s243, %s257
      %p259 = scmp.eq.s32.totalorder %s39, 0
      %p260 = por %p258, %p259
      %s262 = sadd.s32 %s261, 1
      %p265 = scmp.eq.s32.totalorder %s33, 1
      %p266 = scmp.ne.s32.totalorder %s261, %s263
      %p267 = scmp.eq.s32.totalorder %s33, 0
      %p268 = por %p266, %p267
      %p269 = scmp.ne.s32.totalorder %s261, %s263
      %p270 = scmp.eq.s32.totalorder %s38, 1
      %p271 = por %p269, %p270
      %p272 = scmp.ne.s32.totalorder %s263, %s264
      %p273 = scmp.eq.s32.totalorder %s38, 0
      %p274 = por %p272, %p273
      %p275 = scmp.ne.s32.totalorder %s263, %s264
      %p276 = scmp.eq.s32.totalorder %s39, 1
      %p277 = por %p275, %p276
      %p279 = scmp.ne.s32.totalorder %s264, %s278
      %p280 = scmp.eq.s32.totalorder %s39, 0
      %p281 = por %p279, %p280
      %s283 = sadd.s32 %s282, 1
      %p286 = scmp.eq.s32.totalorder %s33, 1
      %p287 = scmp.ne.s32.totalorder %s282, %s284
      %p288 = scmp.eq.s32.totalorder %s33, 0
      %p289 = por %p287, %p288
      %p290 = scmp.ne.s32.totalorder %s282, %s284
      %p291 = scmp.eq.s32.totalorder %s38, 1
      %p292 = por %p290, %p291
      %p293 = scmp.ne.s32.totalorder %s284, %s285
      %p294 = scmp.eq.s32.totalorder %s38, 0
      %p295 = por %p293, %p294
      %p296 = scmp.ne.s32.totalorder %s284, %s285
      %p297 = scmp.eq.s32.totalorder %s39, 1
      %p298 = por %p296, %p297
      %p300 = scmp.ne.s32.totalorder %s285, %s299
      %p301 = scmp.eq.s32.totalorder %s39, 0
      %p302 = por %p300, %p301
      %s304 = sadd.s32 %s303, 1
      %p307 = scmp.eq.s32.totalorder %s33, 1
      %p308 = scmp.ne.s32.totalorder %s303, %s305
      %p309 = scmp.eq.s32.totalorder %s33, 0
      %p310 = por %p308, %p309
      %p311 = scmp.ne.s32.totalorder %s303, %s305
      %p312 = scmp.eq.s32.totalorder %s38, 1
      %p313 = por %p311, %p312
      %p314 = scmp.ne.s32.totalorder %s305, %s306
      %p315 = scmp.eq.s32.totalorder %s38, 0
      %p316 = por %p314, %p315
      %p317 = scmp.ne.s32.totalorder %s305, %s306
      %p318 = scmp.eq.s32.totalorder %s39, 1
      %p319 = por %p317, %p318
      %p321 = scmp.ne.s32.totalorder %s306, %s320
      %p322 = scmp.eq.s32.totalorder %s39, 0
      %p323 = por %p321, %p322
      %s325 = sadd.s32 %s324, 1
      %p328 = scmp.eq.s32.totalorder %s33, 1
      %p329 = scmp.ne.s32.totalorder %s324, %s326
      %p330 = scmp.eq.s32.totalorder %s33, 0
      %p331 = por %p329, %p330
      %p332 = scmp.ne.s32.totalorder %s324, %s326
      %p333 = scmp.eq.s32.totalorder %s38, 1
      %p334 = por %p332, %p333
      %p335 = scmp.ne.s32.totalorder %s326, %s327
      %p336 = scmp.eq.s32.totalorder %s38, 0
      %p337 = por %p335, %p336
      %p338 = scmp.ne.s32.totalorder %s326, %s327
      %p339 = scmp.eq.s32.totalorder %s39, 1
      %p340 = por %p338, %p339
      %p342 = scmp.ne.s32.totalorder %s327, %s341
      %p343 = scmp.eq.s32.totalorder %s39, 0
      %p344 = por %p342, %p343
      %s345 = ssub.s32 %s33, %s40
      %p346 = scmp.eq.s32.totalorder %s345, 0
      %s348 = sadd.s32 %s347, 1
      %s349 = scalar_select %p346, %s347, %s348
      %p352 = pneg %p346
      %p353 = scmp.eq.s32.totalorder %s33, 1
      %p354 = por %p352, %p353
      %p355 = scmp.ne.s32.totalorder %s347, %s350
      %p356 = scmp.eq.s32.totalorder %s33, 0
      %p357 = por %p355, %p356
      %p358 = scmp.ne.s32.totalorder %s347, %s350
      %p359 = scmp.eq.s32.totalorder %s38, 1
      %p360 = por %p358, %p359
      %p361 = scmp.ne.s32.totalorder %s350, %s351
      %p362 = scmp.eq.s32.totalorder %s38, 0
      %p363 = por %p361, %p362
      %p364 = scmp.ne.s32.totalorder %s350, %s351
      %p365 = scmp.eq.s32.totalorder %s39, 1
      %p366 = por %p364, %p365
      %p368 = scmp.ne.s32.totalorder %s351, %s367
      %p369 = scmp.eq.s32.totalorder %s39, 0
      %p370 = por %p368, %p369
      %s371 = ssub.s32 %s33, %s40
      %p372 = scmp.eq.s32.totalorder %s371, 0
      %s374 = sadd.s32 %s373, 1
      %s375 = scalar_select %p372, %s373, %s374
      %p378 = pneg %p372
      %p379 = scmp.eq.s32.totalorder %s33, 1
      %p380 = por %p378, %p379
      %p381 = scmp.ne.s32.totalorder %s373, %s376
      %p382 = scmp.eq.s32.totalorder %s33, 0
      %p383 = por %p381, %p382
      %p384 = scmp.ne.s32.totalorder %s373, %s376
      %p385 = scmp.eq.s32.totalorder %s38, 1
      %p386 = por %p384, %p385
      %p387 = scmp.ne.s32.totalorder %s376, %s377
      %p388 = scmp.eq.s32.totalorder %s38, 0
      %p389 = por %p387, %p388
      %p390 = scmp.ne.s32.totalorder %s376, %s377
      %p391 = scmp.eq.s32.totalorder %s39, 1
      %p392 = por %p390, %p391
      %p394 = scmp.ne.s32.totalorder %s377, %s393
      %p395 = scmp.eq.s32.totalorder %s39, 0
      %p396 = por %p394, %p395
      %s397 = ssub.s32 %s33, %s40
      %p398 = scmp.eq.s32.totalorder %s397, 0
      %s400 = sadd.s32 %s399, 1
      %s401 = scalar_select %p398, %s399, %s400
      %p404 = pneg %p398
      %p405 = scmp.eq.s32.totalorder %s33, 1
      %p406 = por %p404, %p405
      %p407 = scmp.ne.s32.totalorder %s399, %s402
      %p408 = scmp.eq.s32.totalorder %s33, 0
      %p409 = por %p407, %p408
      %p410 = scmp.ne.s32.totalorder %s399, %s402
      %p411 = scmp.eq.s32.totalorder %s38, 1
      %p412 = por %p410, %p411
      %p413 = scmp.ne.s32.totalorder %s402, %s403
      %p414 = scmp.eq.s32.totalorder %s38, 0
      %p415 = por %p413, %p414
      %p416 = scmp.ne.s32.totalorder %s402, %s403
      %p417 = scmp.eq.s32.totalorder %s39, 1
      %p418 = por %p416, %p417
      %p420 = scmp.ne.s32.totalorder %s403, %s419
      %p421 = scmp.eq.s32.totalorder %s39, 0
      %p422 = por %p420, %p421
      %s423 = ssub.s32 %s33, %s40
      %p424 = scmp.eq.s32.totalorder %s423, 0
      %s426 = sadd.s32 %s425, 1
      %s427 = scalar_select %p424, %s425, %s426
      %p430 = pneg %p424
      %p431 = scmp.eq.s32.totalorder %s33, 1
      %p432 = por %p430, %p431
      %p433 = scmp.ne.s32.totalorder %s425, %s428
      %p434 = scmp.eq.s32.totalorder %s33, 0
      %p435 = por %p433, %p434
      %p436 = scmp.ne.s32.totalorder %s425, %s428
      %p437 = scmp.eq.s32.totalorder %s38, 1
      %p438 = por %p436, %p437
      %p439 = scmp.ne.s32.totalorder %s428, %s429
      %p440 = scmp.eq.s32.totalorder %s38, 0
      %p441 = por %p439, %p440
      %p442 = scmp.ne.s32.totalorder %s428, %s429
      %p443 = scmp.eq.s32.totalorder %s39, 1
      %p444 = por %p442, %p443
      %p446 = scmp.ne.s32.totalorder %s429, %s445
      %p447 = scmp.eq.s32.totalorder %s39, 0
      %p448 = por %p446, %p447
      %s449 = ssub.s32 %s33, %s40
      %p450 = scmp.eq.s32.totalorder %s449, 0
      %s452 = sadd.s32 %s451, 1
      %s453 = scalar_select %p450, %s451, %s452
      %p456 = pneg %p450
      %p457 = scmp.eq.s32.totalorder %s33, 1
      %p458 = por %p456, %p457
      %p459 = scmp.ne.s32.totalorder %s451, %s454
      %p460 = scmp.eq.s32.totalorder %s33, 0
      %p461 = por %p459, %p460
      %p462 = scmp.ne.s32.totalorder %s451, %s454
      %p463 = scmp.eq.s32.totalorder %s38, 1
      %p464 = por %p462, %p463
      %p465 = scmp.ne.s32.totalorder %s454, %s455
      %p466 = scmp.eq.s32.totalorder %s38, 0
      %p467 = por %p465, %p466
      %p468 = scmp.ne.s32.totalorder %s454, %s455
      %p469 = scmp.eq.s32.totalorder %s39, 1
      %p470 = por %p468, %p469
      %p472 = scmp.ne.s32.totalorder %s455, %s471
      %p473 = scmp.eq.s32.totalorder %s39, 0
      %p474 = por %p472, %p473
      %s475 = ssub.s32 %s33, %s40
      %p476 = scmp.eq.s32.totalorder %s475, 0
      %s478 = sadd.s32 %s477, 1
      %s479 = scalar_select %p476, %s477, %s478
      %p482 = pneg %p476
      %p483 = scmp.eq.s32.totalorder %s33, 1
      %p484 = por %p482, %p483
      %p485 = scmp.ne.s32.totalorder %s477, %s480
      %p486 = scmp.eq.s32.totalorder %s33, 0
      %p487 = por %p485, %p486
      %p488 = scmp.ne.s32.totalorder %s477, %s480
      %p489 = scmp.eq.s32.totalorder %s38, 1
      %p490 = por %p488, %p489
      %p491 = scmp.ne.s32.totalorder %s480, %s481
      %p492 = scmp.eq.s32.totalorder %s38, 0
      %p493 = por %p491, %p492
      %p494 = scmp.ne.s32.totalorder %s480, %s481
      %p495 = scmp.eq.s32.totalorder %s39, 1
      %p496 = por %p494, %p495
      %p498 = scmp.ne.s32.totalorder %s481, %s497
      %p499 = scmp.eq.s32.totalorder %s39, 0
      %p500 = por %p498, %p499
      %p501 = scmp.le.s32.totalorder 1, %s33
      %p502 = scmp.lt.s32.totalorder %s33, 3
      %p503 = pnand %p501, %p502
      %p504 = pneg %p503
      // Predicated region
      $region9: #{tpu_custom_call.1} parent=5 // pred_check
        _
      $region10: #{tpu_custom_call.1} parent=5 // pred_check_branch
        %506 = sbr.rel (%p503) target = $region12
      $region11: #{tpu_custom_call.1} parent=5 // pred_region
        %s507 = ssub.s32 %s33, 1
        // Predicated region
        $region13: #{tpu_custom_call.1} parent=11 // pred_check
          %p508 = pneg %p106
        $region14: #{tpu_custom_call.1} parent=11 // pred_check_branch
          %510 = sbr.rel (%p508) target = $region16
        $region15: #{tpu_custom_call.1} parent=11 // pred_region
          %s512 = ssub.s32 4608, 4608
          %513 = vsyncadd [#allocation3], %s512
          %s514 = sshll.u32 [#allocation2], 4
          %s515 = int_to_ptr.vmem [resolvable:$true] %s514
          %520 = dma.hbm_to_vmem [thread:$0]  %s2, 4608, %s515, [#allocation3], 128, 128, 8
        $region16: #{tpu_custom_call.1} parent=11 // pred_fallthru
          _
        // Predicated region
        $region17: #{tpu_custom_call.1} parent=11 // pred_check
          %p521 = pneg %p127
        $region18: #{tpu_custom_call.1} parent=11 // pred_check_branch
          %523 = sbr.rel (%p521) target = $region20
        $region19: #{tpu_custom_call.1} parent=11 // pred_region
          %s525 = ssub.s32 4608, 4608
          %526 = vsyncadd [#allocation6], %s525
          %s527 = sshll.u32 [#allocation5], 4
          %s528 = int_to_ptr.vmem [resolvable:$true] %s527
          %533 = dma.hbm_to_vmem [thread:$0]  %s3, 4608, %s528, [#allocation6], 128, 128, 8
        $region20: #{tpu_custom_call.1} parent=11 // pred_fallthru
          _
        // Predicated region
        $region21: #{tpu_custom_call.1} parent=11 // pred_check
          %p534 = pneg %p148
        $region22: #{tpu_custom_call.1} parent=11 // pred_check_branch
          %536 = sbr.rel (%p534) target = $region24
        $region23: #{tpu_custom_call.1} parent=11 // pred_region
          %s538 = ssub.s32 4608, 4608
          %539 = vsyncadd [#allocation6], %s538
          %s540 = sshll.u32 [#allocation7], 4
          %s541 = int_to_ptr.vmem [resolvable:$true] %s540
          %546 = dma.hbm_to_vmem [thread:$0]  %s4, 4608, %s541, [#allocation6], 128, 128, 8
        $region24: #{tpu_custom_call.1} parent=11 // pred_fallthru
          _
        // Predicated region
        $region25: #{tpu_custom_call.1} parent=11 // pred_check
          %p547 = pneg %p169
        $region26: #{tpu_custom_call.1} parent=11 // pred_check_branch
          %549 = sbr.rel (%p547) target = $region28
        $region27: #{tpu_custom_call.1} parent=11 // pred_region
          %s551 = ssub.s32 6144, 6144
          %552 = vsyncadd [#allocation9], %s551
          %s553 = sshll.u32 [#allocation8], 4
          %s554 = int_to_ptr.vmem [resolvable:$true] %s553
          %559 = dma.hbm_to_vmem [thread:$0]  %s5, 6144, %s554, [#allocation9], 128, 128, 8
        $region28: #{tpu_custom_call.1} parent=11 // pred_fallthru
          _
        // Predicated region
        $region29: #{tpu_custom_call.1} parent=11 // pred_check
          %p560 = pneg %p190
        $region30: #{tpu_custom_call.1} parent=11 // pred_check_branch
          %562 = sbr.rel (%p560) target = $region32
        $region31: #{tpu_custom_call.1} parent=11 // pred_region
          %s564 = ssub.s32 6144, 6144
          %565 = vsyncadd [#allocation9], %s564
          %s566 = sshll.u32 [#allocation10], 4
          %s567 = int_to_ptr.vmem [resolvable:$true] %s566
          %572 = dma.hbm_to_vmem [thread:$0]  %s6, 6144, %s567, [#allocation9], 128, 128, 8
        $region32: #{tpu_custom_call.1} parent=11 // pred_fallthru
          _
        // Predicated region
        $region33: #{tpu_custom_call.1} parent=11 // pred_check
          %p573 = pneg %p211
        $region34: #{tpu_custom_call.1} parent=11 // pred_check_branch
          %575 = sbr.rel (%p573) target = $region36
        $region35: #{tpu_custom_call.1} parent=11 // pred_region
          %s577 = ssub.s32 6144, 6144
          %578 = vsyncadd [#allocation12], %s577
          %s579 = sshll.u32 [#allocation11], 4
          %s580 = int_to_ptr.vmem [resolvable:$true] %s579
          %585 = dma.hbm_to_vmem [thread:$0]  %s7, 6144, %s580, [#allocation12], 128, 128, 8
        $region36: #{tpu_custom_call.1} parent=11 // pred_fallthru
          _
        // Predicated region
        $region37: #{tpu_custom_call.1} parent=11 // pred_check
          %p586 = pneg %p232
        $region38: #{tpu_custom_call.1} parent=11 // pred_check_branch
          %588 = sbr.rel (%p586) target = $region40
        $region39: #{tpu_custom_call.1} parent=11 // pred_region
          _
        $region40: #{tpu_custom_call.1} parent=11 // pred_fallthru
          _
        // Predicated region
        $region41: #{tpu_custom_call.1} parent=11 // pred_check
          %p589 = pneg %p253
        $region42: #{tpu_custom_call.1} parent=11 // pred_check_branch
          %591 = sbr.rel (%p589) target = $region44
        $region43: #{tpu_custom_call.1} parent=11 // pred_region
          _
        $region44: #{tpu_custom_call.1} parent=11 // pred_fallthru
          _
        // Predicated region
        $region45: #{tpu_custom_call.1} parent=11 // pred_check
          %p592 = pneg %p274
        $region46: #{tpu_custom_call.1} parent=11 // pred_check_branch
          %594 = sbr.rel (%p592) target = $region48
        $region47: #{tpu_custom_call.1} parent=11 // pred_region
          _
        $region48: #{tpu_custom_call.1} parent=11 // pred_fallthru
          _
        // Predicated region
        $region49: #{tpu_custom_call.1} parent=11 // pred_check
          %p595 = pneg %p295
        $region50: #{tpu_custom_call.1} parent=11 // pred_check_branch
          %597 = sbr.rel (%p595) target = $region52
        $region51: #{tpu_custom_call.1} parent=11 // pred_region
          _
        $region52: #{tpu_custom_call.1} parent=11 // pred_fallthru
          _
        // Predicated region
        $region53: #{tpu_custom_call.1} parent=11 // pred_check
          %p598 = pneg %p316
        $region54: #{tpu_custom_call.1} parent=11 // pred_check_branch
          %600 = sbr.rel (%p598) target = $region56
        $region55: #{tpu_custom_call.1} parent=11 // pred_region
          _
        $region56: #{tpu_custom_call.1} parent=11 // pred_fallthru
          _
        // Predicated region
        $region57: #{tpu_custom_call.1} parent=11 // pred_check
          %p601 = pneg %p337
        $region58: #{tpu_custom_call.1} parent=11 // pred_check_branch
          %603 = sbr.rel (%p601) target = $region60
        $region59: #{tpu_custom_call.1} parent=11 // pred_region
          _
        $region60: #{tpu_custom_call.1} parent=11 // pred_fallthru
          _
      $region12: #{tpu_custom_call.1} parent=5 // pred_fallthru
        _
      %p604 = scmp.lt.s32.totalorder %s33, 2
      // Predicated region
      $region61: #{tpu_custom_call.1} parent=5 // pred_check
        %p605 = pneg %p604
      $region62: #{tpu_custom_call.1} parent=5 // pred_check_branch
        %607 = sbr.rel (%p605) target = $region64
      $region63: #{tpu_custom_call.1} parent=5 // pred_region
        // Predicated region
        $region65: #{tpu_custom_call.1} parent=63 // pred_check
          %p608 = pneg %p53
        $region66: #{tpu_custom_call.1} parent=63 // pred_check_branch
          %610 = sbr.rel (%p608) target = $region68
        $region67: #{tpu_custom_call.1} parent=63 // pred_region
          %p611 = scmp.lt.s32.totalorder %s33, 1
          %s612 = scalar_select %p611, %s33, 1
          %s613 = smul.addr %s612, 2
          %s614 = smul.addr %s613, 8
          %s615 = scalar_lea.vmem %s0, %s614
        $region68: #{tpu_custom_call.1} parent=63 // pred_fallthru
          _
        // Predicated region
        $region69: #{tpu_custom_call.1} parent=63 // pred_check
          %p616 = pneg %p79
        $region70: #{tpu_custom_call.1} parent=63 // pred_check_branch
          %618 = sbr.rel (%p616) target = $region72
        $region71: #{tpu_custom_call.1} parent=63 // pred_region
          %p619 = scmp.lt.s32.totalorder %s33, 1
          %s620 = scalar_select %p619, %s33, 1
          %s621 = smul.addr %s620, 2
          %s622 = smul.addr %s621, 8
          %s623 = scalar_lea.vmem %s1, %s622
        $region72: #{tpu_custom_call.1} parent=63 // pred_fallthru
          _
      $region64: #{tpu_custom_call.1} parent=5 // pred_fallthru
        _
      %p624 = scmp.le.s32.totalorder 1, %s33
      %p625 = scmp.lt.s32.totalorder %s33, 3
      %p626 = pnand %p624, %p625
      %p627 = pneg %p626
      // Predicated region
      $region73: #{tpu_custom_call.1} parent=5 // pred_check
        _
      $region74: #{tpu_custom_call.1} parent=5 // pred_check_branch
        %629 = sbr.rel (%p626) target = $region76
      $region75: #{tpu_custom_call.1} parent=5 // pred_region
        %s630 = ssub.s32 %s33, 1
        // Predicated region
        $region77: #{tpu_custom_call.1} parent=75 // pred_check
          %p631 = pneg %p106
        $region78: #{tpu_custom_call.1} parent=75 // pred_check_branch
          %633 = sbr.rel (%p631) target = $region80
        $region79: #{tpu_custom_call.1} parent=75 // pred_region
          %634 = dma.done [#allocation3], 4608
        $region80: #{tpu_custom_call.1} parent=75 // pred_fallthru
          _
        // Predicated region
        $region81: #{tpu_custom_call.1} parent=75 // pred_check
          %p635 = pneg %p127
        $region82: #{tpu_custom_call.1} parent=75 // pred_check_branch
          %637 = sbr.rel (%p635) target = $region84
        $region83: #{tpu_custom_call.1} parent=75 // pred_region
          %638 = dma.done [#allocation6], 4608
        $region84: #{tpu_custom_call.1} parent=75 // pred_fallthru
          _
        // Predicated region
        $region85: #{tpu_custom_call.1} parent=75 // pred_check
          %p639 = pneg %p148
        $region86: #{tpu_custom_call.1} parent=75 // pred_check_branch
          %641 = sbr.rel (%p639) target = $region88
        $region87: #{tpu_custom_call.1} parent=75 // pred_region
          %642 = dma.done [#allocation6], 4608
        $region88: #{tpu_custom_call.1} parent=75 // pred_fallthru
          _
        // Predicated region
        $region89: #{tpu_custom_call.1} parent=75 // pred_check
          %p643 = pneg %p169
        $region90: #{tpu_custom_call.1} parent=75 // pred_check_branch
          %645 = sbr.rel (%p643) target = $region92
        $region91: #{tpu_custom_call.1} parent=75 // pred_region
          %646 = dma.done [#allocation9], 6144
        $region92: #{tpu_custom_call.1} parent=75 // pred_fallthru
          _
        // Predicated region
        $region93: #{tpu_custom_call.1} parent=75 // pred_check
          %p647 = pneg %p190
        $region94: #{tpu_custom_call.1} parent=75 // pred_check_branch
          %649 = sbr.rel (%p647) target = $region96
        $region95: #{tpu_custom_call.1} parent=75 // pred_region
          %650 = dma.done [#allocation9], 6144
        $region96: #{tpu_custom_call.1} parent=75 // pred_fallthru
          _
        // Predicated region
        $region97: #{tpu_custom_call.1} parent=75 // pred_check
          %p651 = pneg %p211
        $region98: #{tpu_custom_call.1} parent=75 // pred_check_branch
          %653 = sbr.rel (%p651) target = $region100
        $region99: #{tpu_custom_call.1} parent=75 // pred_region
          %654 = dma.done [#allocation12], 6144
        $region100: #{tpu_custom_call.1} parent=75 // pred_fallthru
          _
        %p655 = scmp.lt.s32.totalorder %s38, 1
        %s656 = scalar_select %p655, %s38, 1
        %s657 = smul.addr %s656, 2
        %s658 = smul.addr %s657, 8
        %s659 = scalar_lea.vmem %s0, %s658
        %p660 = pneg %p59
        %p661 = pneg %p56
        %p662 = scmp.lt.s32.totalorder %s38, 1
        %s663 = scalar_select %p662, %s38, 1
        %s664 = smul.addr %s663, 2
        %s665 = smul.addr %s664, 8
        %s666 = scalar_lea.vmem %s1, %s665
        %p667 = pneg %p85
        %p668 = pneg %p82
        %p669 = pneg %p106
        %p670 = pneg %p103
        %p671 = pneg %p127
        %p672 = pneg %p124
        %p673 = pneg %p148
        %p674 = pneg %p145
        %p675 = pneg %p169
        %p676 = pneg %p166
        %p677 = pneg %p190
        %p678 = pneg %p187
        %p679 = pneg %p211
        %p680 = pneg %p208
        %p681 = pneg %p232
        %p682 = pneg %p229
        %p683 = pneg %p253
        %p684 = pneg %p250
        %p685 = pneg %p274
        %p686 = pneg %p271
        %p687 = pneg %p295
        %p688 = pneg %p292
        %p689 = pneg %p316
        %p690 = pneg %p313
        %p691 = pneg %p337
        %p692 = pneg %p334
        %p693 = pneg %p363
        %p694 = pneg %p360
        %p695 = scmp.lt.s32.totalorder %s38, 1
        %s696 = scalar_select %p695, %s38, 1
        %s697 = smul.addr %s696, 2
        %s698 = smul.addr %s697, 8
        %s699 = scalar_lea.vmem %s14, %s698
        %p700 = pneg %p389
        %p701 = pneg %p386
        %s702 = sand.u32 %s376, 1
        %s703 = scalar_lea.sflag [#allocation4], %s702
        %s704 = sand.u32 %s376, 1
        %s705 = smul.addr %s704, 8
        %s706 = scalar_lea.vmem [#allocation13], %s705
        %p707 = pneg %p415
        %p708 = pneg %p412
        %p709 = scmp.lt.s32.totalorder %s38, 1
        %s710 = scalar_select %p709, %s38, 1
        %s711 = smul.addr %s710, 2
        %s712 = smul.addr %s711, 8
        %s713 = scalar_lea.vmem %s16, %s712
        %p714 = pneg %p441
        %p715 = pneg %p438
        %p716 = scmp.lt.s32.totalorder %s38, 1
        %s717 = scalar_select %p716, %s38, 1
        %s718 = smul.addr %s717, 2
        %s719 = smul.addr %s718, 8
        %s720 = scalar_lea.vmem %s17, %s719
        %p721 = pneg %p467
        %p722 = pneg %p464
        %p723 = scmp.lt.s32.totalorder %s38, 1
        %s724 = scalar_select %p723, %s38, 1
        %s725 = smul.addr %s724, 2
        %s726 = smul.addr %s725, 8
        %s727 = scalar_lea.vmem %s18, %s726
        %p728 = pneg %p493
        %p729 = pneg %p490
        %p730 = scmp.lt.s32.totalorder %s38, 1
        %s731 = scalar_select %p730, %s38, 1
        %s732 = smul.addr %s731, 2
        %s733 = smul.addr %s732, 8
        %s734 = scalar_lea.vmem %s19, %s733
        %p735 = scmp.lt.s32.totalorder %s38, 1
        %s736 = scalar_select %p735, %s38, 1
        %s737 = smul.addr %s736, 2
        %s738 = smul.addr %s737, 8
        %s739 = scalar_lea.vmem %s0, %s738
        %p740 = scmp.lt.s32.totalorder %s38, 1
        %s741 = scalar_select %p740, %s38, 1
        %s742 = smul.addr %s741, 2
        %s743 = smul.addr %s742, 8
        %s744 = scalar_lea.vmem %s1, %s743
        %p745 = scmp.lt.s32.totalorder %s38, 1
        %s746 = scalar_select %p745, %s38, 1
        %s747 = smul.addr %s746, 2
        %s748 = smul.addr %s747, 8
        %s749 = scalar_lea.vmem %s14, %s748
        %p750 = scmp.lt.s32.totalorder %s38, 1
        %s751 = scalar_select %p750, %s38, 1
        %s752 = smul.addr %s751, 2
        %s753 = smul.addr %s752, 8
        %s754 = scalar_lea.vmem %s16, %s753
        %p755 = scmp.lt.s32.totalorder %s38, 1
        %s756 = scalar_select %p755, %s38, 1
        %s757 = smul.addr %s756, 2
        %s758 = smul.addr %s757, 8
        %s759 = scalar_lea.vmem %s17, %s758
        %p760 = scmp.lt.s32.totalorder %s38, 1
        %s761 = scalar_select %p760, %s38, 1
        %s762 = smul.addr %s761, 2
        %s763 = smul.addr %s762, 8
        %s764 = scalar_lea.vmem %s18, %s763
        %p765 = scmp.lt.s32.totalorder %s38, 1
        %s766 = scalar_select %p765, %s38, 1
        %s767 = smul.addr %s766, 2
        %s768 = smul.addr %s767, 8
        %s769 = scalar_lea.vmem %s19, %s768
        %v770 = vld [vmem:[%s739] sm:$0xff]
        %v771 = vld [vmem:[%s739 + $0x8] sm:$0x3]
        %v772 = vld [vmem:[#allocation2] sm:$0xff]
        %v773 = vld [vmem:[#allocation2 + $0x8] sm:$0xff]
        %v774 = vld [vmem:[#allocation2 + $0x10] sm:$0xff]
        %v775 = vld [vmem:[#allocation2 + $0x18] sm:$0xff]
        %v776 = vld [vmem:[#allocation2 + $0x20] sm:$0xff]
        %v777 = vld [vmem:[#allocation2 + $0x28] sm:$0xff]
        %v778 = vld [vmem:[#allocation2 + $0x30] sm:$0xff]
        %v779 = vld [vmem:[#allocation2 + $0x38] sm:$0xff]
        %v780 = vld [vmem:[#allocation2 + $0x40] sm:$0xff]
        %v781 = vld [vmem:[#allocation2 + $0x48] sm:$0xff]
        %v782 = vld [vmem:[#allocation2 + $0x50] sm:$0xff]
        %v783 = vld [vmem:[#allocation2 + $0x58] sm:$0xff]
        %v784 = vld [vmem:[%s739 + $0x1] sm:$0xff]
        %v785 = vld [vmem:[%s739 + $0x9] sm:$0x3]
        %s786 = scalar_lea.vmem [#allocation2], 96
        %v787 = vld [vmem:[%s786] sm:$0xff]
        %v788 = vld [vmem:[%s786 + $0x8] sm:$0xff]
        %v789 = vld [vmem:[%s786 + $0x10] sm:$0xff]
        %v790 = vld [vmem:[%s786 + $0x18] sm:$0xff]
        %v791 = vld [vmem:[%s786 + $0x20] sm:$0xff]
        %v792 = vld [vmem:[%s786 + $0x28] sm:$0xff]
        %v793 = vld [vmem:[%s786 + $0x30] sm:$0xff]
        %v794 = vld [vmem:[%s786 + $0x38] sm:$0xff]
        %v795 = vld [vmem:[%s786 + $0x40] sm:$0xff]
        %v796 = vld [vmem:[%s786 + $0x48] sm:$0xff]
        %v797 = vld [vmem:[%s786 + $0x50] sm:$0xff]
        %v798 = vld [vmem:[%s786 + $0x58] sm:$0xff]
        %vm799 = vcmask 785408
        %v801 = vsel %vm799, %v784, 0
        %v804 = vsel %vm799, %v785, 0
        %806 = vmatprep.subr.mxu0 0.0
        %807 = vmatpush1.msra.mxu0 %v787
        %808 = vmatprep.subr.mxu0 0.0
        %809 = vmatpush1.msra.mxu0 %v788
        %810 = vmatprep.subr.mxu0 0.0
        %811 = vmatpush1.msra.mxu0 %v789
        %812 = vmatprep.subr.mxu0 0.0
        %813 = vmatpush1.msra.mxu0 %v790
        %814 = vmatprep.subr.mxu0 0.0
        %815 = vmatpush1.msra.mxu0 %v791
        %816 = vmatprep.subr.mxu0 0.0
        %817 = vmatpush1.msra.mxu0 %v792
        %818 = vmatprep.subr.mxu0 0.0
        %819 = vmatpush1.msra.mxu0 %v793
        %820 = vmatprep.subr.mxu0 0.0
        %821 = vmatpush1.msra.mxu0 %v794
        %822 = vmatprep.subr.mxu0 0.0
        %823 = vmatpush1.msra.mxu0 %v795
        %824 = vmatprep.subr.mxu0 0.0
        %825 = vmatpush1.msra.mxu0 %v796
        %826 = vmatprep.subr.mxu0 0.0
        %827 = vmatpush1.msra.mxu0 %v797
        %828 = vmatprep.subr.mxu0 0.0
        %829 = vmatpush1.msra.mxu0 %v798
        %830 = vmatprep.subr.mxu0 0.0
        %831 = vmatpush1.msra.mxu0 0.0
        %832 = vmatprep.subr.mxu0 0.0
        %833 = vmatpush1.msra.mxu0 0.0
        %834 = vmatprep.subr.mxu0 0.0
        %835 = vmatpush1.msra.mxu0 0.0
        %836 = vmatprep.subr.mxu0 0.0
        %837 = vmatpush1.msra.mxu0 0.0
        %838 = vmatprep.subr.mxu0 0.0
        %839 = vmatpush1.msra.mxu0 0.0
        %840 = vmatprep.subr.mxu0 0.0
        %841 = vmatpush1.msra.mxu0 0.0
        %842 = vmatprep.subr.mxu0 0.0
        %843 = vmatpush1.msra.mxu0 0.0
        %844 = vmatprep.subr.mxu0 0.0
        %845 = vmatpush1.msra.mxu0 0.0
        %846 = vmatprep.subr.mxu0 0.0
        %847 = vmatpush1.msra.mxu0 0.0
        %848 = vmatprep.subr.mxu0 0.0
        %849 = vmatpush1.msra.mxu0 0.0
        %850 = vmatprep.subr.mxu0 0.0
        %851 = vmatpush1.msra.mxu0 0.0
        %852 = vmatprep.subr.mxu0 0.0
        %853 = vmatpush1.msra.mxu0 0.0
        %854 = vmatprep.subr.mxu0 0.0
        %855 = vmatpush1.msra.mxu0 0.0
        %856 = vmatprep.subr.mxu0 0.0
        %857 = vmatpush1.msra.mxu0 0.0
        %858 = vmatprep.subr.mxu0 0.0
        %859 = vmatpush1.msra.mxu0 0.0
        %860 = vmatprep.subr.mxu0 0.0
        %861 = vmatpush1.msra.mxu0 0.0
        %862 = vmatprep.subr.mxu0 0.0
        %863 = vmatpush1.msra.mxu0 0.0
        %864 = vmatprep.subr.mxu0 0.0
        %865 = vmatpush1.msra.mxu0 0.0
        %866 = vmatprep.subr.mxu0 0.0
        %867 = vmatpush1.msra.mxu0 0.0
        %868 = vmatprep.subr.mxu0 0.0
        %869 = vmatpush1.msra.mxu0 0.0
        %870 = vmatprep.mubr.f32.mxu0 0.0
        %871 = vmatmul.mubr.f32.gmra.mrb[0].mxu0 %v801
        %v872 = vpop.f32.mrb[0].mxu0
        %v873 = vadd.f32 0.0, %v872
        %v874 = vpop.f32.mrb[0].mxu0
        %875 = vmatprep.mubr.f32.mxu0 0.0
        %876 = vmatmul.mubr.f32.gmra.mrb[0].mxu0 %v804
        %v877 = vpop.f32.mrb[0].mxu0
        %v878 = vadd.f32 0.0, %v877
        %v879 = vpop.f32.mrb[0].mxu0
        %880 = vdwg.mxu0
        %v882 = vsel %vm799, %v770, 0
        %v885 = vsel %vm799, %v771, 0
        %887 = vmatprep.subr.mxu0 0.0
        %888 = vmatpush1.msra.mxu0 %v772
        %889 = vmatprep.subr.mxu0 0.0
        %890 = vmatpush1.msra.mxu0 %v773
        %891 = vmatprep.subr.mxu0 0.0
        %892 = vmatpush1.msra.mxu0 %v774
        %893 = vmatprep.subr.mxu0 0.0
        %894 = vmatpush1.msra.mxu0 %v775
        %895 = vmatprep.subr.mxu0 0.0
        %896 = vmatpush1.msra.mxu0 %v776
        %897 = vmatprep.subr.mxu0 0.0
        %898 = vmatpush1.msra.mxu0 %v777
        %899 = vmatprep.subr.mxu0 0.0
        %900 = vmatpush1.msra.mxu0 %v778
        %901 = vmatprep.subr.mxu0 0.0
        %902 = vmatpush1.msra.mxu0 %v779
        %903 = vmatprep.subr.mxu0 0.0
        %904 = vmatpush1.msra.mxu0 %v780
        %905 = vmatprep.subr.mxu0 0.0
        %906 = vmatpush1.msra.mxu0 %v781
        %907 = vmatprep.subr.mxu0 0.0
        %908 = vmatpush1.msra.mxu0 %v782
        %909 = vmatprep.subr.mxu0 0.0
        %910 = vmatpush1.msra.mxu0 %v783
        %911 = vmatprep.subr.mxu0 0.0
        %912 = vmatpush1.msra.mxu0 0.0
        %913 = vmatprep.subr.mxu0 0.0
        %914 = vmatpush1.msra.mxu0 0.0
        %915 = vmatprep.subr.mxu0 0.0
        %916 = vmatpush1.msra.mxu0 0.0
        %917 = vmatprep.subr.mxu0 0.0
        %918 = vmatpush1.msra.mxu0 0.0
        %919 = vmatprep.subr.mxu0 0.0
        %920 = vmatpush1.msra.mxu0 0.0
        %921 = vmatprep.subr.mxu0 0.0
        %922 = vmatpush1.msra.mxu0 0.0
        %923 = vmatprep.subr.mxu0 0.0
        %924 = vmatpush1.msra.mxu0 0.0
        %925 = vmatprep.subr.mxu0 0.0
        %926 = vmatpush1.msra.mxu0 0.0
        %927 = vmatprep.subr.mxu0 0.0
        %928 = vmatpush1.msra.mxu0 0.0
        %929 = vmatprep.subr.mxu0 0.0
        %930 = vmatpush1.msra.mxu0 0.0
        %931 = vmatprep.subr.mxu0 0.0
        %932 = vmatpush1.msra.mxu0 0.0
        %933 = vmatprep.subr.mxu0 0.0
        %934 = vmatpush1.msra.mxu0 0.0
        %935 = vmatprep.subr.mxu0 0.0
        %936 = vmatpush1.msra.mxu0 0.0
        %937 = vmatprep.subr.mxu0 0.0
        %938 = vmatpush1.msra.mxu0 0.0
        %939 = vmatprep.subr.mxu0 0.0
        %940 = vmatpush1.msra.mxu0 0.0
        %941 = vmatprep.subr.mxu0 0.0
        %942 = vmatpush1.msra.mxu0 0.0
        %943 = vmatprep.subr.mxu0 0.0
        %944 = vmatpush1.msra.mxu0 0.0
        %945 = vmatprep.subr.mxu0 0.0
        %946 = vmatpush1.msra.mxu0 0.0
        %947 = vmatprep.subr.mxu0 0.0
        %948 = vmatpush1.msra.mxu0 0.0
        %949 = vmatprep.subr.mxu0 0.0
        %950 = vmatpush1.msra.mxu0 0.0
        %951 = vmatprep.mubr.f32.mxu0 0.0
        %952 = vmatmul.mubr.f32.gmra.mrb[0].mxu0 %v882
        %v953 = vpop.f32.mrb[0].mxu0
        %v954 = vadd.f32 %v873, %v953
        %v955 = vpop.f32.mrb[0].mxu0
        %956 = vmatprep.mubr.f32.mxu0 0.0
        %957 = vmatmul.mubr.f32.gmra.mrb[0].mxu0 %v885
        %v958 = vpop.f32.mrb[0].mxu0
        %v959 = vadd.f32 %v878, %v958
        %v960 = vpop.f32.mrb[0].mxu0
        %961 = vdwg.mxu0
        %v962 = vld [vmem:[%s739 + $0x2] sm:$0xff]
        %v963 = vld [vmem:[%s739 + $0xa] sm:$0x3]
        %s964 = scalar_lea.vmem [#allocation2], 192
        %v965 = vld [vmem:[%s964] sm:$0xff]
        %v966 = vld [vmem:[%s964 + $0x8] sm:$0xff]
        %v967 = vld [vmem:[%s964 + $0x10] sm:$0xff]
        %v968 = vld [vmem:[%s964 + $0x18] sm:$0xff]
        %v969 = vld [vmem:[%s964 + $0x20] sm:$0xff]
        %v970 = vld [vmem:[%s964 + $0x28] sm:$0xff]
        %v971 = vld [vmem:[%s964 + $0x30] sm:$0xff]
        %v972 = vld [vmem:[%s964 + $0x38] sm:$0xff]
        %v973 = vld [vmem:[%s964 + $0x40] sm:$0xff]
        %v974 = vld [vmem:[%s964 + $0x48] sm:$0xff]
        %v975 = vld [vmem:[%s964 + $0x50] sm:$0xff]
        %v976 = vld [vmem:[%s964 + $0x58] sm:$0xff]
        %v978 = vsel %vm799, %v962, 0
        %v981 = vsel %vm799, %v963, 0
        %983 = vmatprep.subr.mxu0 0.0
        %984 = vmatpush1.msra.mxu0 %v965
        %985 = vmatprep.subr.mxu0 0.0
        %986 = vmatpush1.msra.mxu0 %v966
        %987 = vmatprep.subr.mxu0 0.0
        %988 = vmatpush1.msra.mxu0 %v967
        %989 = vmatprep.subr.mxu0 0.0
        %990 = vmatpush1.msra.mxu0 %v968
        %991 = vmatprep.subr.mxu0 0.0
        %992 = vmatpush1.msra.mxu0 %v969
        %993 = vmatprep.subr.mxu0 0.0
        %994 = vmatpush1.msra.mxu0 %v970
        %995 = vmatprep.subr.mxu0 0.0
        %996 = vmatpush1.msra.mxu0 %v971
        %997 = vmatprep.subr.mxu0 0.0
        %998 = vmatpush1.msra.mxu0 %v972
        %999 = vmatprep.subr.mxu0 0.0
        %1000 = vmatpush1.msra.mxu0 %v973
        %1001 = vmatprep.subr.mxu0 0.0
        %1002 = vmatpush1.msra.mxu0 %v974
        %1003 = vmatprep.subr.mxu0 0.0
        %1004 = vmatpush1.msra.mxu0 %v975
        %1005 = vmatprep.subr.mxu0 0.0
        %1006 = vmatpush1.msra.mxu0 %v976
        %1007 = vmatprep.subr.mxu0 0.0
        %1008 = vmatpush1.msra.mxu0 0.0
        %1009 = vmatprep.subr.mxu0 0.0
        %1010 = vmatpush1.msra.mxu0 0.0
        %1011 = vmatprep.subr.mxu0 0.0
        %1012 = vmatpush1.msra.mxu0 0.0
        %1013 = vmatprep.subr.mxu0 0.0
        %1014 = vmatpush1.msra.mxu0 0.0
        %1015 = vmatprep.subr.mxu0 0.0
        %1016 = vmatpush1.msra.mxu0 0.0
        %1017 = vmatprep.subr.mxu0 0.0
        %1018 = vmatpush1.msra.mxu0 0.0
        %1019 = vmatprep.subr.mxu0 0.0
        %1020 = vmatpush1.msra.mxu0 0.0
        %1021 = vmatprep.subr.mxu0 0.0
        %1022 = vmatpush1.msra.mxu0 0.0
        %1023 = vmatprep.subr.mxu0 0.0
        %1024 = vmatpush1.msra.mxu0 0.0
        %1025 = vmatprep.subr.mxu0 0.0
        %1026 = vmatpush1.msra.mxu0 0.0
        %1027 = vmatprep.subr.mxu0 0.0
        %1028 = vmatpush1.msra.mxu0 0.0
        %1029 = vmatprep.subr.mxu0 0.0
        %1030 = vmatpush1.msra.mxu0 0.0
        %1031 = vmatprep.subr.mxu0 0.0
        %1032 = vmatpush1.msra.mxu0 0.0
        %1033 = vmatprep.subr.mxu0 0.0
        %1034 = vmatpush1.msra.mxu0 0.0
        %1035 = vmatprep.subr.mxu0 0.0
        %1036 = vmatpush1.msra.mxu0 0.0
        %1037 = vmatprep.subr.mxu0 0.0
        %1038 = vmatpush1.msra.mxu0 0.0
        %1039 = vmatprep.subr.mxu0 0.0
        %1040 = vmatpush1.msra.mxu0 0.0
        %1041 = vmatprep.subr.mxu0 0.0
        %1042 = vmatpush1.msra.mxu0 0.0
        %1043 = vmatprep.subr.mxu0 0.0
        %1044 = vmatpush1.msra.mxu0 0.0
        %1045 = vmatprep.subr.mxu0 0.0
        %1046 = vmatpush1.msra.mxu0 0.0
        %1047 = vmatprep.mubr.f32.mxu0 0.0
        %1048 = vmatmul.mubr.f32.gmra.mrb[0].mxu0 %v978
        %v1049 = vpop.f32.mrb[0].mxu0
        %v1050 = vadd.f32 0.0, %v1049
        %v1051 = vpop.f32.mrb[0].mxu0
        %1052 = vmatprep.mubr.f32.mxu0 0.0
        %1053 = vmatmul.mubr.f32.gmra.mrb[0].mxu0 %v981
        %v1054 = vpop.f32.mrb[0].mxu0
        %v1055 = vadd.f32 0.0, %v1054
        %v1056 = vpop.f32.mrb[0].mxu0
        %1057 = vdwg.mxu0
        %v1058 = vadd.f32 %v954, %v1050
        %v1059 = vadd.f32 %v959, %v1055
        %v1060 = vld [vmem:[%s8] sm:$0x1]
        %v1062 = vlaneseq
        %v1063 = vshrl.u32 %v1062, 7
        %v1064 = vsub.s32 0, %v1063
        %v1065 = vrot.slane %v1060, %v1064
        %v1067 = vadd.f32 %v1058, %v1065
        %v1068 = vadd.f32 %v1059, %v1065
        %v1069 = vmax.f32 %v1067, 0.0
        %v1070 = vmax.f32 %v1068, 0.0
        %1071 = vst [vmem:[%s749] sm:$0xff] %v1069
        %1072 = vst [vmem:[%s749 + $0x8] sm:$0x3] %v1070
        %v1073 = vld [vmem:[%s739] sm:$0xff]
        %v1074 = vld [vmem:[#allocation5] sm:$0xff]
        %v1075 = vld [vmem:[#allocation5 + $0x8] sm:$0xff]
        %v1076 = vld [vmem:[#allocation5 + $0x10] sm:$0xff]
        %v1077 = vld [vmem:[#allocation5 + $0x18] sm:$0xff]
        %v1078 = vld [vmem:[#allocation5 + $0x20] sm:$0xff]
        %v1079 = vld [vmem:[#allocation5 + $0x28] sm:$0xff]
        %v1080 = vld [vmem:[#allocation5 + $0x30] sm:$0xff]
        %v1081 = vld [vmem:[#allocation5 + $0x38] sm:$0xff]
        %v1082 = vld [vmem:[#allocation5 + $0x40] sm:$0xff]
        %v1083 = vld [vmem:[#allocation5 + $0x48] sm:$0xff]
        %v1084 = vld [vmem:[#allocation5 + $0x50] sm:$0xff]
        %v1085 = vld [vmem:[#allocation5 + $0x58] sm:$0xff]
        %v1086 = vld [vmem:[%s739 + $0x2] sm:$0xff]
        %s1087 = scalar_lea.vmem [#allocation5], 96
        %v1088 = vld [vmem:[%s1087] sm:$0xff]
        %v1089 = vld [vmem:[%s1087 + $0x8] sm:$0xff]
        %v1090 = vld [vmem:[%s1087 + $0x10] sm:$0xff]
        %v1091 = vld [vmem:[%s1087 + $0x18] sm:$0xff]
        %v1092 = vld [vmem:[%s1087 + $0x20] sm:$0xff]
        %v1093 = vld [vmem:[%s1087 + $0x28] sm:$0xff]
        %v1094 = vld [vmem:[%s1087 + $0x30] sm:$0xff]
        %v1095 = vld [vmem:[%s1087 + $0x38] sm:$0xff]
        %v1096 = vld [vmem:[%s1087 + $0x40] sm:$0xff]
        %v1097 = vld [vmem:[%s1087 + $0x48] sm:$0xff]
        %v1098 = vld [vmem:[%s1087 + $0x50] sm:$0xff]
        %v1099 = vld [vmem:[%s1087 + $0x58] sm:$0xff]
        %v1101 = vsel %vm799, %v1086, 0
        %1103 = vmatprep.subr.mxu0 0.0
        %1104 = vmatpush1.msra.mxu0 %v1088
        %1105 = vmatprep.subr.mxu0 0.0
        %1106 = vmatpush1.msra.mxu0 %v1089
        %1107 = vmatprep.subr.mxu0 0.0
        %1108 = vmatpush1.msra.mxu0 %v1090
        %1109 = vmatprep.subr.mxu0 0.0
        %1110 = vmatpush1.msra.mxu0 %v1091
        %1111 = vmatprep.subr.mxu0 0.0
        %1112 = vmatpush1.msra.mxu0 %v1092
        %1113 = vmatprep.subr.mxu0 0.0
        %1114 = vmatpush1.msra.mxu0 %v1093
        %1115 = vmatprep.subr.mxu0 0.0
        %1116 = vmatpush1.msra.mxu0 %v1094
        %1117 = vmatprep.subr.mxu0 0.0
        %1118 = vmatpush1.msra.mxu0 %v1095
        %1119 = vmatprep.subr.mxu0 0.0
        %1120 = vmatpush1.msra.mxu0 %v1096
        %1121 = vmatprep.subr.mxu0 0.0
        %1122 = vmatpush1.msra.mxu0 %v1097
        %1123 = vmatprep.subr.mxu0 0.0
        %1124 = vmatpush1.msra.mxu0 %v1098
        %1125 = vmatprep.subr.mxu0 0.0
        %1126 = vmatpush1.msra.mxu0 %v1099
        %1127 = vmatprep.subr.mxu0 0.0
        %1128 = vmatpush1.msra.mxu0 0.0
        %1129 = vmatprep.subr.mxu0 0.0
        %1130 = vmatpush1.msra.mxu0 0.0
        %1131 = vmatprep.subr.mxu0 0.0
        %1132 = vmatpush1.msra.mxu0 0.0
        %1133 = vmatprep.subr.mxu0 0.0
        %1134 = vmatpush1.msra.mxu0 0.0
        %1135 = vmatprep.subr.mxu0 0.0
        %1136 = vmatpush1.msra.mxu0 0.0
        %1137 = vmatprep.subr.mxu0 0.0
        %1138 = vmatpush1.msra.mxu0 0.0
        %1139 = vmatprep.subr.mxu0 0.0
        %1140 = vmatpush1.msra.mxu0 0.0
        %1141 = vmatprep.subr.mxu0 0.0
        %1142 = vmatpush1.msra.mxu0 0.0
        %1143 = vmatprep.subr.mxu0 0.0
        %1144 = vmatpush1.msra.mxu0 0.0
        %1145 = vmatprep.subr.mxu0 0.0
        %1146 = vmatpush1.msra.mxu0 0.0
        %1147 = vmatprep.subr.mxu0 0.0
        %1148 = vmatpush1.msra.mxu0 0.0
        %1149 = vmatprep.subr.mxu0 0.0
        %1150 = vmatpush1.msra.mxu0 0.0
        %1151 = vmatprep.subr.mxu0 0.0
        %1152 = vmatpush1.msra.mxu0 0.0
        %1153 = vmatprep.subr.mxu0 0.0
        %1154 = vmatpush1.msra.mxu0 0.0
        %1155 = vmatprep.subr.mxu0 0.0
        %1156 = vmatpush1.msra.mxu0 0.0
        %1157 = vmatprep.subr.mxu0 0.0
        %1158 = vmatpush1.msra.mxu0 0.0
        %1159 = vmatprep.subr.mxu0 0.0
        %1160 = vmatpush1.msra.mxu0 0.0
        %1161 = vmatprep.subr.mxu0 0.0
        %1162 = vmatpush1.msra.mxu0 0.0
        %1163 = vmatprep.subr.mxu0 0.0
        %1164 = vmatpush1.msra.mxu0 0.0
        %1165 = vmatprep.subr.mxu0 0.0
        %1166 = vmatpush1.msra.mxu0 0.0
        %1167 = vmatprep.mubr.f32.mxu0 0.0
        %1168 = vmatmul.mubr.f32.gmra.mrb[0].mxu0 %v1101
        %v1169 = vpop.f32.mrb[0].mxu0
        %v1170 = vadd.f32 0.0, %v1169
        %v1171 = vpop.f32.mrb[0].mxu0
        %1172 = vdwg.mxu0
        %v1174 = vsel %vm799, %v1073, 0
        %1176 = vmatprep.subr.mxu0 0.0
        %1177 = vmatpush1.msra.mxu0 %v1074
        %1178 = vmatprep.subr.mxu0 0.0
        %1179 = vmatpush1.msra.mxu0 %v1075
        %1180 = vmatprep.subr.mxu0 0.0
        %1181 = vmatpush1.msra.mxu0 %v1076
        %1182 = vmatprep.subr.mxu0 0.0
        %1183 = vmatpush1.msra.mxu0 %v1077
        %1184 = vmatprep.subr.mxu0 0.0
        %1185 = vmatpush1.msra.mxu0 %v1078
        %1186 = vmatprep.subr.mxu0 0.0
        %1187 = vmatpush1.msra.mxu0 %v1079
        %1188 = vmatprep.subr.mxu0 0.0
        %1189 = vmatpush1.msra.mxu0 %v1080
        %1190 = vmatprep.subr.mxu0 0.0
        %1191 = vmatpush1.msra.mxu0 %v1081
        %1192 = vmatprep.subr.mxu0 0.0
        %1193 = vmatpush1.msra.mxu0 %v1082
        %1194 = vmatprep.subr.mxu0 0.0
        %1195 = vmatpush1.msra.mxu0 %v1083
        %1196 = vmatprep.subr.mxu0 0.0
        %1197 = vmatpush1.msra.mxu0 %v1084
        %1198 = vmatprep.subr.mxu0 0.0
        %1199 = vmatpush1.msra.mxu0 %v1085
        %1200 = vmatprep.subr.mxu0 0.0
        %1201 = vmatpush1.msra.mxu0 0.0
        %1202 = vmatprep.subr.mxu0 0.0
        %1203 = vmatpush1.msra.mxu0 0.0
        %1204 = vmatprep.subr.mxu0 0.0
        %1205 = vmatpush1.msra.mxu0 0.0
        %1206 = vmatprep.subr.mxu0 0.0
        %1207 = vmatpush1.msra.mxu0 0.0
        %1208 = vmatprep.subr.mxu0 0.0
        %1209 = vmatpush1.msra.mxu0 0.0
        %1210 = vmatprep.subr.mxu0 0.0
        %1211 = vmatpush1.msra.mxu0 0.0
        %1212 = vmatprep.subr.mxu0 0.0
        %1213 = vmatpush1.msra.mxu0 0.0
        %1214 = vmatprep.subr.mxu0 0.0
        %1215 = vmatpush1.msra.mxu0 0.0
        %1216 = vmatprep.subr.mxu0 0.0
        %1217 = vmatpush1.msra.mxu0 0.0
        %1218 = vmatprep.subr.mxu0 0.0
        %1219 = vmatpush1.msra.mxu0 0.0
        %1220 = vmatprep.subr.mxu0 0.0
        %1221 = vmatpush1.msra.mxu0 0.0
        %1222 = vmatprep.subr.mxu0 0.0
        %1223 = vmatpush1.msra.mxu0 0.0
        %1224 = vmatprep.subr.mxu0 0.0
        %1225 = vmatpush1.msra.mxu0 0.0
        %1226 = vmatprep.subr.mxu0 0.0
        %1227 = vmatpush1.msra.mxu0 0.0
        %1228 = vmatprep.subr.mxu0 0.0
        %1229 = vmatpush1.msra.mxu0 0.0
        %1230 = vmatprep.subr.mxu0 0.0
        %1231 = vmatpush1.msra.mxu0 0.0
        %1232 = vmatprep.subr.mxu0 0.0
        %1233 = vmatpush1.msra.mxu0 0.0
        %1234 = vmatprep.subr.mxu0 0.0
        %1235 = vmatpush1.msra.mxu0 0.0
        %1236 = vmatprep.subr.mxu0 0.0
        %1237 = vmatpush1.msra.mxu0 0.0
        %1238 = vmatprep.subr.mxu0 0.0
        %1239 = vmatpush1.msra.mxu0 0.0
        %1240 = vmatprep.mubr.f32.mxu0 0.0
        %1241 = vmatmul.mubr.f32.gmra.mrb[0].mxu0 %v1174
        %v1242 = vpop.f32.mrb[0].mxu0
        %v1243 = vadd.f32 %v1170, %v1242
        %v1244 = vpop.f32.mrb[0].mxu0
        %1245 = vdwg.mxu0
        %v1246 = vld [vmem:[%s739 + $0x4] sm:$0xff]
        %s1247 = scalar_lea.vmem [#allocation5], 192
        %v1248 = vld [vmem:[%s1247] sm:$0xff]
        %v1249 = vld [vmem:[%s1247 + $0x8] sm:$0xff]
        %v1250 = vld [vmem:[%s1247 + $0x10] sm:$0xff]
        %v1251 = vld [vmem:[%s1247 + $0x18] sm:$0xff]
        %v1252 = vld [vmem:[%s1247 + $0x20] sm:$0xff]
        %v1253 = vld [vmem:[%s1247 + $0x28] sm:$0xff]
        %v1254 = vld [vmem:[%s1247 + $0x30] sm:$0xff]
        %v1255 = vld [vmem:[%s1247 + $0x38] sm:$0xff]
        %v1256 = vld [vmem:[%s1247 + $0x40] sm:$0xff]
        %v1257 = vld [vmem:[%s1247 + $0x48] sm:$0xff]
        %v1258 = vld [vmem:[%s1247 + $0x50] sm:$0xff]
        %v1259 = vld [vmem:[%s1247 + $0x58] sm:$0xff]
        %v1261 = vsel %vm799, %v1246, 0
        %1263 = vmatprep.subr.mxu0 0.0
        %1264 = vmatpush1.msra.mxu0 %v1248
        %1265 = vmatprep.subr.mxu0 0.0
        %1266 = vmatpush1.msra.mxu0 %v1249
        %1267 = vmatprep.subr.mxu0 0.0
        %1268 = vmatpush1.msra.mxu0 %v1250
        %1269 = vmatprep.subr.mxu0 0.0
        %1270 = vmatpush1.msra.mxu0 %v1251
        %1271 = vmatprep.subr.mxu0 0.0
        %1272 = vmatpush1.msra.mxu0 %v1252
        %1273 = vmatprep.subr.mxu0 0.0
        %1274 = vmatpush1.msra.mxu0 %v1253
        %1275 = vmatprep.subr.mxu0 0.0
        %1276 = vmatpush1.msra.mxu0 %v1254
        %1277 = vmatprep.subr.mxu0 0.0
        %1278 = vmatpush1.msra.mxu0 %v1255
        %1279 = vmatprep.subr.mxu0 0.0
        %1280 = vmatpush1.msra.mxu0 %v1256
        %1281 = vmatprep.subr.mxu0 0.0
        %1282 = vmatpush1.msra.mxu0 %v1257
        %1283 = vmatprep.subr.mxu0 0.0
        %1284 = vmatpush1.msra.mxu0 %v1258
        %1285 = vmatprep.subr.mxu0 0.0
        %1286 = vmatpush1.msra.mxu0 %v1259
        %1287 = vmatprep.subr.mxu0 0.0
        %1288 = vmatpush1.msra.mxu0 0.0
        %1289 = vmatprep.subr.mxu0 0.0
        %1290 = vmatpush1.msra.mxu0 0.0
        %1291 = vmatprep.subr.mxu0 0.0
        %1292 = vmatpush1.msra.mxu0 0.0
        %1293 = vmatprep.subr.mxu0 0.0
        %1294 = vmatpush1.msra.mxu0 0.0
        %1295 = vmatprep.subr.mxu0 0.0
        %1296 = vmatpush1.msra.mxu0 0.0
        %1297 = vmatprep.subr.mxu0 0.0
        %1298 = vmatpush1.msra.mxu0 0.0
        %1299 = vmatprep.subr.mxu0 0.0
        %1300 = vmatpush1.msra.mxu0 0.0
        %1301 = vmatprep.subr.mxu0 0.0
        %1302 = vmatpush1.msra.mxu0 0.0
        %1303 = vmatprep.subr.mxu0 0.0
        %1304 = vmatpush1.msra.mxu0 0.0
        %1305 = vmatprep.subr.mxu0 0.0
        %1306 = vmatpush1.msra.mxu0 0.0
        %1307 = vmatprep.subr.mxu0 0.0
        %1308 = vmatpush1.msra.mxu0 0.0
        %1309 = vmatprep.subr.mxu0 0.0
        %1310 = vmatpush1.msra.mxu0 0.0
        %1311 = vmatprep.subr.mxu0 0.0
        %1312 = vmatpush1.msra.mxu0 0.0
        %1313 = vmatprep.subr.mxu0 0.0
        %1314 = vmatpush1.msra.mxu0 0.0
        %1315 = vmatprep.subr.mxu0 0.0
        %1316 = vmatpush1.msra.mxu0 0.0
        %1317 = vmatprep.subr.mxu0 0.0
        %1318 = vmatpush1.msra.mxu0 0.0
        %1319 = vmatprep.subr.mxu0 0.0
        %1320 = vmatpush1.msra.mxu0 0.0
        %1321 = vmatprep.subr.mxu0 0.0
        %1322 = vmatpush1.msra.mxu0 0.0
        %1323 = vmatprep.subr.mxu0 0.0
        %1324 = vmatpush1.msra.mxu0 0.0
        %1325 = vmatprep.subr.mxu0 0.0
        %1326 = vmatpush1.msra.mxu0 0.0
        %1327 = vmatprep.mubr.f32.mxu0 0.0
        %1328 = vmatmul.mubr.f32.gmra.mrb[0].mxu0 %v1261
        %v1329 = vpop.f32.mrb[0].mxu0
        %v1330 = vadd.f32 0.0, %v1329
        %v1331 = vpop.f32.mrb[0].mxu0
        %1332 = vdwg.mxu0
        %v1333 = vadd.f32 %v1243, %v1330
        %v1334 = vld [vmem:[%s9] sm:$0x1]
        %v1336 = vlaneseq
        %v1337 = vshrl.u32 %v1336, 7
        %v1338 = vsub.s32 0, %v1337
        %v1339 = vrot.slane %v1334, %v1338
        %v1341 = vadd.f32 %v1333, %v1339
        %v1342 = vmax.f32 %v1341, 0.0
        %1343 = vst [vmem:[%s706] sm:$0xff] %v1342
        %v1344 = vld [vmem:[%s739] sm:$0xff]
        %v1345 = vld [vmem:[%s739 + $0x8] sm:$0x3]
        %v1346 = vld [vmem:[#allocation7] sm:$0xff]
        %v1347 = vld [vmem:[#allocation7 + $0x8] sm:$0xff]
        %v1348 = vld [vmem:[#allocation7 + $0x10] sm:$0xff]
        %v1349 = vld [vmem:[#allocation7 + $0x18] sm:$0xff]
        %v1350 = vld [vmem:[#allocation7 + $0x20] sm:$0xff]
        %v1351 = vld [vmem:[#allocation7 + $0x28] sm:$0xff]
        %v1352 = vld [vmem:[#allocation7 + $0x30] sm:$0xff]
        %v1353 = vld [vmem:[#allocation7 + $0x38] sm:$0xff]
        %v1354 = vld [vmem:[#allocation7 + $0x40] sm:$0xff]
        %v1355 = vld [vmem:[#allocation7 + $0x48] sm:$0xff]
        %v1356 = vld [vmem:[#allocation7 + $0x50] sm:$0xff]
        %v1357 = vld [vmem:[#allocation7 + $0x58] sm:$0xff]
        %v1358 = vld [vmem:[%s739 + $0x1] sm:$0xff]
        %v1359 = vld [vmem:[%s739 + $0x9] sm:$0x3]
        %s1360 = scalar_lea.vmem [#allocation7], 96
        %v1361 = vld [vmem:[%s1360] sm:$0xff]
        %v1362 = vld [vmem:[%s1360 + $0x8] sm:$0xff]
        %v1363 = vld [vmem:[%s1360 + $0x10] sm:$0xff]
        %v1364 = vld [vmem:[%s1360 + $0x18] sm:$0xff]
        %v1365 = vld [vmem:[%s1360 + $0x20] sm:$0xff]
        %v1366 = vld [vmem:[%s1360 + $0x28] sm:$0xff]
        %v1367 = vld [vmem:[%s1360 + $0x30] sm:$0xff]
        %v1368 = vld [vmem:[%s1360 + $0x38] sm:$0xff]
        %v1369 = vld [vmem:[%s1360 + $0x40] sm:$0xff]
        %v1370 = vld [vmem:[%s1360 + $0x48] sm:$0xff]
        %v1371 = vld [vmem:[%s1360 + $0x50] sm:$0xff]
        %v1372 = vld [vmem:[%s1360 + $0x58] sm:$0xff]
        %v1374 = vsel %vm799, %v1358, 0
        %v1377 = vsel %vm799, %v1359, 0
        %1379 = vmatprep.subr.mxu0 0.0
        %1380 = vmatpush1.msra.mxu0 %v1361
        %1381 = vmatprep.subr.mxu0 0.0
        %1382 = vmatpush1.msra.mxu0 %v1362
        %1383 = vmatprep.subr.mxu0 0.0
        %1384 = vmatpush1.msra.mxu0 %v1363
        %1385 = vmatprep.subr.mxu0 0.0
        %1386 = vmatpush1.msra.mxu0 %v1364
        %1387 = vmatprep.subr.mxu0 0.0
        %1388 = vmatpush1.msra.mxu0 %v1365
        %1389 = vmatprep.subr.mxu0 0.0
        %1390 = vmatpush1.msra.mxu0 %v1366
        %1391 = vmatprep.subr.mxu0 0.0
        %1392 = vmatpush1.msra.mxu0 %v1367
        %1393 = vmatprep.subr.mxu0 0.0
        %1394 = vmatpush1.msra.mxu0 %v1368
        %1395 = vmatprep.subr.mxu0 0.0
        %1396 = vmatpush1.msra.mxu0 %v1369
        %1397 = vmatprep.subr.mxu0 0.0
        %1398 = vmatpush1.msra.mxu0 %v1370
        %1399 = vmatprep.subr.mxu0 0.0
        %1400 = vmatpush1.msra.mxu0 %v1371
        %1401 = vmatprep.subr.mxu0 0.0
        %1402 = vmatpush1.msra.mxu0 %v1372
        %1403 = vmatprep.subr.mxu0 0.0
        %1404 = vmatpush1.msra.mxu0 0.0
        %1405 = vmatprep.subr.mxu0 0.0
        %1406 = vmatpush1.msra.mxu0 0.0
        %1407 = vmatprep.subr.mxu0 0.0
        %1408 = vmatpush1.msra.mxu0 0.0
        %1409 = vmatprep.subr.mxu0 0.0
        %1410 = vmatpush1.msra.mxu0 0.0
        %1411 = vmatprep.subr.mxu0 0.0
        %1412 = vmatpush1.msra.mxu0 0.0
        %1413 = vmatprep.subr.mxu0 0.0
        %1414 = vmatpush1.msra.mxu0 0.0
        %1415 = vmatprep.subr.mxu0 0.0
        %1416 = vmatpush1.msra.mxu0 0.0
        %1417 = vmatprep.subr.mxu0 0.0
        %1418 = vmatpush1.msra.mxu0 0.0
        %1419 = vmatprep.subr.mxu0 0.0
        %1420 = vmatpush1.msra.mxu0 0.0
        %1421 = vmatprep.subr.mxu0 0.0
        %1422 = vmatpush1.msra.mxu0 0.0
        %1423 = vmatprep.subr.mxu0 0.0
        %1424 = vmatpush1.msra.mxu0 0.0
        %1425 = vmatprep.subr.mxu0 0.0
        %1426 = vmatpush1.msra.mxu0 0.0
        %1427 = vmatprep.subr.mxu0 0.0
        %1428 = vmatpush1.msra.mxu0 0.0
        %1429 = vmatprep.subr.mxu0 0.0
        %1430 = vmatpush1.msra.mxu0 0.0
        %1431 = vmatprep.subr.mxu0 0.0
        %1432 = vmatpush1.msra.mxu0 0.0
        %1433 = vmatprep.subr.mxu0 0.0
        %1434 = vmatpush1.msra.mxu0 0.0
        %1435 = vmatprep.subr.mxu0 0.0
        %1436 = vmatpush1.msra.mxu0 0.0
        %1437 = vmatprep.subr.mxu0 0.0
        %1438 = vmatpush1.msra.mxu0 0.0
        %1439 = vmatprep.subr.mxu0 0.0
        %1440 = vmatpush1.msra.mxu0 0.0
        %1441 = vmatprep.subr.mxu0 0.0
        %1442 = vmatpush1.msra.mxu0 0.0
        %1443 = vmatprep.mubr.f32.mxu0 0.0
        %1444 = vmatmul.mubr.f32.gmra.mrb[0].mxu0 %v1374
        %v1445 = vpop.f32.mrb[0].mxu0
        %v1446 = vadd.f32 0.0, %v1445
        %v1447 = vpop.f32.mrb[0].mxu0
        %1448 = vmatprep.mubr.f32.mxu0 0.0
        %1449 = vmatmul.mubr.f32.gmra.mrb[0].mxu0 %v1377
        %v1450 = vpop.f32.mrb[0].mxu0
        %v1451 = vadd.f32 0.0, %v1450
        %v1452 = vpop.f32.mrb[0].mxu0
        %1453 = vdwg.mxu0
        %v1455 = vsel %vm799, %v1344, 0
        %v1458 = vsel %vm799, %v1345, 0
        %1460 = vmatprep.subr.mxu0 0.0
        %1461 = vmatpush1.msra.mxu0 %v1346
        %1462 = vmatprep.subr.mxu0 0.0
        %1463 = vmatpush1.msra.mxu0 %v1347
        %1464 = vmatprep.subr.mxu0 0.0
        %1465 = vmatpush1.msra.mxu0 %v1348
        %1466 = vmatprep.subr.mxu0 0.0
        %1467 = vmatpush1.msra.mxu0 %v1349
        %1468 = vmatprep.subr.mxu0 0.0
        %1469 = vmatpush1.msra.mxu0 %v1350
        %1470 = vmatprep.subr.mxu0 0.0
        %1471 = vmatpush1.msra.mxu0 %v1351
        %1472 = vmatprep.subr.mxu0 0.0
        %1473 = vmatpush1.msra.mxu0 %v1352
        %1474 = vmatprep.subr.mxu0 0.0
        %1475 = vmatpush1.msra.mxu0 %v1353
        %1476 = vmatprep.subr.mxu0 0.0
        %1477 = vmatpush1.msra.mxu0 %v1354
        %1478 = vmatprep.subr.mxu0 0.0
        %1479 = vmatpush1.msra.mxu0 %v1355
        %1480 = vmatprep.subr.mxu0 0.0
        %1481 = vmatpush1.msra.mxu0 %v1356
        %1482 = vmatprep.subr.mxu0 0.0
        %1483 = vmatpush1.msra.mxu0 %v1357
        %1484 = vmatprep.subr.mxu0 0.0
        %1485 = vmatpush1.msra.mxu0 0.0
        %1486 = vmatprep.subr.mxu0 0.0
        %1487 = vmatpush1.msra.mxu0 0.0
        %1488 = vmatprep.subr.mxu0 0.0
        %1489 = vmatpush1.msra.mxu0 0.0
        %1490 = vmatprep.subr.mxu0 0.0
        %1491 = vmatpush1.msra.mxu0 0.0
        %1492 = vmatprep.subr.mxu0 0.0
        %1493 = vmatpush1.msra.mxu0 0.0
        %1494 = vmatprep.subr.mxu0 0.0
        %1495 = vmatpush1.msra.mxu0 0.0
        %1496 = vmatprep.subr.mxu0 0.0
        %1497 = vmatpush1.msra.mxu0 0.0
        %1498 = vmatprep.subr.mxu0 0.0
        %1499 = vmatpush1.msra.mxu0 0.0
        %1500 = vmatprep.subr.mxu0 0.0
        %1501 = vmatpush1.msra.mxu0 0.0
        %1502 = vmatprep.subr.mxu0 0.0
        %1503 = vmatpush1.msra.mxu0 0.0
        %1504 = vmatprep.subr.mxu0 0.0
        %1505 = vmatpush1.msra.mxu0 0.0
        %1506 = vmatprep.subr.mxu0 0.0
        %1507 = vmatpush1.msra.mxu0 0.0
        %1508 = vmatprep.subr.mxu0 0.0
        %1509 = vmatpush1.msra.mxu0 0.0
        %1510 = vmatprep.subr.mxu0 0.0
        %1511 = vmatpush1.msra.mxu0 0.0
        %1512 = vmatprep.subr.mxu0 0.0
        %1513 = vmatpush1.msra.mxu0 0.0
        %1514 = vmatprep.subr.mxu0 0.0
        %1515 = vmatpush1.msra.mxu0 0.0
        %1516 = vmatprep.subr.mxu0 0.0
        %1517 = vmatpush1.msra.mxu0 0.0
        %1518 = vmatprep.subr.mxu0 0.0
        %1519 = vmatpush1.msra.mxu0 0.0
        %1520 = vmatprep.subr.mxu0 0.0
        %1521 = vmatpush1.msra.mxu0 0.0
        %1522 = vmatprep.subr.mxu0 0.0
        %1523 = vmatpush1.msra.mxu0 0.0
        %1524 = vmatprep.mubr.f32.mxu0 0.0
        %1525 = vmatmul.mubr.f32.gmra.mrb[0].mxu0 %v1455
        %v1526 = vpop.f32.mrb[0].mxu0
        %v1527 = vadd.f32 %v1446, %v1526
        %v1528 = vpop.f32.mrb[0].mxu0
        %1529 = vmatprep.mubr.f32.mxu0 0.0
        %1530 = vmatmul.mubr.f32.gmra.mrb[0].mxu0 %v1458
        %v1531 = vpop.f32.mrb[0].mxu0
        %v1532 = vadd.f32 %v1451, %v1531
        %v1533 = vpop.f32.mrb[0].mxu0
        %1534 = vdwg.mxu0
        %v1535 = vld [vmem:[%s739 + $0x2] sm:$0xff]
        %v1536 = vld [vmem:[%s739 + $0xa] sm:$0x3]
        %s1537 = scalar_lea.vmem [#allocation7], 192
        %v1538 = vld [vmem:[%s1537] sm:$0xff]
        %v1539 = vld [vmem:[%s1537 + $0x8] sm:$0xff]
        %v1540 = vld [vmem:[%s1537 + $0x10] sm:$0xff]
        %v1541 = vld [vmem:[%s1537 + $0x18] sm:$0xff]
        %v1542 = vld [vmem:[%s1537 + $0x20] sm:$0xff]
        %v1543 = vld [vmem:[%s1537 + $0x28] sm:$0xff]
        %v1544 = vld [vmem:[%s1537 + $0x30] sm:$0xff]
        %v1545 = vld [vmem:[%s1537 + $0x38] sm:$0xff]
        %v1546 = vld [vmem:[%s1537 + $0x40] sm:$0xff]
        %v1547 = vld [vmem:[%s1537 + $0x48] sm:$0xff]
        %v1548 = vld [vmem:[%s1537 + $0x50] sm:$0xff]
        %v1549 = vld [vmem:[%s1537 + $0x58] sm:$0xff]
        %v1551 = vsel %vm799, %v1535, 0
        %v1554 = vsel %vm799, %v1536, 0
        %1556 = vmatprep.subr.mxu0 0.0
        %1557 = vmatpush1.msra.mxu0 %v1538
        %1558 = vmatprep.subr.mxu0 0.0
        %1559 = vmatpush1.msra.mxu0 %v1539
        %1560 = vmatprep.subr.mxu0 0.0
        %1561 = vmatpush1.msra.mxu0 %v1540
        %1562 = vmatprep.subr.mxu0 0.0
        %1563 = vmatpush1.msra.mxu0 %v1541
        %1564 = vmatprep.subr.mxu0 0.0
        %1565 = vmatpush1.msra.mxu0 %v1542
        %1566 = vmatprep.subr.mxu0 0.0
        %1567 = vmatpush1.msra.mxu0 %v1543
        %1568 = vmatprep.subr.mxu0 0.0
        %1569 = vmatpush1.msra.mxu0 %v1544
        %1570 = vmatprep.subr.mxu0 0.0
        %1571 = vmatpush1.msra.mxu0 %v1545
        %1572 = vmatprep.subr.mxu0 0.0
        %1573 = vmatpush1.msra.mxu0 %v1546
        %1574 = vmatprep.subr.mxu0 0.0
        %1575 = vmatpush1.msra.mxu0 %v1547
        %1576 = vmatprep.subr.mxu0 0.0
        %1577 = vmatpush1.msra.mxu0 %v1548
        %1578 = vmatprep.subr.mxu0 0.0
        %1579 = vmatpush1.msra.mxu0 %v1549
        %1580 = vmatprep.subr.mxu0 0.0
        %1581 = vmatpush1.msra.mxu0 0.0
        %1582 = vmatprep.subr.mxu0 0.0
        %1583 = vmatpush1.msra.mxu0 0.0
        %1584 = vmatprep.subr.mxu0 0.0
        %1585 = vmatpush1.msra.mxu0 0.0
        %1586 = vmatprep.subr.mxu0 0.0
        %1587 = vmatpush1.msra.mxu0 0.0
        %1588 = vmatprep.subr.mxu0 0.0
        %1589 = vmatpush1.msra.mxu0 0.0
        %1590 = vmatprep.subr.mxu0 0.0
        %1591 = vmatpush1.msra.mxu0 0.0
        %1592 = vmatprep.subr.mxu0 0.0
        %1593 = vmatpush1.msra.mxu0 0.0
        %1594 = vmatprep.subr.mxu0 0.0
        %1595 = vmatpush1.msra.mxu0 0.0
        %1596 = vmatprep.subr.mxu0 0.0
        %1597 = vmatpush1.msra.mxu0 0.0
        %1598 = vmatprep.subr.mxu0 0.0
        %1599 = vmatpush1.msra.mxu0 0.0
        %1600 = vmatprep.subr.mxu0 0.0
        %1601 = vmatpush1.msra.mxu0 0.0
        %1602 = vmatprep.subr.mxu0 0.0
        %1603 = vmatpush1.msra.mxu0 0.0
        %1604 = vmatprep.subr.mxu0 0.0
        %1605 = vmatpush1.msra.mxu0 0.0
        %1606 = vmatprep.subr.mxu0 0.0
        %1607 = vmatpush1.msra.mxu0 0.0
        %1608 = vmatprep.subr.mxu0 0.0
        %1609 = vmatpush1.msra.mxu0 0.0
        %1610 = vmatprep.subr.mxu0 0.0
        %1611 = vmatpush1.msra.mxu0 0.0
        %1612 = vmatprep.subr.mxu0 0.0
        %1613 = vmatpush1.msra.mxu0 0.0
        %1614 = vmatprep.subr.mxu0 0.0
        %1615 = vmatpush1.msra.mxu0 0.0
        %1616 = vmatprep.subr.mxu0 0.0
        %1617 = vmatpush1.msra.mxu0 0.0
        %1618 = vmatprep.subr.mxu0 0.0
        %1619 = vmatpush1.msra.mxu0 0.0
        %1620 = vmatprep.mubr.f32.mxu0 0.0
        %1621 = vmatmul.mubr.f32.gmra.mrb[0].mxu0 %v1551
        %v1622 = vpop.f32.mrb[0].mxu0
        %v1623 = vadd.f32 0.0, %v1622
        %v1624 = vpop.f32.mrb[0].mxu0
        %1625 = vmatprep.mubr.f32.mxu0 0.0
        %1626 = vmatmul.mubr.f32.gmra.mrb[0].mxu0 %v1554
        %v1627 = vpop.f32.mrb[0].mxu0
        %v1628 = vadd.f32 0.0, %v1627
        %v1629 = vpop.f32.mrb[0].mxu0
        %1630 = vdwg.mxu0
        %v1631 = vadd.f32 %v1527, %v1623
        %v1632 = vadd.f32 %v1532, %v1628
        %v1633 = vld [vmem:[%s10] sm:$0x1]
        %v1635 = vlaneseq
        %v1636 = vshrl.u32 %v1635, 7
        %v1637 = vsub.s32 0, %v1636
        %v1638 = vrot.slane %v1633, %v1637
        %v1640 = vadd.f32 %v1631, %v1638
        %v1641 = vadd.f32 %v1632, %v1638
        %v1642 = vmax.f32 %v1640, 0.0
        %v1643 = vmax.f32 %v1641, 0.0
        %1644 = vst [vmem:[%s754] sm:$0xff] %v1642
        %1645 = vst [vmem:[%s754 + $0x8] sm:$0x3] %v1643
        %v1646 = vld [vmem:[%s744] sm:$0xff]
        %v1647 = vld [vmem:[%s744 + $0x8] sm:$0x3f]
        %v1648 = vld [vmem:[#allocation8] sm:$0xff]
        %v1649 = vld [vmem:[#allocation8 + $0x8] sm:$0xff]
        %v1650 = vld [vmem:[#allocation8 + $0x10] sm:$0xff]
        %v1651 = vld [vmem:[#allocation8 + $0x18] sm:$0xff]
        %v1652 = vld [vmem:[#allocation8 + $0x20] sm:$0xff]
        %v1653 = vld [vmem:[#allocation8 + $0x28] sm:$0xff]
        %v1654 = vld [vmem:[#allocation8 + $0x30] sm:$0xff]
        %v1655 = vld [vmem:[#allocation8 + $0x38] sm:$0xff]
        %v1656 = vld [vmem:[#allocation8 + $0x40] sm:$0xff]
        %v1657 = vld [vmem:[#allocation8 + $0x48] sm:$0xff]
        %v1658 = vld [vmem:[#allocation8 + $0x50] sm:$0xff]
        %v1659 = vld [vmem:[#allocation8 + $0x58] sm:$0xff]
        %v1660 = vld [vmem:[#allocation8 + $0x60] sm:$0xff]
        %v1661 = vld [vmem:[#allocation8 + $0x68] sm:$0xff]
        %v1662 = vld [vmem:[#allocation8 + $0x70] sm:$0xff]
        %v1663 = vld [vmem:[#allocation8 + $0x78] sm:$0xff]
        %v1664 = vld [vmem:[%s744 + $0x1] sm:$0xff]
        %v1665 = vld [vmem:[%s744 + $0x9] sm:$0x3f]
        %s1666 = scalar_lea.vmem [#allocation8], 128
        %v1667 = vld [vmem:[%s1666] sm:$0xff]
        %v1668 = vld [vmem:[%s1666 + $0x8] sm:$0xff]
        %v1669 = vld [vmem:[%s1666 + $0x10] sm:$0xff]
        %v1670 = vld [vmem:[%s1666 + $0x18] sm:$0xff]
        %v1671 = vld [vmem:[%s1666 + $0x20] sm:$0xff]
        %v1672 = vld [vmem:[%s1666 + $0x28] sm:$0xff]
        %v1673 = vld [vmem:[%s1666 + $0x30] sm:$0xff]
        %v1674 = vld [vmem:[%s1666 + $0x38] sm:$0xff]
        %v1675 = vld [vmem:[%s1666 + $0x40] sm:$0xff]
        %v1676 = vld [vmem:[%s1666 + $0x48] sm:$0xff]
        %v1677 = vld [vmem:[%s1666 + $0x50] sm:$0xff]
        %v1678 = vld [vmem:[%s1666 + $0x58] sm:$0xff]
        %v1679 = vld [vmem:[%s1666 + $0x60] sm:$0xff]
        %v1680 = vld [vmem:[%s1666 + $0x68] sm:$0xff]
        %v1681 = vld [vmem:[%s1666 + $0x70] sm:$0xff]
        %v1682 = vld [vmem:[%s1666 + $0x78] sm:$0xff]
        %1683 = vmatprep.subr.mxu0 0.0
        %1684 = vmatpush1.msra.mxu0 %v1667
        %1685 = vmatprep.subr.mxu0 0.0
        %1686 = vmatpush1.msra.mxu0 %v1668
        %1687 = vmatprep.subr.mxu0 0.0
        %1688 = vmatpush1.msra.mxu0 %v1669
        %1689 = vmatprep.subr.mxu0 0.0
        %1690 = vmatpush1.msra.mxu0 %v1670
        %1691 = vmatprep.subr.mxu0 0.0
        %1692 = vmatpush1.msra.mxu0 %v1671
        %1693 = vmatprep.subr.mxu0 0.0
        %1694 = vmatpush1.msra.mxu0 %v1672
        %1695 = vmatprep.subr.mxu0 0.0
        %1696 = vmatpush1.msra.mxu0 %v1673
        %1697 = vmatprep.subr.mxu0 0.0
        %1698 = vmatpush1.msra.mxu0 %v1674
        %1699 = vmatprep.subr.mxu0 0.0
        %1700 = vmatpush1.msra.mxu0 %v1675
        %1701 = vmatprep.subr.mxu0 0.0
        %1702 = vmatpush1.msra.mxu0 %v1676
        %1703 = vmatprep.subr.mxu0 0.0
        %1704 = vmatpush1.msra.mxu0 %v1677
        %1705 = vmatprep.subr.mxu0 0.0
        %1706 = vmatpush1.msra.mxu0 %v1678
        %1707 = vmatprep.subr.mxu0 0.0
        %1708 = vmatpush1.msra.mxu0 %v1679
        %1709 = vmatprep.subr.mxu0 0.0
        %1710 = vmatpush1.msra.mxu0 %v1680
        %1711 = vmatprep.subr.mxu0 0.0
        %1712 = vmatpush1.msra.mxu0 %v1681
        %1713 = vmatprep.subr.mxu0 0.0
        %1714 = vmatpush1.msra.mxu0 %v1682
        %1715 = vmatprep.subr.mxu0 0.0
        %1716 = vmatpush1.msra.mxu0 0.0
        %1717 = vmatprep.subr.mxu0 0.0
        %1718 = vmatpush1.msra.mxu0 0.0
        %1719 = vmatprep.subr.mxu0 0.0
        %1720 = vmatpush1.msra.mxu0 0.0
        %1721 = vmatprep.subr.mxu0 0.0
        %1722 = vmatpush1.msra.mxu0 0.0
        %1723 = vmatprep.subr.mxu0 0.0
        %1724 = vmatpush1.msra.mxu0 0.0
        %1725 = vmatprep.subr.mxu0 0.0
        %1726 = vmatpush1.msra.mxu0 0.0
        %1727 = vmatprep.subr.mxu0 0.0
        %1728 = vmatpush1.msra.mxu0 0.0
        %1729 = vmatprep.subr.mxu0 0.0
        %1730 = vmatpush1.msra.mxu0 0.0
        %1731 = vmatprep.subr.mxu0 0.0
        %1732 = vmatpush1.msra.mxu0 0.0
        %1733 = vmatprep.subr.mxu0 0.0
        %1734 = vmatpush1.msra.mxu0 0.0
        %1735 = vmatprep.subr.mxu0 0.0
        %1736 = vmatpush1.msra.mxu0 0.0
        %1737 = vmatprep.subr.mxu0 0.0
        %1738 = vmatpush1.msra.mxu0 0.0
        %1739 = vmatprep.subr.mxu0 0.0
        %1740 = vmatpush1.msra.mxu0 0.0
        %1741 = vmatprep.subr.mxu0 0.0
        %1742 = vmatpush1.msra.mxu0 0.0
        %1743 = vmatprep.subr.mxu0 0.0
        %1744 = vmatpush1.msra.mxu0 0.0
        %1745 = vmatprep.subr.mxu0 0.0
        %1746 = vmatpush1.msra.mxu0 0.0
        %1747 = vmatprep.mubr.f32.mxu0 0.0
        %1748 = vmatmul.mubr.f32.gmra.mrb[0].mxu0 %v1664
        %v1749 = vpop.f32.mrb[0].mxu0
        %v1750 = vadd.f32 0.0, %v1749
        %v1751 = vpop.f32.mrb[0].mxu0
        %1752 = vmatprep.mubr.f32.mxu0 0.0
        %1753 = vmatmul.mubr.f32.gmra.mrb[0].mxu0 %v1665
        %v1754 = vpop.f32.mrb[0].mxu0
        %v1755 = vadd.f32 0.0, %v1754
        %v1756 = vpop.f32.mrb[0].mxu0
        %1757 = vdwg.mxu0
        %1758 = vmatprep.subr.mxu0 0.0
        %1759 = vmatpush1.msra.mxu0 %v1648
        %1760 = vmatprep.subr.mxu0 0.0
        %1761 = vmatpush1.msra.mxu0 %v1649
        %1762 = vmatprep.subr.mxu0 0.0
        %1763 = vmatpush1.msra.mxu0 %v1650
        %1764 = vmatprep.subr.mxu0 0.0
        %1765 = vmatpush1.msra.mxu0 %v1651
        %1766 = vmatprep.subr.mxu0 0.0
        %1767 = vmatpush1.msra.mxu0 %v1652
        %1768 = vmatprep.subr.mxu0 0.0
        %1769 = vmatpush1.msra.mxu0 %v1653
        %1770 = vmatprep.subr.mxu0 0.0
        %1771 = vmatpush1.msra.mxu0 %v1654
        %1772 = vmatprep.subr.mxu0 0.0
        %1773 = vmatpush1.msra.mxu0 %v1655
        %1774 = vmatprep.subr.mxu0 0.0
        %1775 = vmatpush1.msra.mxu0 %v1656
        %1776 = vmatprep.subr.mxu0 0.0
        %1777 = vmatpush1.msra.mxu0 %v1657
        %1778 = vmatprep.subr.mxu0 0.0
        %1779 = vmatpush1.msra.mxu0 %v1658
        %1780 = vmatprep.subr.mxu0 0.0
        %1781 = vmatpush1.msra.mxu0 %v1659
        %1782 = vmatprep.subr.mxu0 0.0
        %1783 = vmatpush1.msra.mxu0 %v1660
        %1784 = vmatprep.subr.mxu0 0.0
        %1785 = vmatpush1.msra.mxu0 %v1661
        %1786 = vmatprep.subr.mxu0 0.0
        %1787 = vmatpush1.msra.mxu0 %v1662
        %1788 = vmatprep.subr.mxu0 0.0
        %1789 = vmatpush1.msra.mxu0 %v1663
        %1790 = vmatprep.subr.mxu0 0.0
        %1791 = vmatpush1.msra.mxu0 0.0
        %1792 = vmatprep.subr.mxu0 0.0
        %1793 = vmatpush1.msra.mxu0 0.0
        %1794 = vmatprep.subr.mxu0 0.0
        %1795 = vmatpush1.msra.mxu0 0.0
        %1796 = vmatprep.subr.mxu0 0.0
        %1797 = vmatpush1.msra.mxu0 0.0
        %1798 = vmatprep.subr.mxu0 0.0
        %1799 = vmatpush1.msra.mxu0 0.0
        %1800 = vmatprep.subr.mxu0 0.0
        %1801 = vmatpush1.msra.mxu0 0.0
        %1802 = vmatprep.subr.mxu0 0.0
        %1803 = vmatpush1.msra.mxu0 0.0
        %1804 = vmatprep.subr.mxu0 0.0
        %1805 = vmatpush1.msra.mxu0 0.0
        %1806 = vmatprep.subr.mxu0 0.0
        %1807 = vmatpush1.msra.mxu0 0.0
        %1808 = vmatprep.subr.mxu0 0.0
        %1809 = vmatpush1.msra.mxu0 0.0
        %1810 = vmatprep.subr.mxu0 0.0
        %1811 = vmatpush1.msra.mxu0 0.0
        %1812 = vmatprep.subr.mxu0 0.0
        %1813 = vmatpush1.msra.mxu0 0.0
        %1814 = vmatprep.subr.mxu0 0.0
        %1815 = vmatpush1.msra.mxu0 0.0
        %1816 = vmatprep.subr.mxu0 0.0
        %1817 = vmatpush1.msra.mxu0 0.0
        %1818 = vmatprep.subr.mxu0 0.0
        %1819 = vmatpush1.msra.mxu0 0.0
        %1820 = vmatprep.subr.mxu0 0.0
        %1821 = vmatpush1.msra.mxu0 0.0
        %1822 = vmatprep.mubr.f32.mxu0 0.0
        %1823 = vmatmul.mubr.f32.gmra.mrb[0].mxu0 %v1646
        %v1824 = vpop.f32.mrb[0].mxu0
        %v1825 = vadd.f32 %v1750, %v1824
        %v1826 = vpop.f32.mrb[0].mxu0
        %1827 = vmatprep.mubr.f32.mxu0 0.0
        %1828 = vmatmul.mubr.f32.gmra.mrb[0].mxu0 %v1647
        %v1829 = vpop.f32.mrb[0].mxu0
        %v1830 = vadd.f32 %v1755, %v1829
        %v1831 = vpop.f32.mrb[0].mxu0
        %1832 = vdwg.mxu0
        %v1833 = vld [vmem:[%s744 + $0x2] sm:$0xff]
        %v1834 = vld [vmem:[%s744 + $0xa] sm:$0x3f]
        %s1835 = scalar_lea.vmem [#allocation8], 256
        %v1836 = vld [vmem:[%s1835] sm:$0xff]
        %v1837 = vld [vmem:[%s1835 + $0x8] sm:$0xff]
        %v1838 = vld [vmem:[%s1835 + $0x10] sm:$0xff]
        %v1839 = vld [vmem:[%s1835 + $0x18] sm:$0xff]
        %v1840 = vld [vmem:[%s1835 + $0x20] sm:$0xff]
        %v1841 = vld [vmem:[%s1835 + $0x28] sm:$0xff]
        %v1842 = vld [vmem:[%s1835 + $0x30] sm:$0xff]
        %v1843 = vld [vmem:[%s1835 + $0x38] sm:$0xff]
        %v1844 = vld [vmem:[%s1835 + $0x40] sm:$0xff]
        %v1845 = vld [vmem:[%s1835 + $0x48] sm:$0xff]
        %v1846 = vld [vmem:[%s1835 + $0x50] sm:$0xff]
        %v1847 = vld [vmem:[%s1835 + $0x58] sm:$0xff]
        %v1848 = vld [vmem:[%s1835 + $0x60] sm:$0xff]
        %v1849 = vld [vmem:[%s1835 + $0x68] sm:$0xff]
        %v1850 = vld [vmem:[%s1835 + $0x70] sm:$0xff]
        %v1851 = vld [vmem:[%s1835 + $0x78] sm:$0xff]
        %1852 = vmatprep.subr.mxu0 0.0
        %1853 = vmatpush1.msra.mxu0 %v1836
        %1854 = vmatprep.subr.mxu0 0.0
        %1855 = vmatpush1.msra.mxu0 %v1837
        %1856 = vmatprep.subr.mxu0 0.0
        %1857 = vmatpush1.msra.mxu0 %v1838
        %1858 = vmatprep.subr.mxu0 0.0
        %1859 = vmatpush1.msra.mxu0 %v1839
        %1860 = vmatprep.subr.mxu0 0.0
        %1861 = vmatpush1.msra.mxu0 %v1840
        %1862 = vmatprep.subr.mxu0 0.0
        %1863 = vmatpush1.msra.mxu0 %v1841
        %1864 = vmatprep.subr.mxu0 0.0
        %1865 = vmatpush1.msra.mxu0 %v1842
        %1866 = vmatprep.subr.mxu0 0.0
        %1867 = vmatpush1.msra.mxu0 %v1843
        %1868 = vmatprep.subr.mxu0 0.0
        %1869 = vmatpush1.msra.mxu0 %v1844
        %1870 = vmatprep.subr.mxu0 0.0
        %1871 = vmatpush1.msra.mxu0 %v1845
        %1872 = vmatprep.subr.mxu0 0.0
        %1873 = vmatpush1.msra.mxu0 %v1846
        %1874 = vmatprep.subr.mxu0 0.0
        %1875 = vmatpush1.msra.mxu0 %v1847
        %1876 = vmatprep.subr.mxu0 0.0
        %1877 = vmatpush1.msra.mxu0 %v1848
        %1878 = vmatprep.subr.mxu0 0.0
        %1879 = vmatpush1.msra.mxu0 %v1849
        %1880 = vmatprep.subr.mxu0 0.0
        %1881 = vmatpush1.msra.mxu0 %v1850
        %1882 = vmatprep.subr.mxu0 0.0
        %1883 = vmatpush1.msra.mxu0 %v1851
        %1884 = vmatprep.subr.mxu0 0.0
        %1885 = vmatpush1.msra.mxu0 0.0
        %1886 = vmatprep.subr.mxu0 0.0
        %1887 = vmatpush1.msra.mxu0 0.0
        %1888 = vmatprep.subr.mxu0 0.0
        %1889 = vmatpush1.msra.mxu0 0.0
        %1890 = vmatprep.subr.mxu0 0.0
        %1891 = vmatpush1.msra.mxu0 0.0
        %1892 = vmatprep.subr.mxu0 0.0
        %1893 = vmatpush1.msra.mxu0 0.0
        %1894 = vmatprep.subr.mxu0 0.0
        %1895 = vmatpush1.msra.mxu0 0.0
        %1896 = vmatprep.subr.mxu0 0.0
        %1897 = vmatpush1.msra.mxu0 0.0
        %1898 = vmatprep.subr.mxu0 0.0
        %1899 = vmatpush1.msra.mxu0 0.0
        %1900 = vmatprep.subr.mxu0 0.0
        %1901 = vmatpush1.msra.mxu0 0.0
        %1902 = vmatprep.subr.mxu0 0.0
        %1903 = vmatpush1.msra.mxu0 0.0
        %1904 = vmatprep.subr.mxu0 0.0
        %1905 = vmatpush1.msra.mxu0 0.0
        %1906 = vmatprep.subr.mxu0 0.0
        %1907 = vmatpush1.msra.mxu0 0.0
        %1908 = vmatprep.subr.mxu0 0.0
        %1909 = vmatpush1.msra.mxu0 0.0
        %1910 = vmatprep.subr.mxu0 0.0
        %1911 = vmatpush1.msra.mxu0 0.0
        %1912 = vmatprep.subr.mxu0 0.0
        %1913 = vmatpush1.msra.mxu0 0.0
        %1914 = vmatprep.subr.mxu0 0.0
        %1915 = vmatpush1.msra.mxu0 0.0
        %1916 = vmatprep.mubr.f32.mxu0 0.0
        %1917 = vmatmul.mubr.f32.gmra.mrb[0].mxu0 %v1833
        %v1918 = vpop.f32.mrb[0].mxu0
        %v1919 = vadd.f32 0.0, %v1918
        %v1920 = vpop.f32.mrb[0].mxu0
        %1921 = vmatprep.mubr.f32.mxu0 0.0
        %1922 = vmatmul.mubr.f32.gmra.mrb[0].mxu0 %v1834
        %v1923 = vpop.f32.mrb[0].mxu0
        %v1924 = vadd.f32 0.0, %v1923
        %v1925 = vpop.f32.mrb[0].mxu0
        %1926 = vdwg.mxu0
        %v1927 = vadd.f32 %v1825, %v1919
        %v1928 = vadd.f32 %v1830, %v1924
        %v1929 = vld [vmem:[%s11] sm:$0x1]
        %v1931 = vlaneseq
        %v1932 = vshrl.u32 %v1931, 7
        %v1933 = vsub.s32 0, %v1932
        %v1934 = vrot.slane %v1929, %v1933
        %v1936 = vadd.f32 %v1927, %v1934
        %v1937 = vadd.f32 %v1928, %v1934
        %v1938 = vmax.f32 %v1936, 0.0
        %v1939 = vmax.f32 %v1937, 0.0
        %1940 = vst [vmem:[%s759] sm:$0xff] %v1938
        %1941 = vst [vmem:[%s759 + $0x8] sm:$0x3f] %v1939
        %v1942 = vld [vmem:[%s744] sm:$0xff]
        %v1943 = vld [vmem:[%s744 + $0x8] sm:$0xf]
        %v1944 = vld [vmem:[#allocation10] sm:$0xff]
        %v1945 = vld [vmem:[#allocation10 + $0x8] sm:$0xff]
        %v1946 = vld [vmem:[#allocation10 + $0x10] sm:$0xff]
        %v1947 = vld [vmem:[#allocation10 + $0x18] sm:$0xff]
        %v1948 = vld [vmem:[#allocation10 + $0x20] sm:$0xff]
        %v1949 = vld [vmem:[#allocation10 + $0x28] sm:$0xff]
        %v1950 = vld [vmem:[#allocation10 + $0x30] sm:$0xff]
        %v1951 = vld [vmem:[#allocation10 + $0x38] sm:$0xff]
        %v1952 = vld [vmem:[#allocation10 + $0x40] sm:$0xff]
        %v1953 = vld [vmem:[#allocation10 + $0x48] sm:$0xff]
        %v1954 = vld [vmem:[#allocation10 + $0x50] sm:$0xff]
        %v1955 = vld [vmem:[#allocation10 + $0x58] sm:$0xff]
        %v1956 = vld [vmem:[#allocation10 + $0x60] sm:$0xff]
        %v1957 = vld [vmem:[#allocation10 + $0x68] sm:$0xff]
        %v1958 = vld [vmem:[#allocation10 + $0x70] sm:$0xff]
        %v1959 = vld [vmem:[#allocation10 + $0x78] sm:$0xff]
        %v1960 = vld [vmem:[%s744 + $0x2] sm:$0xff]
        %v1961 = vld [vmem:[%s744 + $0xa] sm:$0xf]
        %s1962 = scalar_lea.vmem [#allocation10], 128
        %v1963 = vld [vmem:[%s1962] sm:$0xff]
        %v1964 = vld [vmem:[%s1962 + $0x8] sm:$0xff]
        %v1965 = vld [vmem:[%s1962 + $0x10] sm:$0xff]
        %v1966 = vld [vmem:[%s1962 + $0x18] sm:$0xff]
        %v1967 = vld [vmem:[%s1962 + $0x20] sm:$0xff]
        %v1968 = vld [vmem:[%s1962 + $0x28] sm:$0xff]
        %v1969 = vld [vmem:[%s1962 + $0x30] sm:$0xff]
        %v1970 = vld [vmem:[%s1962 + $0x38] sm:$0xff]
        %v1971 = vld [vmem:[%s1962 + $0x40] sm:$0xff]
        %v1972 = vld [vmem:[%s1962 + $0x48] sm:$0xff]
        %v1973 = vld [vmem:[%s1962 + $0x50] sm:$0xff]
        %v1974 = vld [vmem:[%s1962 + $0x58] sm:$0xff]
        %v1975 = vld [vmem:[%s1962 + $0x60] sm:$0xff]
        %v1976 = vld [vmem:[%s1962 + $0x68] sm:$0xff]
        %v1977 = vld [vmem:[%s1962 + $0x70] sm:$0xff]
        %v1978 = vld [vmem:[%s1962 + $0x78] sm:$0xff]
        %1979 = vmatprep.subr.mxu0 0.0
        %1980 = vmatpush1.msra.mxu0 %v1963
        %1981 = vmatprep.subr.mxu0 0.0
        %1982 = vmatpush1.msra.mxu0 %v1964
        %1983 = vmatprep.subr.mxu0 0.0
        %1984 = vmatpush1.msra.mxu0 %v1965
        %1985 = vmatprep.subr.mxu0 0.0
        %1986 = vmatpush1.msra.mxu0 %v1966
        %1987 = vmatprep.subr.mxu0 0.0
        %1988 = vmatpush1.msra.mxu0 %v1967
        %1989 = vmatprep.subr.mxu0 0.0
        %1990 = vmatpush1.msra.mxu0 %v1968
        %1991 = vmatprep.subr.mxu0 0.0
        %1992 = vmatpush1.msra.mxu0 %v1969
        %1993 = vmatprep.subr.mxu0 0.0
        %1994 = vmatpush1.msra.mxu0 %v1970
        %1995 = vmatprep.subr.mxu0 0.0
        %1996 = vmatpush1.msra.mxu0 %v1971
        %1997 = vmatprep.subr.mxu0 0.0
        %1998 = vmatpush1.msra.mxu0 %v1972
        %1999 = vmatprep.subr.mxu0 0.0
        %2000 = vmatpush1.msra.mxu0 %v1973
        %2001 = vmatprep.subr.mxu0 0.0
        %2002 = vmatpush1.msra.mxu0 %v1974
        %2003 = vmatprep.subr.mxu0 0.0
        %2004 = vmatpush1.msra.mxu0 %v1975
        %2005 = vmatprep.subr.mxu0 0.0
        %2006 = vmatpush1.msra.mxu0 %v1976
        %2007 = vmatprep.subr.mxu0 0.0
        %2008 = vmatpush1.msra.mxu0 %v1977
        %2009 = vmatprep.subr.mxu0 0.0
        %2010 = vmatpush1.msra.mxu0 %v1978
        %2011 = vmatprep.subr.mxu0 0.0
        %2012 = vmatpush1.msra.mxu0 0.0
        %2013 = vmatprep.subr.mxu0 0.0
        %2014 = vmatpush1.msra.mxu0 0.0
        %2015 = vmatprep.subr.mxu0 0.0
        %2016 = vmatpush1.msra.mxu0 0.0
        %2017 = vmatprep.subr.mxu0 0.0
        %2018 = vmatpush1.msra.mxu0 0.0
        %2019 = vmatprep.subr.mxu0 0.0
        %2020 = vmatpush1.msra.mxu0 0.0
        %2021 = vmatprep.subr.mxu0 0.0
        %2022 = vmatpush1.msra.mxu0 0.0
        %2023 = vmatprep.subr.mxu0 0.0
        %2024 = vmatpush1.msra.mxu0 0.0
        %2025 = vmatprep.subr.mxu0 0.0
        %2026 = vmatpush1.msra.mxu0 0.0
        %2027 = vmatprep.subr.mxu0 0.0
        %2028 = vmatpush1.msra.mxu0 0.0
        %2029 = vmatprep.subr.mxu0 0.0
        %2030 = vmatpush1.msra.mxu0 0.0
        %2031 = vmatprep.subr.mxu0 0.0
        %2032 = vmatpush1.msra.mxu0 0.0
        %2033 = vmatprep.subr.mxu0 0.0
        %2034 = vmatpush1.msra.mxu0 0.0
        %2035 = vmatprep.subr.mxu0 0.0
        %2036 = vmatpush1.msra.mxu0 0.0
        %2037 = vmatprep.subr.mxu0 0.0
        %2038 = vmatpush1.msra.mxu0 0.0
        %2039 = vmatprep.subr.mxu0 0.0
        %2040 = vmatpush1.msra.mxu0 0.0
        %2041 = vmatprep.subr.mxu0 0.0
        %2042 = vmatpush1.msra.mxu0 0.0
        %2043 = vmatprep.mubr.f32.mxu0 0.0
        %2044 = vmatmul.mubr.f32.gmra.mrb[0].mxu0 %v1960
        %v2045 = vpop.f32.mrb[0].mxu0
        %v2046 = vadd.f32 0.0, %v2045
        %v2047 = vpop.f32.mrb[0].mxu0
        %2048 = vmatprep.mubr.f32.mxu0 0.0
        %2049 = vmatmul.mubr.f32.gmra.mrb[0].mxu0 %v1961
        %v2050 = vpop.f32.mrb[0].mxu0
        %v2051 = vadd.f32 0.0, %v2050
        %v2052 = vpop.f32.mrb[0].mxu0
        %2053 = vdwg.mxu0
        %2054 = vmatprep.subr.mxu0 0.0
        %2055 = vmatpush1.msra.mxu0 %v1944
        %2056 = vmatprep.subr.mxu0 0.0
        %2057 = vmatpush1.msra.mxu0 %v1945
        %2058 = vmatprep.subr.mxu0 0.0
        %2059 = vmatpush1.msra.mxu0 %v1946
        %2060 = vmatprep.subr.mxu0 0.0
        %2061 = vmatpush1.msra.mxu0 %v1947
        %2062 = vmatprep.subr.mxu0 0.0
        %2063 = vmatpush1.msra.mxu0 %v1948
        %2064 = vmatprep.subr.mxu0 0.0
        %2065 = vmatpush1.msra.mxu0 %v1949
        %2066 = vmatprep.subr.mxu0 0.0
        %2067 = vmatpush1.msra.mxu0 %v1950
        %2068 = vmatprep.subr.mxu0 0.0
        %2069 = vmatpush1.msra.mxu0 %v1951
        %2070 = vmatprep.subr.mxu0 0.0
        %2071 = vmatpush1.msra.mxu0 %v1952
        %2072 = vmatprep.subr.mxu0 0.0
        %2073 = vmatpush1.msra.mxu0 %v1953
        %2074 = vmatprep.subr.mxu0 0.0
        %2075 = vmatpush1.msra.mxu0 %v1954
        %2076 = vmatprep.subr.mxu0 0.0
        %2077 = vmatpush1.msra.mxu0 %v1955
        %2078 = vmatprep.subr.mxu0 0.0
        %2079 = vmatpush1.msra.mxu0 %v1956
        %2080 = vmatprep.subr.mxu0 0.0
        %2081 = vmatpush1.msra.mxu0 %v1957
        %2082 = vmatprep.subr.mxu0 0.0
        %2083 = vmatpush1.msra.mxu0 %v1958
        %2084 = vmatprep.subr.mxu0 0.0
        %2085 = vmatpush1.msra.mxu0 %v1959
        %2086 = vmatprep.subr.mxu0 0.0
        %2087 = vmatpush1.msra.mxu0 0.0
        %2088 = vmatprep.subr.mxu0 0.0
        %2089 = vmatpush1.msra.mxu0 0.0
        %2090 = vmatprep.subr.mxu0 0.0
        %2091 = vmatpush1.msra.mxu0 0.0
        %2092 = vmatprep.subr.mxu0 0.0
        %2093 = vmatpush1.msra.mxu0 0.0
        %2094 = vmatprep.subr.mxu0 0.0
        %2095 = vmatpush1.msra.mxu0 0.0
        %2096 = vmatprep.subr.mxu0 0.0
        %2097 = vmatpush1.msra.mxu0 0.0
        %2098 = vmatprep.subr.mxu0 0.0
        %2099 = vmatpush1.msra.mxu0 0.0
        %2100 = vmatprep.subr.mxu0 0.0
        %2101 = vmatpush1.msra.mxu0 0.0
        %2102 = vmatprep.subr.mxu0 0.0
        %2103 = vmatpush1.msra.mxu0 0.0
        %2104 = vmatprep.subr.mxu0 0.0
        %2105 = vmatpush1.msra.mxu0 0.0
        %2106 = vmatprep.subr.mxu0 0.0
        %2107 = vmatpush1.msra.mxu0 0.0
        %2108 = vmatprep.subr.mxu0 0.0
        %2109 = vmatpush1.msra.mxu0 0.0
        %2110 = vmatprep.subr.mxu0 0.0
        %2111 = vmatpush1.msra.mxu0 0.0
        %2112 = vmatprep.subr.mxu0 0.0
        %2113 = vmatpush1.msra.mxu0 0.0
        %2114 = vmatprep.subr.mxu0 0.0
        %2115 = vmatpush1.msra.mxu0 0.0
        %2116 = vmatprep.subr.mxu0 0.0
        %2117 = vmatpush1.msra.mxu0 0.0
        %2118 = vmatprep.mubr.f32.mxu0 0.0
        %2119 = vmatmul.mubr.f32.gmra.mrb[0].mxu0 %v1942
        %v2120 = vpop.f32.mrb[0].mxu0
        %v2121 = vadd.f32 %v2046, %v2120
        %v2122 = vpop.f32.mrb[0].mxu0
        %2123 = vmatprep.mubr.f32.mxu0 0.0
        %2124 = vmatmul.mubr.f32.gmra.mrb[0].mxu0 %v1943
        %v2125 = vpop.f32.mrb[0].mxu0
        %v2126 = vadd.f32 %v2051, %v2125
        %v2127 = vpop.f32.mrb[0].mxu0
        %2128 = vdwg.mxu0
        %v2129 = vld [vmem:[%s744 + $0x4] sm:$0xff]
        %v2130 = vld [vmem:[%s744 + $0xc] sm:$0xf]
        %s2131 = scalar_lea.vmem [#allocation10], 256
        %v2132 = vld [vmem:[%s2131] sm:$0xff]
        %v2133 = vld [vmem:[%s2131 + $0x8] sm:$0xff]
        %v2134 = vld [vmem:[%s2131 + $0x10] sm:$0xff]
        %v2135 = vld [vmem:[%s2131 + $0x18] sm:$0xff]
        %v2136 = vld [vmem:[%s2131 + $0x20] sm:$0xff]
        %v2137 = vld [vmem:[%s2131 + $0x28] sm:$0xff]
        %v2138 = vld [vmem:[%s2131 + $0x30] sm:$0xff]
        %v2139 = vld [vmem:[%s2131 + $0x38] sm:$0xff]
        %v2140 = vld [vmem:[%s2131 + $0x40] sm:$0xff]
        %v2141 = vld [vmem:[%s2131 + $0x48] sm:$0xff]
        %v2142 = vld [vmem:[%s2131 + $0x50] sm:$0xff]
        %v2143 = vld [vmem:[%s2131 + $0x58] sm:$0xff]
        %v2144 = vld [vmem:[%s2131 + $0x60] sm:$0xff]
        %v2145 = vld [vmem:[%s2131 + $0x68] sm:$0xff]
        %v2146 = vld [vmem:[%s2131 + $0x70] sm:$0xff]
        %v2147 = vld [vmem:[%s2131 + $0x78] sm:$0xff]
        %2148 = vmatprep.subr.mxu0 0.0
        %2149 = vmatpush1.msra.mxu0 %v2132
        %2150 = vmatprep.subr.mxu0 0.0
        %2151 = vmatpush1.msra.mxu0 %v2133
        %2152 = vmatprep.subr.mxu0 0.0
        %2153 = vmatpush1.msra.mxu0 %v2134
        %2154 = vmatprep.subr.mxu0 0.0
        %2155 = vmatpush1.msra.mxu0 %v2135
        %2156 = vmatprep.subr.mxu0 0.0
        %2157 = vmatpush1.msra.mxu0 %v2136
        %2158 = vmatprep.subr.mxu0 0.0
        %2159 = vmatpush1.msra.mxu0 %v2137
        %2160 = vmatprep.subr.mxu0 0.0
        %2161 = vmatpush1.msra.mxu0 %v2138
        %2162 = vmatprep.subr.mxu0 0.0
        %2163 = vmatpush1.msra.mxu0 %v2139
        %2164 = vmatprep.subr.mxu0 0.0
        %2165 = vmatpush1.msra.mxu0 %v2140
        %2166 = vmatprep.subr.mxu0 0.0
        %2167 = vmatpush1.msra.mxu0 %v2141
        %2168 = vmatprep.subr.mxu0 0.0
        %2169 = vmatpush1.msra.mxu0 %v2142
        %2170 = vmatprep.subr.mxu0 0.0
        %2171 = vmatpush1.msra.mxu0 %v2143
        %2172 = vmatprep.subr.mxu0 0.0
        %2173 = vmatpush1.msra.mxu0 %v2144
        %2174 = vmatprep.subr.mxu0 0.0
        %2175 = vmatpush1.msra.mxu0 %v2145
        %2176 = vmatprep.subr.mxu0 0.0
        %2177 = vmatpush1.msra.mxu0 %v2146
        %2178 = vmatprep.subr.mxu0 0.0
        %2179 = vmatpush1.msra.mxu0 %v2147
        %2180 = vmatprep.subr.mxu0 0.0
        %2181 = vmatpush1.msra.mxu0 0.0
        %2182 = vmatprep.subr.mxu0 0.0
        %2183 = vmatpush1.msra.mxu0 0.0
        %2184 = vmatprep.subr.mxu0 0.0
        %2185 = vmatpush1.msra.mxu0 0.0
        %2186 = vmatprep.subr.mxu0 0.0
        %2187 = vmatpush1.msra.mxu0 0.0
        %2188 = vmatprep.subr.mxu0 0.0
        %2189 = vmatpush1.msra.mxu0 0.0
        %2190 = vmatprep.subr.mxu0 0.0
        %2191 = vmatpush1.msra.mxu0 0.0
        %2192 = vmatprep.subr.mxu0 0.0
        %2193 = vmatpush1.msra.mxu0 0.0
        %2194 = vmatprep.subr.mxu0 0.0
        %2195 = vmatpush1.msra.mxu0 0.0
        %2196 = vmatprep.subr.mxu0 0.0
        %2197 = vmatpush1.msra.mxu0 0.0
        %2198 = vmatprep.subr.mxu0 0.0
        %2199 = vmatpush1.msra.mxu0 0.0
        %2200 = vmatprep.subr.mxu0 0.0
        %2201 = vmatpush1.msra.mxu0 0.0
        %2202 = vmatprep.subr.mxu0 0.0
        %2203 = vmatpush1.msra.mxu0 0.0
        %2204 = vmatprep.subr.mxu0 0.0
        %2205 = vmatpush1.msra.mxu0 0.0
        %2206 = vmatprep.subr.mxu0 0.0
        %2207 = vmatpush1.msra.mxu0 0.0
        %2208 = vmatprep.subr.mxu0 0.0
        %2209 = vmatpush1.msra.mxu0 0.0
        %2210 = vmatprep.subr.mxu0 0.0
        %2211 = vmatpush1.msra.mxu0 0.0
        %2212 = vmatprep.mubr.f32.mxu0 0.0
        %2213 = vmatmul.mubr.f32.gmra.mrb[0].mxu0 %v2129
        %v2214 = vpop.f32.mrb[0].mxu0
        %v2215 = vadd.f32 0.0, %v2214
        %v2216 = vpop.f32.mrb[0].mxu0
        %2217 = vmatprep.mubr.f32.mxu0 0.0
        %2218 = vmatmul.mubr.f32.gmra.mrb[0].mxu0 %v2130
        %v2219 = vpop.f32.mrb[0].mxu0
        %v2220 = vadd.f32 0.0, %v2219
        %v2221 = vpop.f32.mrb[0].mxu0
        %2222 = vdwg.mxu0
        %v2223 = vadd.f32 %v2121, %v2215
        %v2224 = vadd.f32 %v2126, %v2220
        %v2225 = vld [vmem:[%s12] sm:$0x1]
        %v2227 = vlaneseq
        %v2228 = vshrl.u32 %v2227, 7
        %v2229 = vsub.s32 0, %v2228
        %v2230 = vrot.slane %v2225, %v2229
        %v2232 = vadd.f32 %v2223, %v2230
        %v2233 = vadd.f32 %v2224, %v2230
        %v2234 = vmax.f32 %v2232, 0.0
        %v2235 = vmax.f32 %v2233, 0.0
        %2236 = vst [vmem:[%s764] sm:$0xff] %v2234
        %2237 = vst [vmem:[%s764 + $0x8] sm:$0xf] %v2235
        %v2238 = vld [vmem:[%s744] sm:$0xff]
        %v2239 = vld [vmem:[%s744 + $0x8] sm:$0x3f]
        %v2240 = vld [vmem:[#allocation11] sm:$0xff]
        %v2241 = vld [vmem:[#allocation11 + $0x8] sm:$0xff]
        %v2242 = vld [vmem:[#allocation11 + $0x10] sm:$0xff]
        %v2243 = vld [vmem:[#allocation11 + $0x18] sm:$0xff]
        %v2244 = vld [vmem:[#allocation11 + $0x20] sm:$0xff]
        %v2245 = vld [vmem:[#allocation11 + $0x28] sm:$0xff]
        %v2246 = vld [vmem:[#allocation11 + $0x30] sm:$0xff]
        %v2247 = vld [vmem:[#allocation11 + $0x38] sm:$0xff]
        %v2248 = vld [vmem:[#allocation11 + $0x40] sm:$0xff]
        %v2249 = vld [vmem:[#allocation11 + $0x48] sm:$0xff]
        %v2250 = vld [vmem:[#allocation11 + $0x50] sm:$0xff]
        %v2251 = vld [vmem:[#allocation11 + $0x58] sm:$0xff]
        %v2252 = vld [vmem:[#allocation11 + $0x60] sm:$0xff]
        %v2253 = vld [vmem:[#allocation11 + $0x68] sm:$0xff]
        %v2254 = vld [vmem:[#allocation11 + $0x70] sm:$0xff]
        %v2255 = vld [vmem:[#allocation11 + $0x78] sm:$0xff]
        %v2256 = vld [vmem:[%s744 + $0x1] sm:$0xff]
        %v2257 = vld [vmem:[%s744 + $0x9] sm:$0x3f]
        %s2258 = scalar_lea.vmem [#allocation11], 128
        %v2259 = vld [vmem:[%s2258] sm:$0xff]
        %v2260 = vld [vmem:[%s2258 + $0x8] sm:$0xff]
        %v2261 = vld [vmem:[%s2258 + $0x10] sm:$0xff]
        %v2262 = vld [vmem:[%s2258 + $0x18] sm:$0xff]
        %v2263 = vld [vmem:[%s2258 + $0x20] sm:$0xff]
        %v2264 = vld [vmem:[%s2258 + $0x28] sm:$0xff]
        %v2265 = vld [vmem:[%s2258 + $0x30] sm:$0xff]
        %v2266 = vld [vmem:[%s2258 + $0x38] sm:$0xff]
        %v2267 = vld [vmem:[%s2258 + $0x40] sm:$0xff]
        %v2268 = vld [vmem:[%s2258 + $0x48] sm:$0xff]
        %v2269 = vld [vmem:[%s2258 + $0x50] sm:$0xff]
        %v2270 = vld [vmem:[%s2258 + $0x58] sm:$0xff]
        %v2271 = vld [vmem:[%s2258 + $0x60] sm:$0xff]
        %v2272 = vld [vmem:[%s2258 + $0x68] sm:$0xff]
        %v2273 = vld [vmem:[%s2258 + $0x70] sm:$0xff]
        %v2274 = vld [vmem:[%s2258 + $0x78] sm:$0xff]
        %2275 = vmatprep.subr.mxu0 0.0
        %2276 = vmatpush1.msra.mxu0 %v2259
        %2277 = vmatprep.subr.mxu0 0.0
        %2278 = vmatpush1.msra.mxu0 %v2260
        %2279 = vmatprep.subr.mxu0 0.0
        %2280 = vmatpush1.msra.mxu0 %v2261
        %2281 = vmatprep.subr.mxu0 0.0
        %2282 = vmatpush1.msra.mxu0 %v2262
        %2283 = vmatprep.subr.mxu0 0.0
        %2284 = vmatpush1.msra.mxu0 %v2263
        %2285 = vmatprep.subr.mxu0 0.0
        %2286 = vmatpush1.msra.mxu0 %v2264
        %2287 = vmatprep.subr.mxu0 0.0
        %2288 = vmatpush1.msra.mxu0 %v2265
        %2289 = vmatprep.subr.mxu0 0.0
        %2290 = vmatpush1.msra.mxu0 %v2266
        %2291 = vmatprep.subr.mxu0 0.0
        %2292 = vmatpush1.msra.mxu0 %v2267
        %2293 = vmatprep.subr.mxu0 0.0
        %2294 = vmatpush1.msra.mxu0 %v2268
        %2295 = vmatprep.subr.mxu0 0.0
        %2296 = vmatpush1.msra.mxu0 %v2269
        %2297 = vmatprep.subr.mxu0 0.0
        %2298 = vmatpush1.msra.mxu0 %v2270
        %2299 = vmatprep.subr.mxu0 0.0
        %2300 = vmatpush1.msra.mxu0 %v2271
        %2301 = vmatprep.subr.mxu0 0.0
        %2302 = vmatpush1.msra.mxu0 %v2272
        %2303 = vmatprep.subr.mxu0 0.0
        %2304 = vmatpush1.msra.mxu0 %v2273
        %2305 = vmatprep.subr.mxu0 0.0
        %2306 = vmatpush1.msra.mxu0 %v2274
        %2307 = vmatprep.subr.mxu0 0.0
        %2308 = vmatpush1.msra.mxu0 0.0
        %2309 = vmatprep.subr.mxu0 0.0
        %2310 = vmatpush1.msra.mxu0 0.0
        %2311 = vmatprep.subr.mxu0 0.0
        %2312 = vmatpush1.msra.mxu0 0.0
        %2313 = vmatprep.subr.mxu0 0.0
        %2314 = vmatpush1.msra.mxu0 0.0
        %2315 = vmatprep.subr.mxu0 0.0
        %2316 = vmatpush1.msra.mxu0 0.0
        %2317 = vmatprep.subr.mxu0 0.0
        %2318 = vmatpush1.msra.mxu0 0.0
        %2319 = vmatprep.subr.mxu0 0.0
        %2320 = vmatpush1.msra.mxu0 0.0
        %2321 = vmatprep.subr.mxu0 0.0
        %2322 = vmatpush1.msra.mxu0 0.0
        %2323 = vmatprep.subr.mxu0 0.0
        %2324 = vmatpush1.msra.mxu0 0.0
        %2325 = vmatprep.subr.mxu0 0.0
        %2326 = vmatpush1.msra.mxu0 0.0
        %2327 = vmatprep.subr.mxu0 0.0
        %2328 = vmatpush1.msra.mxu0 0.0
        %2329 = vmatprep.subr.mxu0 0.0
        %2330 = vmatpush1.msra.mxu0 0.0
        %2331 = vmatprep.subr.mxu0 0.0
        %2332 = vmatpush1.msra.mxu0 0.0
        %2333 = vmatprep.subr.mxu0 0.0
        %2334 = vmatpush1.msra.mxu0 0.0
        %2335 = vmatprep.subr.mxu0 0.0
        %2336 = vmatpush1.msra.mxu0 0.0
        %2337 = vmatprep.subr.mxu0 0.0
        %2338 = vmatpush1.msra.mxu0 0.0
        %2339 = vmatprep.mubr.f32.mxu0 0.0
        %2340 = vmatmul.mubr.f32.gmra.mrb[0].mxu0 %v2256
        %v2341 = vpop.f32.mrb[0].mxu0
        %v2342 = vadd.f32 0.0, %v2341
        %v2343 = vpop.f32.mrb[0].mxu0
        %2344 = vmatprep.mubr.f32.mxu0 0.0
        %2345 = vmatmul.mubr.f32.gmra.mrb[0].mxu0 %v2257
        %v2346 = vpop.f32.mrb[0].mxu0
        %v2347 = vadd.f32 0.0, %v2346
        %v2348 = vpop.f32.mrb[0].mxu0
        %2349 = vdwg.mxu0
        %2350 = vmatprep.subr.mxu0 0.0
        %2351 = vmatpush1.msra.mxu0 %v2240
        %2352 = vmatprep.subr.mxu0 0.0
        %2353 = vmatpush1.msra.mxu0 %v2241
        %2354 = vmatprep.subr.mxu0 0.0
        %2355 = vmatpush1.msra.mxu0 %v2242
        %2356 = vmatprep.subr.mxu0 0.0
        %2357 = vmatpush1.msra.mxu0 %v2243
        %2358 = vmatprep.subr.mxu0 0.0
        %2359 = vmatpush1.msra.mxu0 %v2244
        %2360 = vmatprep.subr.mxu0 0.0
        %2361 = vmatpush1.msra.mxu0 %v2245
        %2362 = vmatprep.subr.mxu0 0.0
        %2363 = vmatpush1.msra.mxu0 %v2246
        %2364 = vmatprep.subr.mxu0 0.0
        %2365 = vmatpush1.msra.mxu0 %v2247
        %2366 = vmatprep.subr.mxu0 0.0
        %2367 = vmatpush1.msra.mxu0 %v2248
        %2368 = vmatprep.subr.mxu0 0.0
        %2369 = vmatpush1.msra.mxu0 %v2249
        %2370 = vmatprep.subr.mxu0 0.0
        %2371 = vmatpush1.msra.mxu0 %v2250
        %2372 = vmatprep.subr.mxu0 0.0
        %2373 = vmatpush1.msra.mxu0 %v2251
        %2374 = vmatprep.subr.mxu0 0.0
        %2375 = vmatpush1.msra.mxu0 %v2252
        %2376 = vmatprep.subr.mxu0 0.0
        %2377 = vmatpush1.msra.mxu0 %v2253
        %2378 = vmatprep.subr.mxu0 0.0
        %2379 = vmatpush1.msra.mxu0 %v2254
        %2380 = vmatprep.subr.mxu0 0.0
        %2381 = vmatpush1.msra.mxu0 %v2255
        %2382 = vmatprep.subr.mxu0 0.0
        %2383 = vmatpush1.msra.mxu0 0.0
        %2384 = vmatprep.subr.mxu0 0.0
        %2385 = vmatpush1.msra.mxu0 0.0
        %2386 = vmatprep.subr.mxu0 0.0
        %2387 = vmatpush1.msra.mxu0 0.0
        %2388 = vmatprep.subr.mxu0 0.0
        %2389 = vmatpush1.msra.mxu0 0.0
        %2390 = vmatprep.subr.mxu0 0.0
        %2391 = vmatpush1.msra.mxu0 0.0
        %2392 = vmatprep.subr.mxu0 0.0
        %2393 = vmatpush1.msra.mxu0 0.0
        %2394 = vmatprep.subr.mxu0 0.0
        %2395 = vmatpush1.msra.mxu0 0.0
        %2396 = vmatprep.subr.mxu0 0.0
        %2397 = vmatpush1.msra.mxu0 0.0
        %2398 = vmatprep.subr.mxu0 0.0
        %2399 = vmatpush1.msra.mxu0 0.0
        %2400 = vmatprep.subr.mxu0 0.0
        %2401 = vmatpush1.msra.mxu0 0.0
        %2402 = vmatprep.subr.mxu0 0.0
        %2403 = vmatpush1.msra.mxu0 0.0
        %2404 = vmatprep.subr.mxu0 0.0
        %2405 = vmatpush1.msra.mxu0 0.0
        %2406 = vmatprep.subr.mxu0 0.0
        %2407 = vmatpush1.msra.mxu0 0.0
        %2408 = vmatprep.subr.mxu0 0.0
        %2409 = vmatpush1.msra.mxu0 0.0
        %2410 = vmatprep.subr.mxu0 0.0
        %2411 = vmatpush1.msra.mxu0 0.0
        %2412 = vmatprep.subr.mxu0 0.0
        %2413 = vmatpush1.msra.mxu0 0.0
        %2414 = vmatprep.mubr.f32.mxu0 0.0
        %2415 = vmatmul.mubr.f32.gmra.mrb[0].mxu0 %v2238
        %v2416 = vpop.f32.mrb[0].mxu0
        %v2417 = vadd.f32 %v2342, %v2416
        %v2418 = vpop.f32.mrb[0].mxu0
        %2419 = vmatprep.mubr.f32.mxu0 0.0
        %2420 = vmatmul.mubr.f32.gmra.mrb[0].mxu0 %v2239
        %v2421 = vpop.f32.mrb[0].mxu0
        %v2422 = vadd.f32 %v2347, %v2421
        %v2423 = vpop.f32.mrb[0].mxu0
        %2424 = vdwg.mxu0
        %v2425 = vld [vmem:[%s744 + $0x2] sm:$0xff]
        %v2426 = vld [vmem:[%s744 + $0xa] sm:$0x3f]
        %s2427 = scalar_lea.vmem [#allocation11], 256
        %v2428 = vld [vmem:[%s2427] sm:$0xff]
        %v2429 = vld [vmem:[%s2427 + $0x8] sm:$0xff]
        %v2430 = vld [vmem:[%s2427 + $0x10] sm:$0xff]
        %v2431 = vld [vmem:[%s2427 + $0x18] sm:$0xff]
        %v2432 = vld [vmem:[%s2427 + $0x20] sm:$0xff]
        %v2433 = vld [vmem:[%s2427 + $0x28] sm:$0xff]
        %v2434 = vld [vmem:[%s2427 + $0x30] sm:$0xff]
        %v2435 = vld [vmem:[%s2427 + $0x38] sm:$0xff]
        %v2436 = vld [vmem:[%s2427 + $0x40] sm:$0xff]
        %v2437 = vld [vmem:[%s2427 + $0x48] sm:$0xff]
        %v2438 = vld [vmem:[%s2427 + $0x50] sm:$0xff]
        %v2439 = vld [vmem:[%s2427 + $0x58] sm:$0xff]
        %v2440 = vld [vmem:[%s2427 + $0x60] sm:$0xff]
        %v2441 = vld [vmem:[%s2427 + $0x68] sm:$0xff]
        %v2442 = vld [vmem:[%s2427 + $0x70] sm:$0xff]
        %v2443 = vld [vmem:[%s2427 + $0x78] sm:$0xff]
        %2444 = vmatprep.subr.mxu0 0.0
        %2445 = vmatpush1.msra.mxu0 %v2428
        %2446 = vmatprep.subr.mxu0 0.0
        %2447 = vmatpush1.msra.mxu0 %v2429
        %2448 = vmatprep.subr.mxu0 0.0
        %2449 = vmatpush1.msra.mxu0 %v2430
        %2450 = vmatprep.subr.mxu0 0.0
        %2451 = vmatpush1.msra.mxu0 %v2431
        %2452 = vmatprep.subr.mxu0 0.0
        %2453 = vmatpush1.msra.mxu0 %v2432
        %2454 = vmatprep.subr.mxu0 0.0
        %2455 = vmatpush1.msra.mxu0 %v2433
        %2456 = vmatprep.subr.mxu0 0.0
        %2457 = vmatpush1.msra.mxu0 %v2434
        %2458 = vmatprep.subr.mxu0 0.0
        %2459 = vmatpush1.msra.mxu0 %v2435
        %2460 = vmatprep.subr.mxu0 0.0
        %2461 = vmatpush1.msra.mxu0 %v2436
        %2462 = vmatprep.subr.mxu0 0.0
        %2463 = vmatpush1.msra.mxu0 %v2437
        %2464 = vmatprep.subr.mxu0 0.0
        %2465 = vmatpush1.msra.mxu0 %v2438
        %2466 = vmatprep.subr.mxu0 0.0
        %2467 = vmatpush1.msra.mxu0 %v2439
        %2468 = vmatprep.subr.mxu0 0.0
        %2469 = vmatpush1.msra.mxu0 %v2440
        %2470 = vmatprep.subr.mxu0 0.0
        %2471 = vmatpush1.msra.mxu0 %v2441
        %2472 = vmatprep.subr.mxu0 0.0
        %2473 = vmatpush1.msra.mxu0 %v2442
        %2474 = vmatprep.subr.mxu0 0.0
        %2475 = vmatpush1.msra.mxu0 %v2443
        %2476 = vmatprep.subr.mxu0 0.0
        %2477 = vmatpush1.msra.mxu0 0.0
        %2478 = vmatprep.subr.mxu0 0.0
        %2479 = vmatpush1.msra.mxu0 0.0
        %2480 = vmatprep.subr.mxu0 0.0
        %2481 = vmatpush1.msra.mxu0 0.0
        %2482 = vmatprep.subr.mxu0 0.0
        %2483 = vmatpush1.msra.mxu0 0.0
        %2484 = vmatprep.subr.mxu0 0.0
        %2485 = vmatpush1.msra.mxu0 0.0
        %2486 = vmatprep.subr.mxu0 0.0
        %2487 = vmatpush1.msra.mxu0 0.0
        %2488 = vmatprep.subr.mxu0 0.0
        %2489 = vmatpush1.msra.mxu0 0.0
        %2490 = vmatprep.subr.mxu0 0.0
        %2491 = vmatpush1.msra.mxu0 0.0
        %2492 = vmatprep.subr.mxu0 0.0
        %2493 = vmatpush1.msra.mxu0 0.0
        %2494 = vmatprep.subr.mxu0 0.0
        %2495 = vmatpush1.msra.mxu0 0.0
        %2496 = vmatprep.subr.mxu0 0.0
        %2497 = vmatpush1.msra.mxu0 0.0
        %2498 = vmatprep.subr.mxu0 0.0
        %2499 = vmatpush1.msra.mxu0 0.0
        %2500 = vmatprep.subr.mxu0 0.0
        %2501 = vmatpush1.msra.mxu0 0.0
        %2502 = vmatprep.subr.mxu0 0.0
        %2503 = vmatpush1.msra.mxu0 0.0
        %2504 = vmatprep.subr.mxu0 0.0
        %2505 = vmatpush1.msra.mxu0 0.0
        %2506 = vmatprep.subr.mxu0 0.0
        %2507 = vmatpush1.msra.mxu0 0.0
        %2508 = vmatprep.mubr.f32.mxu0 0.0
        %2509 = vmatmul.mubr.f32.gmra.mrb[0].mxu0 %v2425
        %v2510 = vpop.f32.mrb[0].mxu0
        %v2511 = vadd.f32 0.0, %v2510
        %v2512 = vpop.f32.mrb[0].mxu0
        %2513 = vmatprep.mubr.f32.mxu0 0.0
        %2514 = vmatmul.mubr.f32.gmra.mrb[0].mxu0 %v2426
        %v2515 = vpop.f32.mrb[0].mxu0
        %v2516 = vadd.f32 0.0, %v2515
        %v2517 = vpop.f32.mrb[0].mxu0
        %2518 = vdwg.mxu0
        %v2519 = vadd.f32 %v2417, %v2511
        %v2520 = vadd.f32 %v2422, %v2516
        %v2521 = vld [vmem:[%s13] sm:$0x1]
        %v2523 = vlaneseq
        %v2524 = vshrl.u32 %v2523, 7
        %v2525 = vsub.s32 0, %v2524
        %v2526 = vrot.slane %v2521, %v2525
        %v2528 = vadd.f32 %v2519, %v2526
        %v2529 = vadd.f32 %v2520, %v2526
        %v2530 = vmax.f32 %v2528, 0.0
        %v2531 = vmax.f32 %v2529, 0.0
        %2532 = vst [vmem:[%s769] sm:$0xff] %v2530
        %2533 = vst [vmem:[%s769 + $0x8] sm:$0x3f] %v2531
        %p2534 = scmp.lt.s32.totalorder %s38, 1
        %s2535 = scalar_select %p2534, %s38, 1
        %s2536 = smul.addr %s2535, 2
        %s2537 = smul.addr %s2536, 8
        %s2538 = scalar_lea.vmem %s14, %s2537
        %s2539 = sand.u32 %s376, 1
        %s2540 = scalar_lea.sflag [#allocation4], %s2539
        %s2541 = sand.u32 %s376, 1
        %s2542 = smul.addr %s2541, 8
        %s2543 = scalar_lea.vmem [#allocation13], %s2542
        %p2544 = scmp.lt.s32.totalorder %s38, 1
        %s2545 = scalar_select %p2544, %s38, 1
        %s2546 = smul.addr %s2545, 2
        %s2547 = smul.addr %s2546, 8
        %s2548 = scalar_lea.vmem %s16, %s2547
        %p2549 = scmp.lt.s32.totalorder %s38, 1
        %s2550 = scalar_select %p2549, %s38, 1
        %s2551 = smul.addr %s2550, 2
        %s2552 = smul.addr %s2551, 8
        %s2553 = scalar_lea.vmem %s17, %s2552
        %p2554 = scmp.lt.s32.totalorder %s38, 1
        %s2555 = scalar_select %p2554, %s38, 1
        %s2556 = smul.addr %s2555, 2
        %s2557 = smul.addr %s2556, 8
        %s2558 = scalar_lea.vmem %s18, %s2557
        %p2559 = scmp.lt.s32.totalorder %s38, 1
        %s2560 = scalar_select %p2559, %s38, 1
        %s2561 = smul.addr %s2560, 2
        %s2562 = smul.addr %s2561, 8
        %s2563 = scalar_lea.vmem %s19, %s2562
        // Predicated region
        $region101: #{tpu_custom_call.1} parent=75 // pred_check
          %p2564 = pneg %p360
        $region102: #{tpu_custom_call.1} parent=75 // pred_check_branch
          %2566 = sbr.rel (%p2564) target = $region104
        $region103: #{tpu_custom_call.1} parent=75 // pred_region
          _
        $region104: #{tpu_custom_call.1} parent=75 // pred_fallthru
          _
        // Predicated region
        $region105: #{tpu_custom_call.1} parent=75 // pred_check
          %p2567 = pneg %p386
        $region106: #{tpu_custom_call.1} parent=75 // pred_check_branch
          %2569 = sbr.rel (%p2567) target = $region108
        $region107: #{tpu_custom_call.1} parent=75 // pred_region
          %s2571 = ssub.s32 128, 128
          %2572 = vsyncadd %s2540, %s2571
          %s2573 = smul.addr %s38, 128
          %s2574 = scalar_lea.hbm %s15, %s2573
          %s2576 = sshll.u32 %s2543, 4
          %s2577 = int_to_ptr.vmem [resolvable:$true] %s2576
          %2579 = dma.vmem_to_hbm [thread:$0]  %s2577, 128, %s2574, %s2540
        $region108: #{tpu_custom_call.1} parent=75 // pred_fallthru
          _
        // Predicated region
        $region109: #{tpu_custom_call.1} parent=75 // pred_check
          %p2580 = pneg %p412
        $region110: #{tpu_custom_call.1} parent=75 // pred_check_branch
          %2582 = sbr.rel (%p2580) target = $region112
        $region111: #{tpu_custom_call.1} parent=75 // pred_region
          _
        $region112: #{tpu_custom_call.1} parent=75 // pred_fallthru
          _
        // Predicated region
        $region113: #{tpu_custom_call.1} parent=75 // pred_check
          %p2583 = pneg %p438
        $region114: #{tpu_custom_call.1} parent=75 // pred_check_branch
          %2585 = sbr.rel (%p2583) target = $region116
        $region115: #{tpu_custom_call.1} parent=75 // pred_region
          _
        $region116: #{tpu_custom_call.1} parent=75 // pred_fallthru
          _
        // Predicated region
        $region117: #{tpu_custom_call.1} parent=75 // pred_check
          %p2586 = pneg %p464
        $region118: #{tpu_custom_call.1} parent=75 // pred_check_branch
          %2588 = sbr.rel (%p2586) target = $region120
        $region119: #{tpu_custom_call.1} parent=75 // pred_region
          _
        $region120: #{tpu_custom_call.1} parent=75 // pred_fallthru
          _
        // Predicated region
        $region121: #{tpu_custom_call.1} parent=75 // pred_check
          %p2589 = pneg %p490
        $region122: #{tpu_custom_call.1} parent=75 // pred_check_branch
          %2591 = sbr.rel (%p2589) target = $region124
        $region123: #{tpu_custom_call.1} parent=75 // pred_region
          _
        $region124: #{tpu_custom_call.1} parent=75 // pred_fallthru
          _
      $region76: #{tpu_custom_call.1} parent=5 // pred_fallthru
        _
      %p2592 = scmp.le.s32.totalorder 2, %s33
      // Predicated region
      $region125: #{tpu_custom_call.1} parent=5 // pred_check
        %p2593 = pneg %p2592
      $region126: #{tpu_custom_call.1} parent=5 // pred_check_branch
        %2595 = sbr.rel (%p2593) target = $region128
      $region127: #{tpu_custom_call.1} parent=5 // pred_region
        %s2596 = ssub.s32 %s33, 2
        // Predicated region
        $region129: #{tpu_custom_call.1} parent=127 // pred_check
          %p2597 = pneg %p366
        $region130: #{tpu_custom_call.1} parent=127 // pred_check_branch
          %2599 = sbr.rel (%p2597) target = $region132
        $region131: #{tpu_custom_call.1} parent=127 // pred_region
          %p2600 = scmp.lt.s32.totalorder %s39, 1
          %s2601 = scalar_select %p2600, %s39, 1
          %s2602 = smul.addr %s2601, 2
          %s2603 = smul.addr %s2602, 8
          %s2604 = scalar_lea.vmem %s14, %s2603
        $region132: #{tpu_custom_call.1} parent=127 // pred_fallthru
          _
        // Predicated region
        $region133: #{tpu_custom_call.1} parent=127 // pred_check
          %p2605 = pneg %p392
        $region134: #{tpu_custom_call.1} parent=127 // pred_check_branch
          %2607 = sbr.rel (%p2605) target = $region136
        $region135: #{tpu_custom_call.1} parent=127 // pred_region
          %s2608 = sand.u32 %s377, 1
          %s2609 = scalar_lea.sflag [#allocation4], %s2608
          %s2610 = sand.u32 %s377, 1
          %s2611 = smul.addr %s2610, 8
          %s2612 = scalar_lea.vmem [#allocation13], %s2611
          %2613 = dma.done %s2609, 128
        $region136: #{tpu_custom_call.1} parent=127 // pred_fallthru
          _
        // Predicated region
        $region137: #{tpu_custom_call.1} parent=127 // pred_check
          %p2614 = pneg %p418
        $region138: #{tpu_custom_call.1} parent=127 // pred_check_branch
          %2616 = sbr.rel (%p2614) target = $region140
        $region139: #{tpu_custom_call.1} parent=127 // pred_region
          %p2617 = scmp.lt.s32.totalorder %s39, 1
          %s2618 = scalar_select %p2617, %s39, 1
          %s2619 = smul.addr %s2618, 2
          %s2620 = smul.addr %s2619, 8
          %s2621 = scalar_lea.vmem %s16, %s2620
        $region140: #{tpu_custom_call.1} parent=127 // pred_fallthru
          _
        // Predicated region
        $region141: #{tpu_custom_call.1} parent=127 // pred_check
          %p2622 = pneg %p444
        $region142: #{tpu_custom_call.1} parent=127 // pred_check_branch
          %2624 = sbr.rel (%p2622) target = $region144
        $region143: #{tpu_custom_call.1} parent=127 // pred_region
          %p2625 = scmp.lt.s32.totalorder %s39, 1
          %s2626 = scalar_select %p2625, %s39, 1
          %s2627 = smul.addr %s2626, 2
          %s2628 = smul.addr %s2627, 8
          %s2629 = scalar_lea.vmem %s17, %s2628
        $region144: #{tpu_custom_call.1} parent=127 // pred_fallthru
          _
        // Predicated region
        $region145: #{tpu_custom_call.1} parent=127 // pred_check
          %p2630 = pneg %p470
        $region146: #{tpu_custom_call.1} parent=127 // pred_check_branch
          %2632 = sbr.rel (%p2630) target = $region148
        $region147: #{tpu_custom_call.1} parent=127 // pred_region
          %p2633 = scmp.lt.s32.totalorder %s39, 1
          %s2634 = scalar_select %p2633, %s39, 1
          %s2635 = smul.addr %s2634, 2
          %s2636 = smul.addr %s2635, 8
          %s2637 = scalar_lea.vmem %s18, %s2636
        $region148: #{tpu_custom_call.1} parent=127 // pred_fallthru
          _
        // Predicated region
        $region149: #{tpu_custom_call.1} parent=127 // pred_check
          %p2638 = pneg %p496
        $region150: #{tpu_custom_call.1} parent=127 // pred_check_branch
          %2640 = sbr.rel (%p2638) target = $region152
        $region151: #{tpu_custom_call.1} parent=127 // pred_region
          %p2641 = scmp.lt.s32.totalorder %s39, 1
          %s2642 = scalar_select %p2641, %s39, 1
          %s2643 = smul.addr %s2642, 2
          %s2644 = smul.addr %s2643, 8
          %s2645 = scalar_lea.vmem %s19, %s2644
        $region152: #{tpu_custom_call.1} parent=127 // pred_fallthru
          _
      $region128: #{tpu_custom_call.1} parent=5 // pred_fallthru
        _
    $region6: #{tpu_custom_call.1} parent=1 // loop_footer
      %s37 = sadd.s32 1, %s33
    $region7: #{tpu_custom_call.1} parent=1 // loop_footer_branch
      %32 = sbr.rel target = $region3
    $region8: #{tpu_custom_call.1} parent=1 // loop_exit
      _
    %2646 = vsyncpa [#allocation3], 1
    %s2647 = scalar_lea.sflag [#allocation3], 1
    %2648 = vsyncpa %s2647, 1
    %2649 = vsyncpa [#allocation6], 1
    %2650 = vsyncpa [#allocation9], 1
    %2651 = vsyncpa [#allocation12], 1
    %2652 = vsyncpa [#allocation4], 1
    %s2653 = scalar_lea.sflag [#allocation4], 1
    %2654 = vsyncpa %s2653, 1

</llo_original>
